<compile_context>
chip_gen: v7x
topology: tpu7x:2x2x1
jax: 0.10.0
libtpu: 0.0.40
codegen_flags: <defaults>
</compile_context>

<pallas_src>
import jax
import jax.numpy as jnp
from jax import lax
from jax.experimental import pallas as pl
from jax.experimental.pallas import tpu as pltpu

BATCH = 2
SEQ = 8
EMBED = 32          # config.embedding_dim
NUM_BLOCKS = 2      # config.num_blocks


def _layernorm(x, gamma, beta, eps=1e-5):
    mu = jnp.mean(x, axis=-1, keepdims=True)
    var = jnp.mean(jnp.square(x - mu), axis=-1, keepdims=True)
    return (x - mu) * lax.rsqrt(var + eps) * gamma + beta


def _stock_kernel(price_ref, time_ref, small_ref, wg_ref, rg_ref, out_ref):
    S, B = price_ref.shape
    n_blocks, E, _ = wg_ref.shape

    # ---- unpack the small packed parameter slab (rows x 4E, f32) ----
    sp = small_ref[...]
    w_price = sp[0:1, 0:E].reshape(1, 1, E)
    w_time = sp[1:2, 0:E].reshape(1, 1, E)
    bias_in = sp[2:3, 0:E].reshape(1, 1, E)
    png = sp[3:4, 0:E]                                      # post LN gamma (1, E)
    pnb = sp[4:5, 0:E]                                      # post LN beta  (1, E)
    w_fc = sp[5:6, 0:E]                                     # fc.weight^T   (1, E)
    b_fc = sp[5:6, E:E + 1]                                 # fc.bias       (1, 1)

    # ---- input_proj: Linear(2 -> E) as two broadcast FMAs, time-major ----
    x = (price_ref[...][:, :, None] * w_price
         + time_ref[...][:, :, None] * w_time
         + bias_in)                                         # (S, B, E) f32

    # ---- xLSTM block stack ----
    # TODO(synk): library xLSTMBlockStack block internals (causal Conv1d,
    # multi-head exponential gating + GroupNorm, gated up-projection FFN) are
    # simplified to pre-LayerNorm single-head sLSTM recurrences with residual
    # connections (exponential gating + max-stabilizer kept).
    x_last = x[S - 1]                                       # (B, E) fallback
    for blk in range(n_blocks):
        last_block = blk == n_blocks - 1
        g = sp[6 + blk:7 + blk, 0:E]                        # per-block LN gamma
        bt = sp[6 + n_blocks + blk:7 + n_blocks + blk, 0:E]  # per-block LN beta
        bgate = sp[6 + 2 * n_blocks + blk:
                   7 + 2 * n_blocks + blk, :]               # gate bias (1, 4E)

        xn = _layernorm(x, g, bt)                           # (S, B, E)

        W = wg_ref[blk]                                     # (E, 4E) bf16
        R = rg_ref[blk]                                     # (E, 4E) bf16

        # Hoisted input-side gate projection: one (S*B, E)@(E, 4E) bf16 MXU
        # call (single pass) with f32 accumulation; time-major layout makes
        # the reshape contiguous.
        gates_x = jnp.dot(xn.reshape(S * B, E).astype(jnp.bfloat16), W,
                          preferred_element_type=jnp.float32) + bgate
        gates_x = gates_x.reshape(S, B, 4 * E)

        # TODO(synk): a weight-stationary R (pltpu.matmul_push_rhs +
        # matmul_acc_lhs/matmul_pop per step) would avoid re-streaming R every
        # step; the explicit-MXU path is not used here to keep lowering robust
        # at these tiny (B=2) shapes.
        h = jnp.zeros((B, E), jnp.float32)
        c = jnp.zeros((B, E), jnp.float32)
        n = jnp.zeros((B, E), jnp.float32)
        m = jnp.zeros((B, E), jnp.float32)
        h_steps = []
        for t in range(S):                                  # short static unroll
            gates = gates_x[t] + jnp.dot(
                h.astype(jnp.bfloat16), R,
                preferred_element_type=jnp.float32)         # (B, 4E) f32
            i_raw = gates[:, 0 * E:1 * E]
            f_raw = gates[:, 1 * E:2 * E]
            z_raw = gates[:, 2 * E:3 * E]
            o_raw = gates[:, 3 * E:4 * E]
            m_new = jnp.maximum(f_raw + m, i_raw)           # stabilizer
            # Single lane-dense (B, 4E) EUP exp for all four gates:
            # stabilized i/f exponentials + the exps for tanh(z), sigmoid(o).
            e = jnp.exp(jnp.concatenate(
                [i_raw - m_new, f_raw + m - m_new,
                 -2.0 * z_raw, -o_raw], axis=-1))           # (B, 4E)
            i_p = e[:, 0 * E:1 * E]
            f_p = e[:, 1 * E:2 * E]
            rec = pl.reciprocal(1.0 + e[:, 2 * E:4 * E], approx=True)
            z_t = 2.0 * rec[:, 0:E] - 1.0                   # tanh(z_raw)
            o_t = rec[:, E:2 * E]                           # sigmoid(o_raw)
            c = f_p * c + i_p * z_t
            n = f_p * n + i_p
            h = o_t * (c * pl.reciprocal(jnp.maximum(n, 1e-6), approx=True))
            m = m_new
            if not last_block:
                h_steps.append(h)                           # stays in vregs

        if last_block:
            # Only the last step feeds the head: skip the stack and the full
            # (S, B, E) residual add in the final block.
            x_last = x[S - 1] + h
        else:
            x = x + jnp.stack(h_steps, axis=0)              # (S, B, E) residual

    # ---- post-blocks LayerNorm + fc, applied only to the last time step ----
    x_last = _layernorm(x_last, png, pnb)                   # (B, E)
    out_ref[...] = (jnp.sum(x_last * w_fc, axis=-1, keepdims=True) + b_fc)


def _pack_small_params(params):
    """Pack all E-wide / 4E-wide small tensors into one (6 + 3*NB, 4E) slab."""
    E = params["wp"].shape[1]
    e4 = 4 * E

    def pad_rows(v):
        v = v.reshape(-1, E).astype(jnp.float32)
        return jnp.pad(v, ((0, 0), (0, e4 - E)))

    wf_row = pad_rows(params["wf"].reshape(1, E))
    wf_row = wf_row.at[0, E].set(params["bf"].reshape(()))  # stash fc bias
    small = jnp.concatenate(
        [pad_rows(params["wp"][0:1]),        # row 0: input_proj price weight
         pad_rows(params["wp"][1:2]),        # row 1: input_proj time weight
         pad_rows(params["bp"]),             # row 2: input_proj bias
         pad_rows(params["png"]),            # row 3: post LN gamma
         pad_rows(params["pnb"]),            # row 4: post LN beta
         wf_row,                             # row 5: fc weight (+ bias @ col E)
         pad_rows(params["lng"]),            # rows 6 .. 6+NB: block LN gamma
         pad_rows(params["lnb"]),            # rows 6+NB .. 6+2NB: block LN beta
         params["bg"].astype(jnp.float32)],  # rows 6+2NB .. 6+3NB: gate biases
        axis=0)
    return small


def stock_prediction_forward(x, time_features, params):
    B, S = x.shape
    small = _pack_small_params(params)
    # bf16 weights: single-pass MXU matmuls, half the wg/rg DMA bytes.
    wg_bf16 = params["wg"].astype(jnp.bfloat16)
    rg_bf16 = params["rg"].astype(jnp.bfloat16)
    price_t = x.astype(jnp.float32).T                       # (S, B) time-major
    time_t = time_features.astype(jnp.float32).T
    vmem = pl.BlockSpec(memory_space=pltpu.MemorySpace.VMEM)
    # Gridless single-TC call: all weights + activations fit easily in VMEM.
    # TODO(synk): if B/S scale up, add a batch grid axis with
    # dimension_semantics=("parallel",) so both v7x TensorCores are used, and
    # re-budget tiles against v7x's 64 MiB VMEM.
    return pl.pallas_call(
        _stock_kernel,
        out_shape=jax.ShapeDtypeStruct((B, 1), jnp.float32),
        in_specs=[vmem] * 5,
        out_specs=vmem,
    )(price_t, time_t, small, wg_bf16, rg_bf16)


def init_params(key, embed=EMBED, num_blocks=NUM_BLOCKS):
    ks = jax.random.split(key, 6)

    def unif(k, shape, fan_in):
        bound = 1.0 / float(fan_in) ** 0.5
        return jax.random.uniform(k, shape, jnp.float32, -bound, bound)

    return dict(
        wp=unif(ks[0], (2, embed), 2),                          # input_proj.weight^T
        bp=unif(ks[1], (1, embed), 2),                          # input_proj.bias
        wg=unif(ks[2], (num_blocks, embed, 4 * embed), embed),  # sLSTM input weights
        rg=unif(ks[3], (num_blocks, embed, 4 * embed), embed),  # sLSTM recurrent weights
        bg=jnp.zeros((num_blocks, 4 * embed), jnp.float32),     # gate biases
        lng=jnp.ones((num_blocks, embed), jnp.float32),         # per-block LN gamma
        lnb=jnp.zeros((num_blocks, embed), jnp.float32),        # per-block LN beta
        png=jnp.ones((1, embed), jnp.float32),                  # post-blocks LN gamma
        pnb=jnp.zeros((1, embed), jnp.float32),                 # post-blocks LN beta
        wf=unif(ks[4], (embed, 1), embed),                      # fc.weight^T
        bf=unif(ks[5], (1, 1), embed),                          # fc.bias
    )


if __name__ == "__main__":
    key = jax.random.PRNGKey(0)
    kx, kt, kp = jax.random.split(key, 3)
    x = jax.random.normal(kx, (BATCH, SEQ), jnp.float32)            # prices
    time_features = jax.random.normal(kt, (BATCH, SEQ), jnp.float32)
    params = init_params(kp)

    out = stock_prediction_forward(x, time_features, params)
    out = jax.block_until_ready(out)
    assert out.shape == (BATCH, 1), out.shape
    assert bool(jnp.all(jnp.isfinite(out)))
    print("KERNEL_OK")
</pallas_src>

<mosaic_0001>
module attributes {stable_mosaic.version = 11 : i64} {
  func.func @_stock_kernel(%arg0: memref<8x2xf32, #tpu.memory_space<vmem>>, %arg1: memref<8x2xf32, #tpu.memory_space<vmem>>, %arg2: memref<12x128xf32, #tpu.memory_space<vmem>>, %arg3: memref<2x32x128xbf16, #tpu.memory_space<vmem>>, %arg4: memref<2x32x128xbf16, #tpu.memory_space<vmem>>, %arg5: memref<2x1xf32, #tpu.memory_space<vmem>>) attributes {dimension_semantics = [], scalar_prefetch = 0 : i64, scratch_operands = 0 : i64, tpu.core_type = #tpu.core_type<tc>} {
    %c0 = arith.constant 0 : index
    %c0_0 = arith.constant 0 : index
    %0 = vector.load %arg2[%c0, %c0_0] : memref<12x128xf32, #tpu.memory_space<vmem>>, vector<12x128xf32>
    %1 = vector.extract_strided_slice %0 {offsets = [0, 0], sizes = [1, 32], strides = [1, 1]} : vector<12x128xf32> to vector<1x32xf32>
    %2 = vector.shape_cast %1 : vector<1x32xf32> to vector<1x1x32xf32>
    %3 = vector.extract_strided_slice %0 {offsets = [1, 0], sizes = [1, 32], strides = [1, 1]} : vector<12x128xf32> to vector<1x32xf32>
    %4 = vector.shape_cast %3 : vector<1x32xf32> to vector<1x1x32xf32>
    %5 = vector.extract_strided_slice %0 {offsets = [2, 0], sizes = [1, 32], strides = [1, 1]} : vector<12x128xf32> to vector<1x32xf32>
    %6 = vector.shape_cast %5 : vector<1x32xf32> to vector<1x1x32xf32>
    %7 = vector.extract_strided_slice %0 {offsets = [3, 0], sizes = [1, 32], strides = [1, 1]} : vector<12x128xf32> to vector<1x32xf32>
    %8 = vector.extract_strided_slice %0 {offsets = [4, 0], sizes = [1, 32], strides = [1, 1]} : vector<12x128xf32> to vector<1x32xf32>
    %9 = vector.extract_strided_slice %0 {offsets = [5, 0], sizes = [1, 32], strides = [1, 1]} : vector<12x128xf32> to vector<1x32xf32>
    %10 = vector.extract_strided_slice %0 {offsets = [5, 32], sizes = [1, 1], strides = [1, 1]} : vector<12x128xf32> to vector<1x1xf32>
    %c0_1 = arith.constant 0 : index
    %c0_2 = arith.constant 0 : index
    %11 = vector.load %arg0[%c0_1, %c0_2] : memref<8x2xf32, #tpu.memory_space<vmem>>, vector<8x2xf32>
    %12 = vector.shape_cast %11 : vector<8x2xf32> to vector<8x2x1xf32>
    %13 = vector.broadcast %12 : vector<8x2x1xf32> to vector<8x2x32xf32>
    %14 = vector.broadcast %2 : vector<1x1x32xf32> to vector<8x2x32xf32>
    %15 = arith.mulf %13, %14 : vector<8x2x32xf32>
    %c0_3 = arith.constant 0 : index
    %c0_4 = arith.constant 0 : index
    %16 = vector.load %arg1[%c0_3, %c0_4] : memref<8x2xf32, #tpu.memory_space<vmem>>, vector<8x2xf32>
    %17 = vector.shape_cast %16 : vector<8x2xf32> to vector<8x2x1xf32>
    %18 = vector.broadcast %17 : vector<8x2x1xf32> to vector<8x2x32xf32>
    %19 = vector.broadcast %4 : vector<1x1x32xf32> to vector<8x2x32xf32>
    %20 = arith.mulf %18, %19 : vector<8x2x32xf32>
    %21 = arith.addf %15, %20 : vector<8x2x32xf32>
    %22 = vector.broadcast %6 : vector<1x1x32xf32> to vector<8x2x32xf32>
    %23 = arith.addf %21, %22 : vector<8x2x32xf32>
    %24 = vector.extract_strided_slice %0 {offsets = [6, 0], sizes = [1, 32], strides = [1, 1]} : vector<12x128xf32> to vector<1x32xf32>
    %25 = vector.extract_strided_slice %0 {offsets = [8, 0], sizes = [1, 32], strides = [1, 1]} : vector<12x128xf32> to vector<1x32xf32>
    %26 = vector.extract_strided_slice %0 {offsets = [10, 0], sizes = [1, 128], strides = [1, 1]} : vector<12x128xf32> to vector<1x128xf32>
    %cst = arith.constant dense<0.000000e+00> : vector<8x2xf32>
    %27 = vector.multi_reduction <add>, %23, %cst [2] : vector<8x2x32xf32> to vector<8x2xf32>
    %28 = vector.shape_cast %27 : vector<8x2xf32> to vector<8x2x1xf32>
    %cst_5 = arith.constant 3.200000e+01 : f32
    %29 = vector.broadcast %cst_5 : f32 to vector<8x2x1xf32>
    %30 = arith.divf %28, %29 : vector<8x2x1xf32>
    %31 = vector.broadcast %30 : vector<8x2x1xf32> to vector<8x2x32xf32>
    %32 = arith.subf %23, %31 : vector<8x2x32xf32>
    %33 = arith.mulf %32, %32 : vector<8x2x32xf32>
    %cst_6 = arith.constant dense<0.000000e+00> : vector<8x2xf32>
    %34 = vector.multi_reduction <add>, %33, %cst_6 [2] : vector<8x2x32xf32> to vector<8x2xf32>
    %35 = vector.shape_cast %34 : vector<8x2xf32> to vector<8x2x1xf32>
    %cst_7 = arith.constant 3.200000e+01 : f32
    %36 = vector.broadcast %cst_7 : f32 to vector<8x2x1xf32>
    %37 = arith.divf %35, %36 : vector<8x2x1xf32>
    %38 = vector.broadcast %30 : vector<8x2x1xf32> to vector<8x2x32xf32>
    %39 = arith.subf %23, %38 : vector<8x2x32xf32>
    %cst_8 = arith.constant 9.99999974E-6 : f32
    %40 = vector.broadcast %cst_8 : f32 to vector<8x2x1xf32>
    %41 = arith.addf %37, %40 : vector<8x2x1xf32>
    %42 = math.rsqrt %41 : vector<8x2x1xf32>
    %43 = vector.broadcast %42 : vector<8x2x1xf32> to vector<8x2x32xf32>
    %44 = arith.mulf %39, %43 : vector<8x2x32xf32>
    %45 = vector.shape_cast %24 : vector<1x32xf32> to vector<1x1x32xf32>
    %46 = vector.broadcast %45 : vector<1x1x32xf32> to vector<8x2x32xf32>
    %47 = arith.mulf %44, %46 : vector<8x2x32xf32>
    %48 = vector.shape_cast %25 : vector<1x32xf32> to vector<1x1x32xf32>
    %49 = vector.broadcast %48 : vector<1x1x32xf32> to vector<8x2x32xf32>
    %50 = arith.addf %47, %49 : vector<8x2x32xf32>
    %c0_9 = arith.constant 0 : index
    %c0_10 = arith.constant 0 : index
    %c0_11 = arith.constant 0 : index
    %51 = vector.load %arg3[%c0_9, %c0_10, %c0_11] : memref<2x32x128xbf16, #tpu.memory_space<vmem>>, vector<1x32x128xbf16>
    %52 = vector.shape_cast %51 : vector<1x32x128xbf16> to vector<32x128xbf16>
    %c0_12 = arith.constant 0 : index
    %c0_13 = arith.constant 0 : index
    %c0_14 = arith.constant 0 : index
    %53 = vector.load %arg4[%c0_12, %c0_13, %c0_14] : memref<2x32x128xbf16, #tpu.memory_space<vmem>>, vector<1x32x128xbf16>
    %54 = vector.shape_cast %53 : vector<1x32x128xbf16> to vector<32x128xbf16>
    %55 = vector.shape_cast %50 : vector<8x2x32xf32> to vector<16x32xf32>
    %56 = arith.truncf %55 : vector<16x32xf32> to vector<16x32xbf16>
    %cst_15 = arith.constant dense<0.000000e+00> : vector<16x128xf32>
    %57 = tpu.matmul %56, %52, %cst_15 {dimension_numbers = #tpu.dot_dimension_numbers<[1], [0], [0], [1], [0, 0, 1, 1], [], []>} : vector<16x32xbf16>, vector<32x128xbf16>, vector<16x128xf32> -> vector<16x128xf32>
    %58 = vector.broadcast %26 : vector<1x128xf32> to vector<16x128xf32>
    %59 = arith.addf %57, %58 : vector<16x128xf32>
    %60 = vector.shape_cast %59 : vector<16x128xf32> to vector<8x2x128xf32>
    %cst_16 = arith.constant 0.000000e+00 : f32
    %61 = vector.broadcast %cst_16 : f32 to vector<2x32xf32>
    %cst_17 = arith.constant 0.000000e+00 : f32
    %62 = vector.broadcast %cst_17 : f32 to vector<2x32xf32>
    %cst_18 = arith.constant 0.000000e+00 : f32
    %63 = vector.broadcast %cst_18 : f32 to vector<2x32xf32>
    %cst_19 = arith.constant 0.000000e+00 : f32
    %64 = vector.broadcast %cst_19 : f32 to vector<2x32xf32>
    %65 = vector.extract_strided_slice %60 {offsets = [0, 0, 0], sizes = [1, 2, 128], strides = [1, 1, 1]} : vector<8x2x128xf32> to vector<1x2x128xf32>
    %66 = vector.shape_cast %65 : vector<1x2x128xf32> to vector<2x128xf32>
    %67 = arith.truncf %61 : vector<2x32xf32> to vector<2x32xbf16>
    %cst_20 = arith.constant dense<0.000000e+00> : vector<2x128xf32>
    %68 = tpu.matmul %67, %54, %cst_20 {dimension_numbers = #tpu.dot_dimension_numbers<[1], [0], [0], [1], [0, 0, 1, 1], [], []>} : vector<2x32xbf16>, vector<32x128xbf16>, vector<2x128xf32> -> vector<2x128xf32>
    %69 = arith.addf %66, %68 : vector<2x128xf32>
    %70 = vector.extract_strided_slice %69 {offsets = [0, 0], sizes = [2, 32], strides = [1, 1]} : vector<2x128xf32> to vector<2x32xf32>
    %71 = vector.extract_strided_slice %69 {offsets = [0, 32], sizes = [2, 32], strides = [1, 1]} : vector<2x128xf32> to vector<2x32xf32>
    %72 = vector.extract_strided_slice %69 {offsets = [0, 64], sizes = [2, 32], strides = [1, 1]} : vector<2x128xf32> to vector<2x32xf32>
    %73 = vector.extract_strided_slice %69 {offsets = [0, 96], sizes = [2, 32], strides = [1, 1]} : vector<2x128xf32> to vector<2x32xf32>
    %74 = arith.addf %71, %64 : vector<2x32xf32>
    %75 = arith.maximumf %74, %70 : vector<2x32xf32>
    %76 = arith.subf %70, %75 : vector<2x32xf32>
    %77 = arith.addf %71, %64 : vector<2x32xf32>
    %78 = arith.subf %77, %75 : vector<2x32xf32>
    %cst_21 = arith.constant -2.000000e+00 : f32
    %79 = vector.broadcast %cst_21 : f32 to vector<2x32xf32>
    %80 = arith.mulf %79, %72 : vector<2x32xf32>
    %cst_22 = arith.constant 0.000000e+00 : f32
    %81 = vector.broadcast %cst_22 : f32 to vector<2x32xf32>
    %82 = arith.subf %81, %73 : vector<2x32xf32>
    %83 = tpu.concatenate %76, %78, %80, %82 in 1 : vector<2x32xf32>, vector<2x32xf32>, vector<2x32xf32>, vector<2x32xf32> -> vector<2x128xf32>
    %84 = math.exp %83 : vector<2x128xf32>
    %85 = vector.extract_strided_slice %84 {offsets = [0, 0], sizes = [2, 32], strides = [1, 1]} : vector<2x128xf32> to vector<2x32xf32>
    %86 = vector.extract_strided_slice %84 {offsets = [0, 32], sizes = [2, 32], strides = [1, 1]} : vector<2x128xf32> to vector<2x32xf32>
    %87 = vector.extract_strided_slice %84 {offsets = [0, 64], sizes = [2, 64], strides = [1, 1]} : vector<2x128xf32> to vector<2x64xf32>
    %cst_23 = arith.constant 1.000000e+00 : f32
    %88 = vector.broadcast %cst_23 : f32 to vector<2x64xf32>
    %89 = arith.addf %88, %87 : vector<2x64xf32>
    %90 = tpu.reciprocal %89 {approx = true} : vector<2x64xf32> -> vector<2x64xf32>
    %91 = vector.extract_strided_slice %90 {offsets = [0, 0], sizes = [2, 32], strides = [1, 1]} : vector<2x64xf32> to vector<2x32xf32>
    %cst_24 = arith.constant 2.000000e+00 : f32
    %92 = vector.broadcast %cst_24 : f32 to vector<2x32xf32>
    %93 = arith.mulf %92, %91 : vector<2x32xf32>
    %cst_25 = arith.constant 1.000000e+00 : f32
    %94 = vector.broadcast %cst_25 : f32 to vector<2x32xf32>
    %95 = arith.subf %93, %94 : vector<2x32xf32>
    %96 = vector.extract_strided_slice %90 {offsets = [0, 32], sizes = [2, 32], strides = [1, 1]} : vector<2x64xf32> to vector<2x32xf32>
    %97 = arith.mulf %86, %62 : vector<2x32xf32>
    %98 = arith.mulf %85, %95 : vector<2x32xf32>
    %99 = arith.addf %97, %98 : vector<2x32xf32>
    %100 = arith.mulf %86, %63 : vector<2x32xf32>
    %101 = arith.addf %100, %85 : vector<2x32xf32>
    %cst_26 = arith.constant 9.99999997E-7 : f32
    %102 = vector.broadcast %cst_26 : f32 to vector<2x32xf32>
    %103 = arith.maximumf %101, %102 : vector<2x32xf32>
    %104 = tpu.reciprocal %103 {approx = true} : vector<2x32xf32> -> vector<2x32xf32>
    %105 = arith.mulf %99, %104 : vector<2x32xf32>
    %106 = arith.mulf %96, %105 : vector<2x32xf32>
    %107 = vector.extract_strided_slice %60 {offsets = [1, 0, 0], sizes = [1, 2, 128], strides = [1, 1, 1]} : vector<8x2x128xf32> to vector<1x2x128xf32>
    %108 = vector.shape_cast %107 : vector<1x2x128xf32> to vector<2x128xf32>
    %109 = arith.truncf %106 : vector<2x32xf32> to vector<2x32xbf16>
    %cst_27 = arith.constant dense<0.000000e+00> : vector<2x128xf32>
    %110 = tpu.matmul %109, %54, %cst_27 {dimension_numbers = #tpu.dot_dimension_numbers<[1], [0], [0], [1], [0, 0, 1, 1], [], []>} : vector<2x32xbf16>, vector<32x128xbf16>, vector<2x128xf32> -> vector<2x128xf32>
    %111 = arith.addf %108, %110 : vector<2x128xf32>
    %112 = vector.extract_strided_slice %111 {offsets = [0, 0], sizes = [2, 32], strides = [1, 1]} : vector<2x128xf32> to vector<2x32xf32>
    %113 = vector.extract_strided_slice %111 {offsets = [0, 32], sizes = [2, 32], strides = [1, 1]} : vector<2x128xf32> to vector<2x32xf32>
    %114 = vector.extract_strided_slice %111 {offsets = [0, 64], sizes = [2, 32], strides = [1, 1]} : vector<2x128xf32> to vector<2x32xf32>
    %115 = vector.extract_strided_slice %111 {offsets = [0, 96], sizes = [2, 32], strides = [1, 1]} : vector<2x128xf32> to vector<2x32xf32>
    %116 = arith.addf %113, %75 : vector<2x32xf32>
    %117 = arith.maximumf %116, %112 : vector<2x32xf32>
    %118 = arith.subf %112, %117 : vector<2x32xf32>
    %119 = arith.addf %113, %75 : vector<2x32xf32>
    %120 = arith.subf %119, %117 : vector<2x32xf32>
    %cst_28 = arith.constant -2.000000e+00 : f32
    %121 = vector.broadcast %cst_28 : f32 to vector<2x32xf32>
    %122 = arith.mulf %121, %114 : vector<2x32xf32>
    %cst_29 = arith.constant 0.000000e+00 : f32
    %123 = vector.broadcast %cst_29 : f32 to vector<2x32xf32>
    %124 = arith.subf %123, %115 : vector<2x32xf32>
    %125 = tpu.concatenate %118, %120, %122, %124 in 1 : vector<2x32xf32>, vector<2x32xf32>, vector<2x32xf32>, vector<2x32xf32> -> vector<2x128xf32>
    %126 = math.exp %125 : vector<2x128xf32>
    %127 = vector.extract_strided_slice %126 {offsets = [0, 0], sizes = [2, 32], strides = [1, 1]} : vector<2x128xf32> to vector<2x32xf32>
    %128 = vector.extract_strided_slice %126 {offsets = [0, 32], sizes = [2, 32], strides = [1, 1]} : vector<2x128xf32> to vector<2x32xf32>
    %129 = vector.extract_strided_slice %126 {offsets = [0, 64], sizes = [2, 64], strides = [1, 1]} : vector<2x128xf32> to vector<2x64xf32>
    %cst_30 = arith.constant 1.000000e+00 : f32
    %130 = vector.broadcast %cst_30 : f32 to vector<2x64xf32>
    %131 = arith.addf %130, %129 : vector<2x64xf32>
    %132 = tpu.reciprocal %131 {approx = true} : vector<2x64xf32> -> vector<2x64xf32>
    %133 = vector.extract_strided_slice %132 {offsets = [0, 0], sizes = [2, 32], strides = [1, 1]} : vector<2x64xf32> to vector<2x32xf32>
    %cst_31 = arith.constant 2.000000e+00 : f32
    %134 = vector.broadcast %cst_31 : f32 to vector<2x32xf32>
    %135 = arith.mulf %134, %133 : vector<2x32xf32>
    %cst_32 = arith.constant 1.000000e+00 : f32
    %136 = vector.broadcast %cst_32 : f32 to vector<2x32xf32>
    %137 = arith.subf %135, %136 : vector<2x32xf32>
    %138 = vector.extract_strided_slice %132 {offsets = [0, 32], sizes = [2, 32], strides = [1, 1]} : vector<2x64xf32> to vector<2x32xf32>
    %139 = arith.mulf %128, %99 : vector<2x32xf32>
    %140 = arith.mulf %127, %137 : vector<2x32xf32>
    %141 = arith.addf %139, %140 : vector<2x32xf32>
    %142 = arith.mulf %128, %101 : vector<2x32xf32>
    %143 = arith.addf %142, %127 : vector<2x32xf32>
    %cst_33 = arith.constant 9.99999997E-7 : f32
    %144 = vector.broadcast %cst_33 : f32 to vector<2x32xf32>
    %145 = arith.maximumf %143, %144 : vector<2x32xf32>
    %146 = tpu.reciprocal %145 {approx = true} : vector<2x32xf32> -> vector<2x32xf32>
    %147 = arith.mulf %141, %146 : vector<2x32xf32>
    %148 = arith.mulf %138, %147 : vector<2x32xf32>
    %149 = vector.extract_strided_slice %60 {offsets = [2, 0, 0], sizes = [1, 2, 128], strides = [1, 1, 1]} : vector<8x2x128xf32> to vector<1x2x128xf32>
    %150 = vector.shape_cast %149 : vector<1x2x128xf32> to vector<2x128xf32>
    %151 = arith.truncf %148 : vector<2x32xf32> to vector<2x32xbf16>
    %cst_34 = arith.constant dense<0.000000e+00> : vector<2x128xf32>
    %152 = tpu.matmul %151, %54, %cst_34 {dimension_numbers = #tpu.dot_dimension_numbers<[1], [0], [0], [1], [0, 0, 1, 1], [], []>} : vector<2x32xbf16>, vector<32x128xbf16>, vector<2x128xf32> -> vector<2x128xf32>
    %153 = arith.addf %150, %152 : vector<2x128xf32>
    %154 = vector.extract_strided_slice %153 {offsets = [0, 0], sizes = [2, 32], strides = [1, 1]} : vector<2x128xf32> to vector<2x32xf32>
    %155 = vector.extract_strided_slice %153 {offsets = [0, 32], sizes = [2, 32], strides = [1, 1]} : vector<2x128xf32> to vector<2x32xf32>
    %156 = vector.extract_strided_slice %153 {offsets = [0, 64], sizes = [2, 32], strides = [1, 1]} : vector<2x128xf32> to vector<2x32xf32>
    %157 = vector.extract_strided_slice %153 {offsets = [0, 96], sizes = [2, 32], strides = [1, 1]} : vector<2x128xf32> to vector<2x32xf32>
    %158 = arith.addf %155, %117 : vector<2x32xf32>
    %159 = arith.maximumf %158, %154 : vector<2x32xf32>
    %160 = arith.subf %154, %159 : vector<2x32xf32>
    %161 = arith.addf %155, %117 : vector<2x32xf32>
    %162 = arith.subf %161, %159 : vector<2x32xf32>
    %cst_35 = arith.constant -2.000000e+00 : f32
    %163 = vector.broadcast %cst_35 : f32 to vector<2x32xf32>
    %164 = arith.mulf %163, %156 : vector<2x32xf32>
    %cst_36 = arith.constant 0.000000e+00 : f32
    %165 = vector.broadcast %cst_36 : f32 to vector<2x32xf32>
    %166 = arith.subf %165, %157 : vector<2x32xf32>
    %167 = tpu.concatenate %160, %162, %164, %166 in 1 : vector<2x32xf32>, vector<2x32xf32>, vector<2x32xf32>, vector<2x32xf32> -> vector<2x128xf32>
    %168 = math.exp %167 : vector<2x128xf32>
    %169 = vector.extract_strided_slice %168 {offsets = [0, 0], sizes = [2, 32], strides = [1, 1]} : vector<2x128xf32> to vector<2x32xf32>
    %170 = vector.extract_strided_slice %168 {offsets = [0, 32], sizes = [2, 32], strides = [1, 1]} : vector<2x128xf32> to vector<2x32xf32>
    %171 = vector.extract_strided_slice %168 {offsets = [0, 64], sizes = [2, 64], strides = [1, 1]} : vector<2x128xf32> to vector<2x64xf32>
    %cst_37 = arith.constant 1.000000e+00 : f32
    %172 = vector.broadcast %cst_37 : f32 to vector<2x64xf32>
    %173 = arith.addf %172, %171 : vector<2x64xf32>
    %174 = tpu.reciprocal %173 {approx = true} : vector<2x64xf32> -> vector<2x64xf32>
    %175 = vector.extract_strided_slice %174 {offsets = [0, 0], sizes = [2, 32], strides = [1, 1]} : vector<2x64xf32> to vector<2x32xf32>
    %cst_38 = arith.constant 2.000000e+00 : f32
    %176 = vector.broadcast %cst_38 : f32 to vector<2x32xf32>
    %177 = arith.mulf %176, %175 : vector<2x32xf32>
    %cst_39 = arith.constant 1.000000e+00 : f32
    %178 = vector.broadcast %cst_39 : f32 to vector<2x32xf32>
    %179 = arith.subf %177, %178 : vector<2x32xf32>
    %180 = vector.extract_strided_slice %174 {offsets = [0, 32], sizes = [2, 32], strides = [1, 1]} : vector<2x64xf32> to vector<2x32xf32>
    %181 = arith.mulf %170, %141 : vector<2x32xf32>
    %182 = arith.mulf %169, %179 : vector<2x32xf32>
    %183 = arith.addf %181, %182 : vector<2x32xf32>
    %184 = arith.mulf %170, %143 : vector<2x32xf32>
    %185 = arith.addf %184, %169 : vector<2x32xf32>
    %cst_40 = arith.constant 9.99999997E-7 : f32
    %186 = vector.broadcast %cst_40 : f32 to vector<2x32xf32>
    %187 = arith.maximumf %185, %186 : vector<2x32xf32>
    %188 = tpu.reciprocal %187 {approx = true} : vector<2x32xf32> -> vector<2x32xf32>
    %189 = arith.mulf %183, %188 : vector<2x32xf32>
    %190 = arith.mulf %180, %189 : vector<2x32xf32>
    %191 = vector.extract_strided_slice %60 {offsets = [3, 0, 0], sizes = [1, 2, 128], strides = [1, 1, 1]} : vector<8x2x128xf32> to vector<1x2x128xf32>
    %192 = vector.shape_cast %191 : vector<1x2x128xf32> to vector<2x128xf32>
    %193 = arith.truncf %190 : vector<2x32xf32> to vector<2x32xbf16>
    %cst_41 = arith.constant dense<0.000000e+00> : vector<2x128xf32>
    %194 = tpu.matmul %193, %54, %cst_41 {dimension_numbers = #tpu.dot_dimension_numbers<[1], [0], [0], [1], [0, 0, 1, 1], [], []>} : vector<2x32xbf16>, vector<32x128xbf16>, vector<2x128xf32> -> vector<2x128xf32>
    %195 = arith.addf %192, %194 : vector<2x128xf32>
    %196 = vector.extract_strided_slice %195 {offsets = [0, 0], sizes = [2, 32], strides = [1, 1]} : vector<2x128xf32> to vector<2x32xf32>
    %197 = vector.extract_strided_slice %195 {offsets = [0, 32], sizes = [2, 32], strides = [1, 1]} : vector<2x128xf32> to vector<2x32xf32>
    %198 = vector.extract_strided_slice %195 {offsets = [0, 64], sizes = [2, 32], strides = [1, 1]} : vector<2x128xf32> to vector<2x32xf32>
    %199 = vector.extract_strided_slice %195 {offsets = [0, 96], sizes = [2, 32], strides = [1, 1]} : vector<2x128xf32> to vector<2x32xf32>
    %200 = arith.addf %197, %159 : vector<2x32xf32>
    %201 = arith.maximumf %200, %196 : vector<2x32xf32>
    %202 = arith.subf %196, %201 : vector<2x32xf32>
    %203 = arith.addf %197, %159 : vector<2x32xf32>
    %204 = arith.subf %203, %201 : vector<2x32xf32>
    %cst_42 = arith.constant -2.000000e+00 : f32
    %205 = vector.broadcast %cst_42 : f32 to vector<2x32xf32>
    %206 = arith.mulf %205, %198 : vector<2x32xf32>
    %cst_43 = arith.constant 0.000000e+00 : f32
    %207 = vector.broadcast %cst_43 : f32 to vector<2x32xf32>
    %208 = arith.subf %207, %199 : vector<2x32xf32>
    %209 = tpu.concatenate %202, %204, %206, %208 in 1 : vector<2x32xf32>, vector<2x32xf32>, vector<2x32xf32>, vector<2x32xf32> -> vector<2x128xf32>
    %210 = math.exp %209 : vector<2x128xf32>
    %211 = vector.extract_strided_slice %210 {offsets = [0, 0], sizes = [2, 32], strides = [1, 1]} : vector<2x128xf32> to vector<2x32xf32>
    %212 = vector.extract_strided_slice %210 {offsets = [0, 32], sizes = [2, 32], strides = [1, 1]} : vector<2x128xf32> to vector<2x32xf32>
    %213 = vector.extract_strided_slice %210 {offsets = [0, 64], sizes = [2, 64], strides = [1, 1]} : vector<2x128xf32> to vector<2x64xf32>
    %cst_44 = arith.constant 1.000000e+00 : f32
    %214 = vector.broadcast %cst_44 : f32 to vector<2x64xf32>
    %215 = arith.addf %214, %213 : vector<2x64xf32>
    %216 = tpu.reciprocal %215 {approx = true} : vector<2x64xf32> -> vector<2x64xf32>
    %217 = vector.extract_strided_slice %216 {offsets = [0, 0], sizes = [2, 32], strides = [1, 1]} : vector<2x64xf32> to vector<2x32xf32>
    %cst_45 = arith.constant 2.000000e+00 : f32
    %218 = vector.broadcast %cst_45 : f32 to vector<2x32xf32>
    %219 = arith.mulf %218, %217 : vector<2x32xf32>
    %cst_46 = arith.constant 1.000000e+00 : f32
    %220 = vector.broadcast %cst_46 : f32 to vector<2x32xf32>
    %221 = arith.subf %219, %220 : vector<2x32xf32>
    %222 = vector.extract_strided_slice %216 {offsets = [0, 32], sizes = [2, 32], strides = [1, 1]} : vector<2x64xf32> to vector<2x32xf32>
    %223 = arith.mulf %212, %183 : vector<2x32xf32>
    %224 = arith.mulf %211, %221 : vector<2x32xf32>
    %225 = arith.addf %223, %224 : vector<2x32xf32>
    %226 = arith.mulf %212, %185 : vector<2x32xf32>
    %227 = arith.addf %226, %211 : vector<2x32xf32>
    %cst_47 = arith.constant 9.99999997E-7 : f32
    %228 = vector.broadcast %cst_47 : f32 to vector<2x32xf32>
    %229 = arith.maximumf %227, %228 : vector<2x32xf32>
    %230 = tpu.reciprocal %229 {approx = true} : vector<2x32xf32> -> vector<2x32xf32>
    %231 = arith.mulf %225, %230 : vector<2x32xf32>
    %232 = arith.mulf %222, %231 : vector<2x32xf32>
    %233 = vector.extract_strided_slice %60 {offsets = [4, 0, 0], sizes = [1, 2, 128], strides = [1, 1, 1]} : vector<8x2x128xf32> to vector<1x2x128xf32>
    %234 = vector.shape_cast %233 : vector<1x2x128xf32> to vector<2x128xf32>
    %235 = arith.truncf %232 : vector<2x32xf32> to vector<2x32xbf16>
    %cst_48 = arith.constant dense<0.000000e+00> : vector<2x128xf32>
    %236 = tpu.matmul %235, %54, %cst_48 {dimension_numbers = #tpu.dot_dimension_numbers<[1], [0], [0], [1], [0, 0, 1, 1], [], []>} : vector<2x32xbf16>, vector<32x128xbf16>, vector<2x128xf32> -> vector<2x128xf32>
    %237 = arith.addf %234, %236 : vector<2x128xf32>
    %238 = vector.extract_strided_slice %237 {offsets = [0, 0], sizes = [2, 32], strides = [1, 1]} : vector<2x128xf32> to vector<2x32xf32>
    %239 = vector.extract_strided_slice %237 {offsets = [0, 32], sizes = [2, 32], strides = [1, 1]} : vector<2x128xf32> to vector<2x32xf32>
    %240 = vector.extract_strided_slice %237 {offsets = [0, 64], sizes = [2, 32], strides = [1, 1]} : vector<2x128xf32> to vector<2x32xf32>
    %241 = vector.extract_strided_slice %237 {offsets = [0, 96], sizes = [2, 32], strides = [1, 1]} : vector<2x128xf32> to vector<2x32xf32>
    %242 = arith.addf %239, %201 : vector<2x32xf32>
    %243 = arith.maximumf %242, %238 : vector<2x32xf32>
    %244 = arith.subf %238, %243 : vector<2x32xf32>
    %245 = arith.addf %239, %201 : vector<2x32xf32>
    %246 = arith.subf %245, %243 : vector<2x32xf32>
    %cst_49 = arith.constant -2.000000e+00 : f32
    %247 = vector.broadcast %cst_49 : f32 to vector<2x32xf32>
    %248 = arith.mulf %247, %240 : vector<2x32xf32>
    %cst_50 = arith.constant 0.000000e+00 : f32
    %249 = vector.broadcast %cst_50 : f32 to vector<2x32xf32>
    %250 = arith.subf %249, %241 : vector<2x32xf32>
    %251 = tpu.concatenate %244, %246, %248, %250 in 1 : vector<2x32xf32>, vector<2x32xf32>, vector<2x32xf32>, vector<2x32xf32> -> vector<2x128xf32>
    %252 = math.exp %251 : vector<2x128xf32>
    %253 = vector.extract_strided_slice %252 {offsets = [0, 0], sizes = [2, 32], strides = [1, 1]} : vector<2x128xf32> to vector<2x32xf32>
    %254 = vector.extract_strided_slice %252 {offsets = [0, 32], sizes = [2, 32], strides = [1, 1]} : vector<2x128xf32> to vector<2x32xf32>
    %255 = vector.extract_strided_slice %252 {offsets = [0, 64], sizes = [2, 64], strides = [1, 1]} : vector<2x128xf32> to vector<2x64xf32>
    %cst_51 = arith.constant 1.000000e+00 : f32
    %256 = vector.broadcast %cst_51 : f32 to vector<2x64xf32>
    %257 = arith.addf %256, %255 : vector<2x64xf32>
    %258 = tpu.reciprocal %257 {approx = true} : vector<2x64xf32> -> vector<2x64xf32>
    %259 = vector.extract_strided_slice %258 {offsets = [0, 0], sizes = [2, 32], strides = [1, 1]} : vector<2x64xf32> to vector<2x32xf32>
    %cst_52 = arith.constant 2.000000e+00 : f32
    %260 = vector.broadcast %cst_52 : f32 to vector<2x32xf32>
    %261 = arith.mulf %260, %259 : vector<2x32xf32>
    %cst_53 = arith.constant 1.000000e+00 : f32
    %262 = vector.broadcast %cst_53 : f32 to vector<2x32xf32>
    %263 = arith.subf %261, %262 : vector<2x32xf32>
    %264 = vector.extract_strided_slice %258 {offsets = [0, 32], sizes = [2, 32], strides = [1, 1]} : vector<2x64xf32> to vector<2x32xf32>
    %265 = arith.mulf %254, %225 : vector<2x32xf32>
    %266 = arith.mulf %253, %263 : vector<2x32xf32>
    %267 = arith.addf %265, %266 : vector<2x32xf32>
    %268 = arith.mulf %254, %227 : vector<2x32xf32>
    %269 = arith.addf %268, %253 : vector<2x32xf32>
    %cst_54 = arith.constant 9.99999997E-7 : f32
    %270 = vector.broadcast %cst_54 : f32 to vector<2x32xf32>
    %271 = arith.maximumf %269, %270 : vector<2x32xf32>
    %272 = tpu.reciprocal %271 {approx = true} : vector<2x32xf32> -> vector<2x32xf32>
    %273 = arith.mulf %267, %272 : vector<2x32xf32>
    %274 = arith.mulf %264, %273 : vector<2x32xf32>
    %275 = vector.extract_strided_slice %60 {offsets = [5, 0, 0], sizes = [1, 2, 128], strides = [1, 1, 1]} : vector<8x2x128xf32> to vector<1x2x128xf32>
    %276 = vector.shape_cast %275 : vector<1x2x128xf32> to vector<2x128xf32>
    %277 = arith.truncf %274 : vector<2x32xf32> to vector<2x32xbf16>
    %cst_55 = arith.constant dense<0.000000e+00> : vector<2x128xf32>
    %278 = tpu.matmul %277, %54, %cst_55 {dimension_numbers = #tpu.dot_dimension_numbers<[1], [0], [0], [1], [0, 0, 1, 1], [], []>} : vector<2x32xbf16>, vector<32x128xbf16>, vector<2x128xf32> -> vector<2x128xf32>
    %279 = arith.addf %276, %278 : vector<2x128xf32>
    %280 = vector.extract_strided_slice %279 {offsets = [0, 0], sizes = [2, 32], strides = [1, 1]} : vector<2x128xf32> to vector<2x32xf32>
    %281 = vector.extract_strided_slice %279 {offsets = [0, 32], sizes = [2, 32], strides = [1, 1]} : vector<2x128xf32> to vector<2x32xf32>
    %282 = vector.extract_strided_slice %279 {offsets = [0, 64], sizes = [2, 32], strides = [1, 1]} : vector<2x128xf32> to vector<2x32xf32>
    %283 = vector.extract_strided_slice %279 {offsets = [0, 96], sizes = [2, 32], strides = [1, 1]} : vector<2x128xf32> to vector<2x32xf32>
    %284 = arith.addf %281, %243 : vector<2x32xf32>
    %285 = arith.maximumf %284, %280 : vector<2x32xf32>
    %286 = arith.subf %280, %285 : vector<2x32xf32>
    %287 = arith.addf %281, %243 : vector<2x32xf32>
    %288 = arith.subf %287, %285 : vector<2x32xf32>
    %cst_56 = arith.constant -2.000000e+00 : f32
    %289 = vector.broadcast %cst_56 : f32 to vector<2x32xf32>
    %290 = arith.mulf %289, %282 : vector<2x32xf32>
    %cst_57 = arith.constant 0.000000e+00 : f32
    %291 = vector.broadcast %cst_57 : f32 to vector<2x32xf32>
    %292 = arith.subf %291, %283 : vector<2x32xf32>
    %293 = tpu.concatenate %286, %288, %290, %292 in 1 : vector<2x32xf32>, vector<2x32xf32>, vector<2x32xf32>, vector<2x32xf32> -> vector<2x128xf32>
    %294 = math.exp %293 : vector<2x128xf32>
    %295 = vector.extract_strided_slice %294 {offsets = [0, 0], sizes = [2, 32], strides = [1, 1]} : vector<2x128xf32> to vector<2x32xf32>
    %296 = vector.extract_strided_slice %294 {offsets = [0, 32], sizes = [2, 32], strides = [1, 1]} : vector<2x128xf32> to vector<2x32xf32>
    %297 = vector.extract_strided_slice %294 {offsets = [0, 64], sizes = [2, 64], strides = [1, 1]} : vector<2x128xf32> to vector<2x64xf32>
    %cst_58 = arith.constant 1.000000e+00 : f32
    %298 = vector.broadcast %cst_58 : f32 to vector<2x64xf32>
    %299 = arith.addf %298, %297 : vector<2x64xf32>
    %300 = tpu.reciprocal %299 {approx = true} : vector<2x64xf32> -> vector<2x64xf32>
    %301 = vector.extract_strided_slice %300 {offsets = [0, 0], sizes = [2, 32], strides = [1, 1]} : vector<2x64xf32> to vector<2x32xf32>
    %cst_59 = arith.constant 2.000000e+00 : f32
    %302 = vector.broadcast %cst_59 : f32 to vector<2x32xf32>
    %303 = arith.mulf %302, %301 : vector<2x32xf32>
    %cst_60 = arith.constant 1.000000e+00 : f32
    %304 = vector.broadcast %cst_60 : f32 to vector<2x32xf32>
    %305 = arith.subf %303, %304 : vector<2x32xf32>
    %306 = vector.extract_strided_slice %300 {offsets = [0, 32], sizes = [2, 32], strides = [1, 1]} : vector<2x64xf32> to vector<2x32xf32>
    %307 = arith.mulf %296, %267 : vector<2x32xf32>
    %308 = arith.mulf %295, %305 : vector<2x32xf32>
    %309 = arith.addf %307, %308 : vector<2x32xf32>
    %310 = arith.mulf %296, %269 : vector<2x32xf32>
    %311 = arith.addf %310, %295 : vector<2x32xf32>
    %cst_61 = arith.constant 9.99999997E-7 : f32
    %312 = vector.broadcast %cst_61 : f32 to vector<2x32xf32>
    %313 = arith.maximumf %311, %312 : vector<2x32xf32>
    %314 = tpu.reciprocal %313 {approx = true} : vector<2x32xf32> -> vector<2x32xf32>
    %315 = arith.mulf %309, %314 : vector<2x32xf32>
    %316 = arith.mulf %306, %315 : vector<2x32xf32>
    %317 = vector.extract_strided_slice %60 {offsets = [6, 0, 0], sizes = [1, 2, 128], strides = [1, 1, 1]} : vector<8x2x128xf32> to vector<1x2x128xf32>
    %318 = vector.shape_cast %317 : vector<1x2x128xf32> to vector<2x128xf32>
    %319 = arith.truncf %316 : vector<2x32xf32> to vector<2x32xbf16>
    %cst_62 = arith.constant dense<0.000000e+00> : vector<2x128xf32>
    %320 = tpu.matmul %319, %54, %cst_62 {dimension_numbers = #tpu.dot_dimension_numbers<[1], [0], [0], [1], [0, 0, 1, 1], [], []>} : vector<2x32xbf16>, vector<32x128xbf16>, vector<2x128xf32> -> vector<2x128xf32>
    %321 = arith.addf %318, %320 : vector<2x128xf32>
    %322 = vector.extract_strided_slice %321 {offsets = [0, 0], sizes = [2, 32], strides = [1, 1]} : vector<2x128xf32> to vector<2x32xf32>
    %323 = vector.extract_strided_slice %321 {offsets = [0, 32], sizes = [2, 32], strides = [1, 1]} : vector<2x128xf32> to vector<2x32xf32>
    %324 = vector.extract_strided_slice %321 {offsets = [0, 64], sizes = [2, 32], strides = [1, 1]} : vector<2x128xf32> to vector<2x32xf32>
    %325 = vector.extract_strided_slice %321 {offsets = [0, 96], sizes = [2, 32], strides = [1, 1]} : vector<2x128xf32> to vector<2x32xf32>
    %326 = arith.addf %323, %285 : vector<2x32xf32>
    %327 = arith.maximumf %326, %322 : vector<2x32xf32>
    %328 = arith.subf %322, %327 : vector<2x32xf32>
    %329 = arith.addf %323, %285 : vector<2x32xf32>
    %330 = arith.subf %329, %327 : vector<2x32xf32>
    %cst_63 = arith.constant -2.000000e+00 : f32
    %331 = vector.broadcast %cst_63 : f32 to vector<2x32xf32>
    %332 = arith.mulf %331, %324 : vector<2x32xf32>
    %cst_64 = arith.constant 0.000000e+00 : f32
    %333 = vector.broadcast %cst_64 : f32 to vector<2x32xf32>
    %334 = arith.subf %333, %325 : vector<2x32xf32>
    %335 = tpu.concatenate %328, %330, %332, %334 in 1 : vector<2x32xf32>, vector<2x32xf32>, vector<2x32xf32>, vector<2x32xf32> -> vector<2x128xf32>
    %336 = math.exp %335 : vector<2x128xf32>
    %337 = vector.extract_strided_slice %336 {offsets = [0, 0], sizes = [2, 32], strides = [1, 1]} : vector<2x128xf32> to vector<2x32xf32>
    %338 = vector.extract_strided_slice %336 {offsets = [0, 32], sizes = [2, 32], strides = [1, 1]} : vector<2x128xf32> to vector<2x32xf32>
    %339 = vector.extract_strided_slice %336 {offsets = [0, 64], sizes = [2, 64], strides = [1, 1]} : vector<2x128xf32> to vector<2x64xf32>
    %cst_65 = arith.constant 1.000000e+00 : f32
    %340 = vector.broadcast %cst_65 : f32 to vector<2x64xf32>
    %341 = arith.addf %340, %339 : vector<2x64xf32>
    %342 = tpu.reciprocal %341 {approx = true} : vector<2x64xf32> -> vector<2x64xf32>
    %343 = vector.extract_strided_slice %342 {offsets = [0, 0], sizes = [2, 32], strides = [1, 1]} : vector<2x64xf32> to vector<2x32xf32>
    %cst_66 = arith.constant 2.000000e+00 : f32
    %344 = vector.broadcast %cst_66 : f32 to vector<2x32xf32>
    %345 = arith.mulf %344, %343 : vector<2x32xf32>
    %cst_67 = arith.constant 1.000000e+00 : f32
    %346 = vector.broadcast %cst_67 : f32 to vector<2x32xf32>
    %347 = arith.subf %345, %346 : vector<2x32xf32>
    %348 = vector.extract_strided_slice %342 {offsets = [0, 32], sizes = [2, 32], strides = [1, 1]} : vector<2x64xf32> to vector<2x32xf32>
    %349 = arith.mulf %338, %309 : vector<2x32xf32>
    %350 = arith.mulf %337, %347 : vector<2x32xf32>
    %351 = arith.addf %349, %350 : vector<2x32xf32>
    %352 = arith.mulf %338, %311 : vector<2x32xf32>
    %353 = arith.addf %352, %337 : vector<2x32xf32>
    %cst_68 = arith.constant 9.99999997E-7 : f32
    %354 = vector.broadcast %cst_68 : f32 to vector<2x32xf32>
    %355 = arith.maximumf %353, %354 : vector<2x32xf32>
    %356 = tpu.reciprocal %355 {approx = true} : vector<2x32xf32> -> vector<2x32xf32>
    %357 = arith.mulf %351, %356 : vector<2x32xf32>
    %358 = arith.mulf %348, %357 : vector<2x32xf32>
    %359 = vector.extract_strided_slice %60 {offsets = [7, 0, 0], sizes = [1, 2, 128], strides = [1, 1, 1]} : vector<8x2x128xf32> to vector<1x2x128xf32>
    %360 = vector.shape_cast %359 : vector<1x2x128xf32> to vector<2x128xf32>
    %361 = arith.truncf %358 : vector<2x32xf32> to vector<2x32xbf16>
    %cst_69 = arith.constant dense<0.000000e+00> : vector<2x128xf32>
    %362 = tpu.matmul %361, %54, %cst_69 {dimension_numbers = #tpu.dot_dimension_numbers<[1], [0], [0], [1], [0, 0, 1, 1], [], []>} : vector<2x32xbf16>, vector<32x128xbf16>, vector<2x128xf32> -> vector<2x128xf32>
    %363 = arith.addf %360, %362 : vector<2x128xf32>
    %364 = vector.extract_strided_slice %363 {offsets = [0, 0], sizes = [2, 32], strides = [1, 1]} : vector<2x128xf32> to vector<2x32xf32>
    %365 = vector.extract_strided_slice %363 {offsets = [0, 32], sizes = [2, 32], strides = [1, 1]} : vector<2x128xf32> to vector<2x32xf32>
    %366 = vector.extract_strided_slice %363 {offsets = [0, 64], sizes = [2, 32], strides = [1, 1]} : vector<2x128xf32> to vector<2x32xf32>
    %367 = vector.extract_strided_slice %363 {offsets = [0, 96], sizes = [2, 32], strides = [1, 1]} : vector<2x128xf32> to vector<2x32xf32>
    %368 = arith.addf %365, %327 : vector<2x32xf32>
    %369 = arith.maximumf %368, %364 : vector<2x32xf32>
    %370 = arith.subf %364, %369 : vector<2x32xf32>
    %371 = arith.addf %365, %327 : vector<2x32xf32>
    %372 = arith.subf %371, %369 : vector<2x32xf32>
    %cst_70 = arith.constant -2.000000e+00 : f32
    %373 = vector.broadcast %cst_70 : f32 to vector<2x32xf32>
    %374 = arith.mulf %373, %366 : vector<2x32xf32>
    %cst_71 = arith.constant 0.000000e+00 : f32
    %375 = vector.broadcast %cst_71 : f32 to vector<2x32xf32>
    %376 = arith.subf %375, %367 : vector<2x32xf32>
    %377 = tpu.concatenate %370, %372, %374, %376 in 1 : vector<2x32xf32>, vector<2x32xf32>, vector<2x32xf32>, vector<2x32xf32> -> vector<2x128xf32>
    %378 = math.exp %377 : vector<2x128xf32>
    %379 = vector.extract_strided_slice %378 {offsets = [0, 0], sizes = [2, 32], strides = [1, 1]} : vector<2x128xf32> to vector<2x32xf32>
    %380 = vector.extract_strided_slice %378 {offsets = [0, 32], sizes = [2, 32], strides = [1, 1]} : vector<2x128xf32> to vector<2x32xf32>
    %381 = vector.extract_strided_slice %378 {offsets = [0, 64], sizes = [2, 64], strides = [1, 1]} : vector<2x128xf32> to vector<2x64xf32>
    %cst_72 = arith.constant 1.000000e+00 : f32
    %382 = vector.broadcast %cst_72 : f32 to vector<2x64xf32>
    %383 = arith.addf %382, %381 : vector<2x64xf32>
    %384 = tpu.reciprocal %383 {approx = true} : vector<2x64xf32> -> vector<2x64xf32>
    %385 = vector.extract_strided_slice %384 {offsets = [0, 0], sizes = [2, 32], strides = [1, 1]} : vector<2x64xf32> to vector<2x32xf32>
    %cst_73 = arith.constant 2.000000e+00 : f32
    %386 = vector.broadcast %cst_73 : f32 to vector<2x32xf32>
    %387 = arith.mulf %386, %385 : vector<2x32xf32>
    %cst_74 = arith.constant 1.000000e+00 : f32
    %388 = vector.broadcast %cst_74 : f32 to vector<2x32xf32>
    %389 = arith.subf %387, %388 : vector<2x32xf32>
    %390 = vector.extract_strided_slice %384 {offsets = [0, 32], sizes = [2, 32], strides = [1, 1]} : vector<2x64xf32> to vector<2x32xf32>
    %391 = arith.mulf %380, %351 : vector<2x32xf32>
    %392 = arith.mulf %379, %389 : vector<2x32xf32>
    %393 = arith.addf %391, %392 : vector<2x32xf32>
    %394 = arith.mulf %380, %353 : vector<2x32xf32>
    %395 = arith.addf %394, %379 : vector<2x32xf32>
    %cst_75 = arith.constant 9.99999997E-7 : f32
    %396 = vector.broadcast %cst_75 : f32 to vector<2x32xf32>
    %397 = arith.maximumf %395, %396 : vector<2x32xf32>
    %398 = tpu.reciprocal %397 {approx = true} : vector<2x32xf32> -> vector<2x32xf32>
    %399 = arith.mulf %393, %398 : vector<2x32xf32>
    %400 = arith.mulf %390, %399 : vector<2x32xf32>
    %401 = vector.shape_cast %106 : vector<2x32xf32> to vector<1x2x32xf32>
    %402 = vector.shape_cast %148 : vector<2x32xf32> to vector<1x2x32xf32>
    %403 = vector.shape_cast %190 : vector<2x32xf32> to vector<1x2x32xf32>
    %404 = vector.shape_cast %232 : vector<2x32xf32> to vector<1x2x32xf32>
    %405 = vector.shape_cast %274 : vector<2x32xf32> to vector<1x2x32xf32>
    %406 = vector.shape_cast %316 : vector<2x32xf32> to vector<1x2x32xf32>
    %407 = vector.shape_cast %358 : vector<2x32xf32> to vector<1x2x32xf32>
    %408 = vector.shape_cast %400 : vector<2x32xf32> to vector<1x2x32xf32>
    %409 = tpu.concatenate %401, %402, %403, %404, %405, %406, %407, %408 in 0 : vector<1x2x32xf32>, vector<1x2x32xf32>, vector<1x2x32xf32>, vector<1x2x32xf32>, vector<1x2x32xf32>, vector<1x2x32xf32>, vector<1x2x32xf32>, vector<1x2x32xf32> -> vector<8x2x32xf32>
    %410 = arith.addf %23, %409 : vector<8x2x32xf32>
    %411 = vector.extract_strided_slice %0 {offsets = [7, 0], sizes = [1, 32], strides = [1, 1]} : vector<12x128xf32> to vector<1x32xf32>
    %412 = vector.extract_strided_slice %0 {offsets = [9, 0], sizes = [1, 32], strides = [1, 1]} : vector<12x128xf32> to vector<1x32xf32>
    %413 = vector.extract_strided_slice %0 {offsets = [11, 0], sizes = [1, 128], strides = [1, 1]} : vector<12x128xf32> to vector<1x128xf32>
    %cst_76 = arith.constant dense<0.000000e+00> : vector<8x2xf32>
    %414 = vector.multi_reduction <add>, %410, %cst_76 [2] : vector<8x2x32xf32> to vector<8x2xf32>
    %415 = vector.shape_cast %414 : vector<8x2xf32> to vector<8x2x1xf32>
    %cst_77 = arith.constant 3.200000e+01 : f32
    %416 = vector.broadcast %cst_77 : f32 to vector<8x2x1xf32>
    %417 = arith.divf %415, %416 : vector<8x2x1xf32>
    %418 = vector.broadcast %417 : vector<8x2x1xf32> to vector<8x2x32xf32>
    %419 = arith.subf %410, %418 : vector<8x2x32xf32>
    %420 = arith.mulf %419, %419 : vector<8x2x32xf32>
    %cst_78 = arith.constant dense<0.000000e+00> : vector<8x2xf32>
    %421 = vector.multi_reduction <add>, %420, %cst_78 [2] : vector<8x2x32xf32> to vector<8x2xf32>
    %422 = vector.shape_cast %421 : vector<8x2xf32> to vector<8x2x1xf32>
    %cst_79 = arith.constant 3.200000e+01 : f32
    %423 = vector.broadcast %cst_79 : f32 to vector<8x2x1xf32>
    %424 = arith.divf %422, %423 : vector<8x2x1xf32>
    %425 = vector.broadcast %417 : vector<8x2x1xf32> to vector<8x2x32xf32>
    %426 = arith.subf %410, %425 : vector<8x2x32xf32>
    %cst_80 = arith.constant 9.99999974E-6 : f32
    %427 = vector.broadcast %cst_80 : f32 to vector<8x2x1xf32>
    %428 = arith.addf %424, %427 : vector<8x2x1xf32>
    %429 = math.rsqrt %428 : vector<8x2x1xf32>
    %430 = vector.broadcast %429 : vector<8x2x1xf32> to vector<8x2x32xf32>
    %431 = arith.mulf %426, %430 : vector<8x2x32xf32>
    %432 = vector.shape_cast %411 : vector<1x32xf32> to vector<1x1x32xf32>
    %433 = vector.broadcast %432 : vector<1x1x32xf32> to vector<8x2x32xf32>
    %434 = arith.mulf %431, %433 : vector<8x2x32xf32>
    %435 = vector.shape_cast %412 : vector<1x32xf32> to vector<1x1x32xf32>
    %436 = vector.broadcast %435 : vector<1x1x32xf32> to vector<8x2x32xf32>
    %437 = arith.addf %434, %436 : vector<8x2x32xf32>
    %c1 = arith.constant 1 : index
    %c0_81 = arith.constant 0 : index
    %c0_82 = arith.constant 0 : index
    %438 = vector.load %arg3[%c1, %c0_81, %c0_82] : memref<2x32x128xbf16, #tpu.memory_space<vmem>>, vector<1x32x128xbf16>
    %439 = vector.shape_cast %438 : vector<1x32x128xbf16> to vector<32x128xbf16>
    %c1_83 = arith.constant 1 : index
    %c0_84 = arith.constant 0 : index
    %c0_85 = arith.constant 0 : index
    %440 = vector.load %arg4[%c1_83, %c0_84, %c0_85] : memref<2x32x128xbf16, #tpu.memory_space<vmem>>, vector<1x32x128xbf16>
    %441 = vector.shape_cast %440 : vector<1x32x128xbf16> to vector<32x128xbf16>
    %442 = vector.shape_cast %437 : vector<8x2x32xf32> to vector<16x32xf32>
    %443 = arith.truncf %442 : vector<16x32xf32> to vector<16x32xbf16>
    %cst_86 = arith.constant dense<0.000000e+00> : vector<16x128xf32>
    %444 = tpu.matmul %443, %439, %cst_86 {dimension_numbers = #tpu.dot_dimension_numbers<[1], [0], [0], [1], [0, 0, 1, 1], [], []>} : vector<16x32xbf16>, vector<32x128xbf16>, vector<16x128xf32> -> vector<16x128xf32>
    %445 = vector.broadcast %413 : vector<1x128xf32> to vector<16x128xf32>
    %446 = arith.addf %444, %445 : vector<16x128xf32>
    %447 = vector.shape_cast %446 : vector<16x128xf32> to vector<8x2x128xf32>
    %cst_87 = arith.constant 0.000000e+00 : f32
    %448 = vector.broadcast %cst_87 : f32 to vector<2x32xf32>
    %cst_88 = arith.constant 0.000000e+00 : f32
    %449 = vector.broadcast %cst_88 : f32 to vector<2x32xf32>
    %cst_89 = arith.constant 0.000000e+00 : f32
    %450 = vector.broadcast %cst_89 : f32 to vector<2x32xf32>
    %cst_90 = arith.constant 0.000000e+00 : f32
    %451 = vector.broadcast %cst_90 : f32 to vector<2x32xf32>
    %452 = vector.extract_strided_slice %447 {offsets = [0, 0, 0], sizes = [1, 2, 128], strides = [1, 1, 1]} : vector<8x2x128xf32> to vector<1x2x128xf32>
    %453 = vector.shape_cast %452 : vector<1x2x128xf32> to vector<2x128xf32>
    %454 = arith.truncf %448 : vector<2x32xf32> to vector<2x32xbf16>
    %cst_91 = arith.constant dense<0.000000e+00> : vector<2x128xf32>
    %455 = tpu.matmul %454, %441, %cst_91 {dimension_numbers = #tpu.dot_dimension_numbers<[1], [0], [0], [1], [0, 0, 1, 1], [], []>} : vector<2x32xbf16>, vector<32x128xbf16>, vector<2x128xf32> -> vector<2x128xf32>
    %456 = arith.addf %453, %455 : vector<2x128xf32>
    %457 = vector.extract_strided_slice %456 {offsets = [0, 0], sizes = [2, 32], strides = [1, 1]} : vector<2x128xf32> to vector<2x32xf32>
    %458 = vector.extract_strided_slice %456 {offsets = [0, 32], sizes = [2, 32], strides = [1, 1]} : vector<2x128xf32> to vector<2x32xf32>
    %459 = vector.extract_strided_slice %456 {offsets = [0, 64], sizes = [2, 32], strides = [1, 1]} : vector<2x128xf32> to vector<2x32xf32>
    %460 = vector.extract_strided_slice %456 {offsets = [0, 96], sizes = [2, 32], strides = [1, 1]} : vector<2x128xf32> to vector<2x32xf32>
    %461 = arith.addf %458, %451 : vector<2x32xf32>
    %462 = arith.maximumf %461, %457 : vector<2x32xf32>
    %463 = arith.subf %457, %462 : vector<2x32xf32>
    %464 = arith.addf %458, %451 : vector<2x32xf32>
    %465 = arith.subf %464, %462 : vector<2x32xf32>
    %cst_92 = arith.constant -2.000000e+00 : f32
    %466 = vector.broadcast %cst_92 : f32 to vector<2x32xf32>
    %467 = arith.mulf %466, %459 : vector<2x32xf32>
    %cst_93 = arith.constant 0.000000e+00 : f32
    %468 = vector.broadcast %cst_93 : f32 to vector<2x32xf32>
    %469 = arith.subf %468, %460 : vector<2x32xf32>
    %470 = tpu.concatenate %463, %465, %467, %469 in 1 : vector<2x32xf32>, vector<2x32xf32>, vector<2x32xf32>, vector<2x32xf32> -> vector<2x128xf32>
    %471 = math.exp %470 : vector<2x128xf32>
    %472 = vector.extract_strided_slice %471 {offsets = [0, 0], sizes = [2, 32], strides = [1, 1]} : vector<2x128xf32> to vector<2x32xf32>
    %473 = vector.extract_strided_slice %471 {offsets = [0, 32], sizes = [2, 32], strides = [1, 1]} : vector<2x128xf32> to vector<2x32xf32>
    %474 = vector.extract_strided_slice %471 {offsets = [0, 64], sizes = [2, 64], strides = [1, 1]} : vector<2x128xf32> to vector<2x64xf32>
    %cst_94 = arith.constant 1.000000e+00 : f32
    %475 = vector.broadcast %cst_94 : f32 to vector<2x64xf32>
    %476 = arith.addf %475, %474 : vector<2x64xf32>
    %477 = tpu.reciprocal %476 {approx = true} : vector<2x64xf32> -> vector<2x64xf32>
    %478 = vector.extract_strided_slice %477 {offsets = [0, 0], sizes = [2, 32], strides = [1, 1]} : vector<2x64xf32> to vector<2x32xf32>
    %cst_95 = arith.constant 2.000000e+00 : f32
    %479 = vector.broadcast %cst_95 : f32 to vector<2x32xf32>
    %480 = arith.mulf %479, %478 : vector<2x32xf32>
    %cst_96 = arith.constant 1.000000e+00 : f32
    %481 = vector.broadcast %cst_96 : f32 to vector<2x32xf32>
    %482 = arith.subf %480, %481 : vector<2x32xf32>
    %483 = vector.extract_strided_slice %477 {offsets = [0, 32], sizes = [2, 32], strides = [1, 1]} : vector<2x64xf32> to vector<2x32xf32>
    %484 = arith.mulf %473, %449 : vector<2x32xf32>
    %485 = arith.mulf %472, %482 : vector<2x32xf32>
    %486 = arith.addf %484, %485 : vector<2x32xf32>
    %487 = arith.mulf %473, %450 : vector<2x32xf32>
    %488 = arith.addf %487, %472 : vector<2x32xf32>
    %cst_97 = arith.constant 9.99999997E-7 : f32
    %489 = vector.broadcast %cst_97 : f32 to vector<2x32xf32>
    %490 = arith.maximumf %488, %489 : vector<2x32xf32>
    %491 = tpu.reciprocal %490 {approx = true} : vector<2x32xf32> -> vector<2x32xf32>
    %492 = arith.mulf %486, %491 : vector<2x32xf32>
    %493 = arith.mulf %483, %492 : vector<2x32xf32>
    %494 = vector.extract_strided_slice %447 {offsets = [1, 0, 0], sizes = [1, 2, 128], strides = [1, 1, 1]} : vector<8x2x128xf32> to vector<1x2x128xf32>
    %495 = vector.shape_cast %494 : vector<1x2x128xf32> to vector<2x128xf32>
    %496 = arith.truncf %493 : vector<2x32xf32> to vector<2x32xbf16>
    %cst_98 = arith.constant dense<0.000000e+00> : vector<2x128xf32>
    %497 = tpu.matmul %496, %441, %cst_98 {dimension_numbers = #tpu.dot_dimension_numbers<[1], [0], [0], [1], [0, 0, 1, 1], [], []>} : vector<2x32xbf16>, vector<32x128xbf16>, vector<2x128xf32> -> vector<2x128xf32>
    %498 = arith.addf %495, %497 : vector<2x128xf32>
    %499 = vector.extract_strided_slice %498 {offsets = [0, 0], sizes = [2, 32], strides = [1, 1]} : vector<2x128xf32> to vector<2x32xf32>
    %500 = vector.extract_strided_slice %498 {offsets = [0, 32], sizes = [2, 32], strides = [1, 1]} : vector<2x128xf32> to vector<2x32xf32>
    %501 = vector.extract_strided_slice %498 {offsets = [0, 64], sizes = [2, 32], strides = [1, 1]} : vector<2x128xf32> to vector<2x32xf32>
    %502 = vector.extract_strided_slice %498 {offsets = [0, 96], sizes = [2, 32], strides = [1, 1]} : vector<2x128xf32> to vector<2x32xf32>
    %503 = arith.addf %500, %462 : vector<2x32xf32>
    %504 = arith.maximumf %503, %499 : vector<2x32xf32>
    %505 = arith.subf %499, %504 : vector<2x32xf32>
    %506 = arith.addf %500, %462 : vector<2x32xf32>
    %507 = arith.subf %506, %504 : vector<2x32xf32>
    %cst_99 = arith.constant -2.000000e+00 : f32
    %508 = vector.broadcast %cst_99 : f32 to vector<2x32xf32>
    %509 = arith.mulf %508, %501 : vector<2x32xf32>
    %cst_100 = arith.constant 0.000000e+00 : f32
    %510 = vector.broadcast %cst_100 : f32 to vector<2x32xf32>
    %511 = arith.subf %510, %502 : vector<2x32xf32>
    %512 = tpu.concatenate %505, %507, %509, %511 in 1 : vector<2x32xf32>, vector<2x32xf32>, vector<2x32xf32>, vector<2x32xf32> -> vector<2x128xf32>
    %513 = math.exp %512 : vector<2x128xf32>
    %514 = vector.extract_strided_slice %513 {offsets = [0, 0], sizes = [2, 32], strides = [1, 1]} : vector<2x128xf32> to vector<2x32xf32>
    %515 = vector.extract_strided_slice %513 {offsets = [0, 32], sizes = [2, 32], strides = [1, 1]} : vector<2x128xf32> to vector<2x32xf32>
    %516 = vector.extract_strided_slice %513 {offsets = [0, 64], sizes = [2, 64], strides = [1, 1]} : vector<2x128xf32> to vector<2x64xf32>
    %cst_101 = arith.constant 1.000000e+00 : f32
    %517 = vector.broadcast %cst_101 : f32 to vector<2x64xf32>
    %518 = arith.addf %517, %516 : vector<2x64xf32>
    %519 = tpu.reciprocal %518 {approx = true} : vector<2x64xf32> -> vector<2x64xf32>
    %520 = vector.extract_strided_slice %519 {offsets = [0, 0], sizes = [2, 32], strides = [1, 1]} : vector<2x64xf32> to vector<2x32xf32>
    %cst_102 = arith.constant 2.000000e+00 : f32
    %521 = vector.broadcast %cst_102 : f32 to vector<2x32xf32>
    %522 = arith.mulf %521, %520 : vector<2x32xf32>
    %cst_103 = arith.constant 1.000000e+00 : f32
    %523 = vector.broadcast %cst_103 : f32 to vector<2x32xf32>
    %524 = arith.subf %522, %523 : vector<2x32xf32>
    %525 = vector.extract_strided_slice %519 {offsets = [0, 32], sizes = [2, 32], strides = [1, 1]} : vector<2x64xf32> to vector<2x32xf32>
    %526 = arith.mulf %515, %486 : vector<2x32xf32>
    %527 = arith.mulf %514, %524 : vector<2x32xf32>
    %528 = arith.addf %526, %527 : vector<2x32xf32>
    %529 = arith.mulf %515, %488 : vector<2x32xf32>
    %530 = arith.addf %529, %514 : vector<2x32xf32>
    %cst_104 = arith.constant 9.99999997E-7 : f32
    %531 = vector.broadcast %cst_104 : f32 to vector<2x32xf32>
    %532 = arith.maximumf %530, %531 : vector<2x32xf32>
    %533 = tpu.reciprocal %532 {approx = true} : vector<2x32xf32> -> vector<2x32xf32>
    %534 = arith.mulf %528, %533 : vector<2x32xf32>
    %535 = arith.mulf %525, %534 : vector<2x32xf32>
    %536 = vector.extract_strided_slice %447 {offsets = [2, 0, 0], sizes = [1, 2, 128], strides = [1, 1, 1]} : vector<8x2x128xf32> to vector<1x2x128xf32>
    %537 = vector.shape_cast %536 : vector<1x2x128xf32> to vector<2x128xf32>
    %538 = arith.truncf %535 : vector<2x32xf32> to vector<2x32xbf16>
    %cst_105 = arith.constant dense<0.000000e+00> : vector<2x128xf32>
    %539 = tpu.matmul %538, %441, %cst_105 {dimension_numbers = #tpu.dot_dimension_numbers<[1], [0], [0], [1], [0, 0, 1, 1], [], []>} : vector<2x32xbf16>, vector<32x128xbf16>, vector<2x128xf32> -> vector<2x128xf32>
    %540 = arith.addf %537, %539 : vector<2x128xf32>
    %541 = vector.extract_strided_slice %540 {offsets = [0, 0], sizes = [2, 32], strides = [1, 1]} : vector<2x128xf32> to vector<2x32xf32>
    %542 = vector.extract_strided_slice %540 {offsets = [0, 32], sizes = [2, 32], strides = [1, 1]} : vector<2x128xf32> to vector<2x32xf32>
    %543 = vector.extract_strided_slice %540 {offsets = [0, 64], sizes = [2, 32], strides = [1, 1]} : vector<2x128xf32> to vector<2x32xf32>
    %544 = vector.extract_strided_slice %540 {offsets = [0, 96], sizes = [2, 32], strides = [1, 1]} : vector<2x128xf32> to vector<2x32xf32>
    %545 = arith.addf %542, %504 : vector<2x32xf32>
    %546 = arith.maximumf %545, %541 : vector<2x32xf32>
    %547 = arith.subf %541, %546 : vector<2x32xf32>
    %548 = arith.addf %542, %504 : vector<2x32xf32>
    %549 = arith.subf %548, %546 : vector<2x32xf32>
    %cst_106 = arith.constant -2.000000e+00 : f32
    %550 = vector.broadcast %cst_106 : f32 to vector<2x32xf32>
    %551 = arith.mulf %550, %543 : vector<2x32xf32>
    %cst_107 = arith.constant 0.000000e+00 : f32
    %552 = vector.broadcast %cst_107 : f32 to vector<2x32xf32>
    %553 = arith.subf %552, %544 : vector<2x32xf32>
    %554 = tpu.concatenate %547, %549, %551, %553 in 1 : vector<2x32xf32>, vector<2x32xf32>, vector<2x32xf32>, vector<2x32xf32> -> vector<2x128xf32>
    %555 = math.exp %554 : vector<2x128xf32>
    %556 = vector.extract_strided_slice %555 {offsets = [0, 0], sizes = [2, 32], strides = [1, 1]} : vector<2x128xf32> to vector<2x32xf32>
    %557 = vector.extract_strided_slice %555 {offsets = [0, 32], sizes = [2, 32], strides = [1, 1]} : vector<2x128xf32> to vector<2x32xf32>
    %558 = vector.extract_strided_slice %555 {offsets = [0, 64], sizes = [2, 64], strides = [1, 1]} : vector<2x128xf32> to vector<2x64xf32>
    %cst_108 = arith.constant 1.000000e+00 : f32
    %559 = vector.broadcast %cst_108 : f32 to vector<2x64xf32>
    %560 = arith.addf %559, %558 : vector<2x64xf32>
    %561 = tpu.reciprocal %560 {approx = true} : vector<2x64xf32> -> vector<2x64xf32>
    %562 = vector.extract_strided_slice %561 {offsets = [0, 0], sizes = [2, 32], strides = [1, 1]} : vector<2x64xf32> to vector<2x32xf32>
    %cst_109 = arith.constant 2.000000e+00 : f32
    %563 = vector.broadcast %cst_109 : f32 to vector<2x32xf32>
    %564 = arith.mulf %563, %562 : vector<2x32xf32>
    %cst_110 = arith.constant 1.000000e+00 : f32
    %565 = vector.broadcast %cst_110 : f32 to vector<2x32xf32>
    %566 = arith.subf %564, %565 : vector<2x32xf32>
    %567 = vector.extract_strided_slice %561 {offsets = [0, 32], sizes = [2, 32], strides = [1, 1]} : vector<2x64xf32> to vector<2x32xf32>
    %568 = arith.mulf %557, %528 : vector<2x32xf32>
    %569 = arith.mulf %556, %566 : vector<2x32xf32>
    %570 = arith.addf %568, %569 : vector<2x32xf32>
    %571 = arith.mulf %557, %530 : vector<2x32xf32>
    %572 = arith.addf %571, %556 : vector<2x32xf32>
    %cst_111 = arith.constant 9.99999997E-7 : f32
    %573 = vector.broadcast %cst_111 : f32 to vector<2x32xf32>
    %574 = arith.maximumf %572, %573 : vector<2x32xf32>
    %575 = tpu.reciprocal %574 {approx = true} : vector<2x32xf32> -> vector<2x32xf32>
    %576 = arith.mulf %570, %575 : vector<2x32xf32>
    %577 = arith.mulf %567, %576 : vector<2x32xf32>
    %578 = vector.extract_strided_slice %447 {offsets = [3, 0, 0], sizes = [1, 2, 128], strides = [1, 1, 1]} : vector<8x2x128xf32> to vector<1x2x128xf32>
    %579 = vector.shape_cast %578 : vector<1x2x128xf32> to vector<2x128xf32>
    %580 = arith.truncf %577 : vector<2x32xf32> to vector<2x32xbf16>
    %cst_112 = arith.constant dense<0.000000e+00> : vector<2x128xf32>
    %581 = tpu.matmul %580, %441, %cst_112 {dimension_numbers = #tpu.dot_dimension_numbers<[1], [0], [0], [1], [0, 0, 1, 1], [], []>} : vector<2x32xbf16>, vector<32x128xbf16>, vector<2x128xf32> -> vector<2x128xf32>
    %582 = arith.addf %579, %581 : vector<2x128xf32>
    %583 = vector.extract_strided_slice %582 {offsets = [0, 0], sizes = [2, 32], strides = [1, 1]} : vector<2x128xf32> to vector<2x32xf32>
    %584 = vector.extract_strided_slice %582 {offsets = [0, 32], sizes = [2, 32], strides = [1, 1]} : vector<2x128xf32> to vector<2x32xf32>
    %585 = vector.extract_strided_slice %582 {offsets = [0, 64], sizes = [2, 32], strides = [1, 1]} : vector<2x128xf32> to vector<2x32xf32>
    %586 = vector.extract_strided_slice %582 {offsets = [0, 96], sizes = [2, 32], strides = [1, 1]} : vector<2x128xf32> to vector<2x32xf32>
    %587 = arith.addf %584, %546 : vector<2x32xf32>
    %588 = arith.maximumf %587, %583 : vector<2x32xf32>
    %589 = arith.subf %583, %588 : vector<2x32xf32>
    %590 = arith.addf %584, %546 : vector<2x32xf32>
    %591 = arith.subf %590, %588 : vector<2x32xf32>
    %cst_113 = arith.constant -2.000000e+00 : f32
    %592 = vector.broadcast %cst_113 : f32 to vector<2x32xf32>
    %593 = arith.mulf %592, %585 : vector<2x32xf32>
    %cst_114 = arith.constant 0.000000e+00 : f32
    %594 = vector.broadcast %cst_114 : f32 to vector<2x32xf32>
    %595 = arith.subf %594, %586 : vector<2x32xf32>
    %596 = tpu.concatenate %589, %591, %593, %595 in 1 : vector<2x32xf32>, vector<2x32xf32>, vector<2x32xf32>, vector<2x32xf32> -> vector<2x128xf32>
    %597 = math.exp %596 : vector<2x128xf32>
    %598 = vector.extract_strided_slice %597 {offsets = [0, 0], sizes = [2, 32], strides = [1, 1]} : vector<2x128xf32> to vector<2x32xf32>
    %599 = vector.extract_strided_slice %597 {offsets = [0, 32], sizes = [2, 32], strides = [1, 1]} : vector<2x128xf32> to vector<2x32xf32>
    %600 = vector.extract_strided_slice %597 {offsets = [0, 64], sizes = [2, 64], strides = [1, 1]} : vector<2x128xf32> to vector<2x64xf32>
    %cst_115 = arith.constant 1.000000e+00 : f32
    %601 = vector.broadcast %cst_115 : f32 to vector<2x64xf32>
    %602 = arith.addf %601, %600 : vector<2x64xf32>
    %603 = tpu.reciprocal %602 {approx = true} : vector<2x64xf32> -> vector<2x64xf32>
    %604 = vector.extract_strided_slice %603 {offsets = [0, 0], sizes = [2, 32], strides = [1, 1]} : vector<2x64xf32> to vector<2x32xf32>
    %cst_116 = arith.constant 2.000000e+00 : f32
    %605 = vector.broadcast %cst_116 : f32 to vector<2x32xf32>
    %606 = arith.mulf %605, %604 : vector<2x32xf32>
    %cst_117 = arith.constant 1.000000e+00 : f32
    %607 = vector.broadcast %cst_117 : f32 to vector<2x32xf32>
    %608 = arith.subf %606, %607 : vector<2x32xf32>
    %609 = vector.extract_strided_slice %603 {offsets = [0, 32], sizes = [2, 32], strides = [1, 1]} : vector<2x64xf32> to vector<2x32xf32>
    %610 = arith.mulf %599, %570 : vector<2x32xf32>
    %611 = arith.mulf %598, %608 : vector<2x32xf32>
    %612 = arith.addf %610, %611 : vector<2x32xf32>
    %613 = arith.mulf %599, %572 : vector<2x32xf32>
    %614 = arith.addf %613, %598 : vector<2x32xf32>
    %cst_118 = arith.constant 9.99999997E-7 : f32
    %615 = vector.broadcast %cst_118 : f32 to vector<2x32xf32>
    %616 = arith.maximumf %614, %615 : vector<2x32xf32>
    %617 = tpu.reciprocal %616 {approx = true} : vector<2x32xf32> -> vector<2x32xf32>
    %618 = arith.mulf %612, %617 : vector<2x32xf32>
    %619 = arith.mulf %609, %618 : vector<2x32xf32>
    %620 = vector.extract_strided_slice %447 {offsets = [4, 0, 0], sizes = [1, 2, 128], strides = [1, 1, 1]} : vector<8x2x128xf32> to vector<1x2x128xf32>
    %621 = vector.shape_cast %620 : vector<1x2x128xf32> to vector<2x128xf32>
    %622 = arith.truncf %619 : vector<2x32xf32> to vector<2x32xbf16>
    %cst_119 = arith.constant dense<0.000000e+00> : vector<2x128xf32>
    %623 = tpu.matmul %622, %441, %cst_119 {dimension_numbers = #tpu.dot_dimension_numbers<[1], [0], [0], [1], [0, 0, 1, 1], [], []>} : vector<2x32xbf16>, vector<32x128xbf16>, vector<2x128xf32> -> vector<2x128xf32>
    %624 = arith.addf %621, %623 : vector<2x128xf32>
    %625 = vector.extract_strided_slice %624 {offsets = [0, 0], sizes = [2, 32], strides = [1, 1]} : vector<2x128xf32> to vector<2x32xf32>
    %626 = vector.extract_strided_slice %624 {offsets = [0, 32], sizes = [2, 32], strides = [1, 1]} : vector<2x128xf32> to vector<2x32xf32>
    %627 = vector.extract_strided_slice %624 {offsets = [0, 64], sizes = [2, 32], strides = [1, 1]} : vector<2x128xf32> to vector<2x32xf32>
    %628 = vector.extract_strided_slice %624 {offsets = [0, 96], sizes = [2, 32], strides = [1, 1]} : vector<2x128xf32> to vector<2x32xf32>
    %629 = arith.addf %626, %588 : vector<2x32xf32>
    %630 = arith.maximumf %629, %625 : vector<2x32xf32>
    %631 = arith.subf %625, %630 : vector<2x32xf32>
    %632 = arith.addf %626, %588 : vector<2x32xf32>
    %633 = arith.subf %632, %630 : vector<2x32xf32>
    %cst_120 = arith.constant -2.000000e+00 : f32
    %634 = vector.broadcast %cst_120 : f32 to vector<2x32xf32>
    %635 = arith.mulf %634, %627 : vector<2x32xf32>
    %cst_121 = arith.constant 0.000000e+00 : f32
    %636 = vector.broadcast %cst_121 : f32 to vector<2x32xf32>
    %637 = arith.subf %636, %628 : vector<2x32xf32>
    %638 = tpu.concatenate %631, %633, %635, %637 in 1 : vector<2x32xf32>, vector<2x32xf32>, vector<2x32xf32>, vector<2x32xf32> -> vector<2x128xf32>
    %639 = math.exp %638 : vector<2x128xf32>
    %640 = vector.extract_strided_slice %639 {offsets = [0, 0], sizes = [2, 32], strides = [1, 1]} : vector<2x128xf32> to vector<2x32xf32>
    %641 = vector.extract_strided_slice %639 {offsets = [0, 32], sizes = [2, 32], strides = [1, 1]} : vector<2x128xf32> to vector<2x32xf32>
    %642 = vector.extract_strided_slice %639 {offsets = [0, 64], sizes = [2, 64], strides = [1, 1]} : vector<2x128xf32> to vector<2x64xf32>
    %cst_122 = arith.constant 1.000000e+00 : f32
    %643 = vector.broadcast %cst_122 : f32 to vector<2x64xf32>
    %644 = arith.addf %643, %642 : vector<2x64xf32>
    %645 = tpu.reciprocal %644 {approx = true} : vector<2x64xf32> -> vector<2x64xf32>
    %646 = vector.extract_strided_slice %645 {offsets = [0, 0], sizes = [2, 32], strides = [1, 1]} : vector<2x64xf32> to vector<2x32xf32>
    %cst_123 = arith.constant 2.000000e+00 : f32
    %647 = vector.broadcast %cst_123 : f32 to vector<2x32xf32>
    %648 = arith.mulf %647, %646 : vector<2x32xf32>
    %cst_124 = arith.constant 1.000000e+00 : f32
    %649 = vector.broadcast %cst_124 : f32 to vector<2x32xf32>
    %650 = arith.subf %648, %649 : vector<2x32xf32>
    %651 = vector.extract_strided_slice %645 {offsets = [0, 32], sizes = [2, 32], strides = [1, 1]} : vector<2x64xf32> to vector<2x32xf32>
    %652 = arith.mulf %641, %612 : vector<2x32xf32>
    %653 = arith.mulf %640, %650 : vector<2x32xf32>
    %654 = arith.addf %652, %653 : vector<2x32xf32>
    %655 = arith.mulf %641, %614 : vector<2x32xf32>
    %656 = arith.addf %655, %640 : vector<2x32xf32>
    %cst_125 = arith.constant 9.99999997E-7 : f32
    %657 = vector.broadcast %cst_125 : f32 to vector<2x32xf32>
    %658 = arith.maximumf %656, %657 : vector<2x32xf32>
    %659 = tpu.reciprocal %658 {approx = true} : vector<2x32xf32> -> vector<2x32xf32>
    %660 = arith.mulf %654, %659 : vector<2x32xf32>
    %661 = arith.mulf %651, %660 : vector<2x32xf32>
    %662 = vector.extract_strided_slice %447 {offsets = [5, 0, 0], sizes = [1, 2, 128], strides = [1, 1, 1]} : vector<8x2x128xf32> to vector<1x2x128xf32>
    %663 = vector.shape_cast %662 : vector<1x2x128xf32> to vector<2x128xf32>
    %664 = arith.truncf %661 : vector<2x32xf32> to vector<2x32xbf16>
    %cst_126 = arith.constant dense<0.000000e+00> : vector<2x128xf32>
    %665 = tpu.matmul %664, %441, %cst_126 {dimension_numbers = #tpu.dot_dimension_numbers<[1], [0], [0], [1], [0, 0, 1, 1], [], []>} : vector<2x32xbf16>, vector<32x128xbf16>, vector<2x128xf32> -> vector<2x128xf32>
    %666 = arith.addf %663, %665 : vector<2x128xf32>
    %667 = vector.extract_strided_slice %666 {offsets = [0, 0], sizes = [2, 32], strides = [1, 1]} : vector<2x128xf32> to vector<2x32xf32>
    %668 = vector.extract_strided_slice %666 {offsets = [0, 32], sizes = [2, 32], strides = [1, 1]} : vector<2x128xf32> to vector<2x32xf32>
    %669 = vector.extract_strided_slice %666 {offsets = [0, 64], sizes = [2, 32], strides = [1, 1]} : vector<2x128xf32> to vector<2x32xf32>
    %670 = vector.extract_strided_slice %666 {offsets = [0, 96], sizes = [2, 32], strides = [1, 1]} : vector<2x128xf32> to vector<2x32xf32>
    %671 = arith.addf %668, %630 : vector<2x32xf32>
    %672 = arith.maximumf %671, %667 : vector<2x32xf32>
    %673 = arith.subf %667, %672 : vector<2x32xf32>
    %674 = arith.addf %668, %630 : vector<2x32xf32>
    %675 = arith.subf %674, %672 : vector<2x32xf32>
    %cst_127 = arith.constant -2.000000e+00 : f32
    %676 = vector.broadcast %cst_127 : f32 to vector<2x32xf32>
    %677 = arith.mulf %676, %669 : vector<2x32xf32>
    %cst_128 = arith.constant 0.000000e+00 : f32
    %678 = vector.broadcast %cst_128 : f32 to vector<2x32xf32>
    %679 = arith.subf %678, %670 : vector<2x32xf32>
    %680 = tpu.concatenate %673, %675, %677, %679 in 1 : vector<2x32xf32>, vector<2x32xf32>, vector<2x32xf32>, vector<2x32xf32> -> vector<2x128xf32>
    %681 = math.exp %680 : vector<2x128xf32>
    %682 = vector.extract_strided_slice %681 {offsets = [0, 0], sizes = [2, 32], strides = [1, 1]} : vector<2x128xf32> to vector<2x32xf32>
    %683 = vector.extract_strided_slice %681 {offsets = [0, 32], sizes = [2, 32], strides = [1, 1]} : vector<2x128xf32> to vector<2x32xf32>
    %684 = vector.extract_strided_slice %681 {offsets = [0, 64], sizes = [2, 64], strides = [1, 1]} : vector<2x128xf32> to vector<2x64xf32>
    %cst_129 = arith.constant 1.000000e+00 : f32
    %685 = vector.broadcast %cst_129 : f32 to vector<2x64xf32>
    %686 = arith.addf %685, %684 : vector<2x64xf32>
    %687 = tpu.reciprocal %686 {approx = true} : vector<2x64xf32> -> vector<2x64xf32>
    %688 = vector.extract_strided_slice %687 {offsets = [0, 0], sizes = [2, 32], strides = [1, 1]} : vector<2x64xf32> to vector<2x32xf32>
    %cst_130 = arith.constant 2.000000e+00 : f32
    %689 = vector.broadcast %cst_130 : f32 to vector<2x32xf32>
    %690 = arith.mulf %689, %688 : vector<2x32xf32>
    %cst_131 = arith.constant 1.000000e+00 : f32
    %691 = vector.broadcast %cst_131 : f32 to vector<2x32xf32>
    %692 = arith.subf %690, %691 : vector<2x32xf32>
    %693 = vector.extract_strided_slice %687 {offsets = [0, 32], sizes = [2, 32], strides = [1, 1]} : vector<2x64xf32> to vector<2x32xf32>
    %694 = arith.mulf %683, %654 : vector<2x32xf32>
    %695 = arith.mulf %682, %692 : vector<2x32xf32>
    %696 = arith.addf %694, %695 : vector<2x32xf32>
    %697 = arith.mulf %683, %656 : vector<2x32xf32>
    %698 = arith.addf %697, %682 : vector<2x32xf32>
    %cst_132 = arith.constant 9.99999997E-7 : f32
    %699 = vector.broadcast %cst_132 : f32 to vector<2x32xf32>
    %700 = arith.maximumf %698, %699 : vector<2x32xf32>
    %701 = tpu.reciprocal %700 {approx = true} : vector<2x32xf32> -> vector<2x32xf32>
    %702 = arith.mulf %696, %701 : vector<2x32xf32>
    %703 = arith.mulf %693, %702 : vector<2x32xf32>
    %704 = vector.extract_strided_slice %447 {offsets = [6, 0, 0], sizes = [1, 2, 128], strides = [1, 1, 1]} : vector<8x2x128xf32> to vector<1x2x128xf32>
    %705 = vector.shape_cast %704 : vector<1x2x128xf32> to vector<2x128xf32>
    %706 = arith.truncf %703 : vector<2x32xf32> to vector<2x32xbf16>
    %cst_133 = arith.constant dense<0.000000e+00> : vector<2x128xf32>
    %707 = tpu.matmul %706, %441, %cst_133 {dimension_numbers = #tpu.dot_dimension_numbers<[1], [0], [0], [1], [0, 0, 1, 1], [], []>} : vector<2x32xbf16>, vector<32x128xbf16>, vector<2x128xf32> -> vector<2x128xf32>
    %708 = arith.addf %705, %707 : vector<2x128xf32>
    %709 = vector.extract_strided_slice %708 {offsets = [0, 0], sizes = [2, 32], strides = [1, 1]} : vector<2x128xf32> to vector<2x32xf32>
    %710 = vector.extract_strided_slice %708 {offsets = [0, 32], sizes = [2, 32], strides = [1, 1]} : vector<2x128xf32> to vector<2x32xf32>
    %711 = vector.extract_strided_slice %708 {offsets = [0, 64], sizes = [2, 32], strides = [1, 1]} : vector<2x128xf32> to vector<2x32xf32>
    %712 = vector.extract_strided_slice %708 {offsets = [0, 96], sizes = [2, 32], strides = [1, 1]} : vector<2x128xf32> to vector<2x32xf32>
    %713 = arith.addf %710, %672 : vector<2x32xf32>
    %714 = arith.maximumf %713, %709 : vector<2x32xf32>
    %715 = arith.subf %709, %714 : vector<2x32xf32>
    %716 = arith.addf %710, %672 : vector<2x32xf32>
    %717 = arith.subf %716, %714 : vector<2x32xf32>
    %cst_134 = arith.constant -2.000000e+00 : f32
    %718 = vector.broadcast %cst_134 : f32 to vector<2x32xf32>
    %719 = arith.mulf %718, %711 : vector<2x32xf32>
    %cst_135 = arith.constant 0.000000e+00 : f32
    %720 = vector.broadcast %cst_135 : f32 to vector<2x32xf32>
    %721 = arith.subf %720, %712 : vector<2x32xf32>
    %722 = tpu.concatenate %715, %717, %719, %721 in 1 : vector<2x32xf32>, vector<2x32xf32>, vector<2x32xf32>, vector<2x32xf32> -> vector<2x128xf32>
    %723 = math.exp %722 : vector<2x128xf32>
    %724 = vector.extract_strided_slice %723 {offsets = [0, 0], sizes = [2, 32], strides = [1, 1]} : vector<2x128xf32> to vector<2x32xf32>
    %725 = vector.extract_strided_slice %723 {offsets = [0, 32], sizes = [2, 32], strides = [1, 1]} : vector<2x128xf32> to vector<2x32xf32>
    %726 = vector.extract_strided_slice %723 {offsets = [0, 64], sizes = [2, 64], strides = [1, 1]} : vector<2x128xf32> to vector<2x64xf32>
    %cst_136 = arith.constant 1.000000e+00 : f32
    %727 = vector.broadcast %cst_136 : f32 to vector<2x64xf32>
    %728 = arith.addf %727, %726 : vector<2x64xf32>
    %729 = tpu.reciprocal %728 {approx = true} : vector<2x64xf32> -> vector<2x64xf32>
    %730 = vector.extract_strided_slice %729 {offsets = [0, 0], sizes = [2, 32], strides = [1, 1]} : vector<2x64xf32> to vector<2x32xf32>
    %cst_137 = arith.constant 2.000000e+00 : f32
    %731 = vector.broadcast %cst_137 : f32 to vector<2x32xf32>
    %732 = arith.mulf %731, %730 : vector<2x32xf32>
    %cst_138 = arith.constant 1.000000e+00 : f32
    %733 = vector.broadcast %cst_138 : f32 to vector<2x32xf32>
    %734 = arith.subf %732, %733 : vector<2x32xf32>
    %735 = vector.extract_strided_slice %729 {offsets = [0, 32], sizes = [2, 32], strides = [1, 1]} : vector<2x64xf32> to vector<2x32xf32>
    %736 = arith.mulf %725, %696 : vector<2x32xf32>
    %737 = arith.mulf %724, %734 : vector<2x32xf32>
    %738 = arith.addf %736, %737 : vector<2x32xf32>
    %739 = arith.mulf %725, %698 : vector<2x32xf32>
    %740 = arith.addf %739, %724 : vector<2x32xf32>
    %cst_139 = arith.constant 9.99999997E-7 : f32
    %741 = vector.broadcast %cst_139 : f32 to vector<2x32xf32>
    %742 = arith.maximumf %740, %741 : vector<2x32xf32>
    %743 = tpu.reciprocal %742 {approx = true} : vector<2x32xf32> -> vector<2x32xf32>
    %744 = arith.mulf %738, %743 : vector<2x32xf32>
    %745 = arith.mulf %735, %744 : vector<2x32xf32>
    %746 = vector.extract_strided_slice %447 {offsets = [7, 0, 0], sizes = [1, 2, 128], strides = [1, 1, 1]} : vector<8x2x128xf32> to vector<1x2x128xf32>
    %747 = vector.shape_cast %746 : vector<1x2x128xf32> to vector<2x128xf32>
    %748 = arith.truncf %745 : vector<2x32xf32> to vector<2x32xbf16>
    %cst_140 = arith.constant dense<0.000000e+00> : vector<2x128xf32>
    %749 = tpu.matmul %748, %441, %cst_140 {dimension_numbers = #tpu.dot_dimension_numbers<[1], [0], [0], [1], [0, 0, 1, 1], [], []>} : vector<2x32xbf16>, vector<32x128xbf16>, vector<2x128xf32> -> vector<2x128xf32>
    %750 = arith.addf %747, %749 : vector<2x128xf32>
    %751 = vector.extract_strided_slice %750 {offsets = [0, 0], sizes = [2, 32], strides = [1, 1]} : vector<2x128xf32> to vector<2x32xf32>
    %752 = vector.extract_strided_slice %750 {offsets = [0, 32], sizes = [2, 32], strides = [1, 1]} : vector<2x128xf32> to vector<2x32xf32>
    %753 = vector.extract_strided_slice %750 {offsets = [0, 64], sizes = [2, 32], strides = [1, 1]} : vector<2x128xf32> to vector<2x32xf32>
    %754 = vector.extract_strided_slice %750 {offsets = [0, 96], sizes = [2, 32], strides = [1, 1]} : vector<2x128xf32> to vector<2x32xf32>
    %755 = arith.addf %752, %714 : vector<2x32xf32>
    %756 = arith.maximumf %755, %751 : vector<2x32xf32>
    %757 = arith.subf %751, %756 : vector<2x32xf32>
    %758 = arith.addf %752, %714 : vector<2x32xf32>
    %759 = arith.subf %758, %756 : vector<2x32xf32>
    %cst_141 = arith.constant -2.000000e+00 : f32
    %760 = vector.broadcast %cst_141 : f32 to vector<2x32xf32>
    %761 = arith.mulf %760, %753 : vector<2x32xf32>
    %cst_142 = arith.constant 0.000000e+00 : f32
    %762 = vector.broadcast %cst_142 : f32 to vector<2x32xf32>
    %763 = arith.subf %762, %754 : vector<2x32xf32>
    %764 = tpu.concatenate %757, %759, %761, %763 in 1 : vector<2x32xf32>, vector<2x32xf32>, vector<2x32xf32>, vector<2x32xf32> -> vector<2x128xf32>
    %765 = math.exp %764 : vector<2x128xf32>
    %766 = vector.extract_strided_slice %765 {offsets = [0, 0], sizes = [2, 32], strides = [1, 1]} : vector<2x128xf32> to vector<2x32xf32>
    %767 = vector.extract_strided_slice %765 {offsets = [0, 32], sizes = [2, 32], strides = [1, 1]} : vector<2x128xf32> to vector<2x32xf32>
    %768 = vector.extract_strided_slice %765 {offsets = [0, 64], sizes = [2, 64], strides = [1, 1]} : vector<2x128xf32> to vector<2x64xf32>
    %cst_143 = arith.constant 1.000000e+00 : f32
    %769 = vector.broadcast %cst_143 : f32 to vector<2x64xf32>
    %770 = arith.addf %769, %768 : vector<2x64xf32>
    %771 = tpu.reciprocal %770 {approx = true} : vector<2x64xf32> -> vector<2x64xf32>
    %772 = vector.extract_strided_slice %771 {offsets = [0, 0], sizes = [2, 32], strides = [1, 1]} : vector<2x64xf32> to vector<2x32xf32>
    %cst_144 = arith.constant 2.000000e+00 : f32
    %773 = vector.broadcast %cst_144 : f32 to vector<2x32xf32>
    %774 = arith.mulf %773, %772 : vector<2x32xf32>
    %cst_145 = arith.constant 1.000000e+00 : f32
    %775 = vector.broadcast %cst_145 : f32 to vector<2x32xf32>
    %776 = arith.subf %774, %775 : vector<2x32xf32>
    %777 = vector.extract_strided_slice %771 {offsets = [0, 32], sizes = [2, 32], strides = [1, 1]} : vector<2x64xf32> to vector<2x32xf32>
    %778 = arith.mulf %767, %738 : vector<2x32xf32>
    %779 = arith.mulf %766, %776 : vector<2x32xf32>
    %780 = arith.addf %778, %779 : vector<2x32xf32>
    %781 = arith.mulf %767, %740 : vector<2x32xf32>
    %782 = arith.addf %781, %766 : vector<2x32xf32>
    %cst_146 = arith.constant 9.99999997E-7 : f32
    %783 = vector.broadcast %cst_146 : f32 to vector<2x32xf32>
    %784 = arith.maximumf %782, %783 : vector<2x32xf32>
    %785 = tpu.reciprocal %784 {approx = true} : vector<2x32xf32> -> vector<2x32xf32>
    %786 = arith.mulf %780, %785 : vector<2x32xf32>
    %787 = arith.mulf %777, %786 : vector<2x32xf32>
    %788 = vector.extract_strided_slice %410 {offsets = [7, 0, 0], sizes = [1, 2, 32], strides = [1, 1, 1]} : vector<8x2x32xf32> to vector<1x2x32xf32>
    %789 = vector.shape_cast %788 : vector<1x2x32xf32> to vector<2x32xf32>
    %790 = arith.addf %789, %787 : vector<2x32xf32>
    %cst_147 = arith.constant dense<0.000000e+00> : vector<2xf32>
    %791 = vector.multi_reduction <add>, %790, %cst_147 [1] : vector<2x32xf32> to vector<2xf32>
    %792 = vector.shape_cast %791 : vector<2xf32> to vector<2x1xf32>
    %cst_148 = arith.constant 3.200000e+01 : f32
    %793 = vector.broadcast %cst_148 : f32 to vector<2x1xf32>
    %794 = arith.divf %792, %793 : vector<2x1xf32>
    %795 = vector.broadcast %794 : vector<2x1xf32> to vector<2x32xf32>
    %796 = arith.subf %790, %795 : vector<2x32xf32>
    %797 = arith.mulf %796, %796 : vector<2x32xf32>
    %cst_149 = arith.constant dense<0.000000e+00> : vector<2xf32>
    %798 = vector.multi_reduction <add>, %797, %cst_149 [1] : vector<2x32xf32> to vector<2xf32>
    %799 = vector.shape_cast %798 : vector<2xf32> to vector<2x1xf32>
    %cst_150 = arith.constant 3.200000e+01 : f32
    %800 = vector.broadcast %cst_150 : f32 to vector<2x1xf32>
    %801 = arith.divf %799, %800 : vector<2x1xf32>
    %802 = vector.broadcast %794 : vector<2x1xf32> to vector<2x32xf32>
    %803 = arith.subf %790, %802 : vector<2x32xf32>
    %cst_151 = arith.constant 9.99999974E-6 : f32
    %804 = vector.broadcast %cst_151 : f32 to vector<2x1xf32>
    %805 = arith.addf %801, %804 : vector<2x1xf32>
    %806 = math.rsqrt %805 : vector<2x1xf32>
    %807 = vector.broadcast %806 : vector<2x1xf32> to vector<2x32xf32>
    %808 = arith.mulf %803, %807 : vector<2x32xf32>
    %809 = vector.broadcast %7 : vector<1x32xf32> to vector<2x32xf32>
    %810 = arith.mulf %808, %809 : vector<2x32xf32>
    %811 = vector.broadcast %8 : vector<1x32xf32> to vector<2x32xf32>
    %812 = arith.addf %810, %811 : vector<2x32xf32>
    %813 = vector.broadcast %9 : vector<1x32xf32> to vector<2x32xf32>
    %814 = arith.mulf %812, %813 : vector<2x32xf32>
    %cst_152 = arith.constant dense<0.000000e+00> : vector<2xf32>
    %815 = vector.multi_reduction <add>, %814, %cst_152 [1] : vector<2x32xf32> to vector<2xf32>
    %816 = vector.shape_cast %815 : vector<2xf32> to vector<2x1xf32>
    %817 = vector.broadcast %10 : vector<1x1xf32> to vector<2x1xf32>
    %818 = arith.addf %816, %817 : vector<2x1xf32>
    %c0_153 = arith.constant 0 : index
    %c0_154 = arith.constant 0 : index
    %819 = vector.load %arg5[%c0_153, %c0_154] : memref<2x1xf32, #tpu.memory_space<vmem>>, vector<2x1xf32>
    tpu.vector_store %arg5[%c0_153, %c0_154], %818 {strides = array<i32>} : memref<2x1xf32, #tpu.memory_space<vmem>>, vector<2x1xf32>,
    return
  }
}

</mosaic_0001>

<llo_original>
// kernel: tpu_custom_call.1
$region0: #{tpu_custom_call.1}
  #allocation0 [shape = 'u32[]', space=smem, size = 0x4, offset = 0x4, fixed_abs, tag = 'smem constant byte address 0x4 - core index']
  #allocation1 [shape = 'u32[144,128]{1,0:T(1,128)}', space=vmem, size = 0x12000, scoped, tag = 'internal scratch']
  %s0 = inlined_call_operand.vmem [shape: f32[8,2], index: 0, kind: input, shape index: {}]
  %s1 = inlined_call_operand.vmem [shape: f32[8,2], index: 1, kind: input, shape index: {}]
  %s2 = inlined_call_operand.hbm [shape: f32[12,128], index: 2, kind: input, shape index: {}]
  %s3 = inlined_call_operand.hbm [shape: bf16[2,32,128], index: 3, kind: input, shape index: {}]
  %s4 = inlined_call_operand.vmem [shape: bf16[2,32,128], index: 4, kind: input, shape index: {}]
  %s5 = inlined_call_operand.vmem [shape: f32[2,1], index: 5, kind: output, shape index: {}]
  %s6 = sld [smem:[#allocation0]]
  $region38: #{tpu_custom_call.1} parent=0
    _
  %s8 = ssub.s32 1, %s6
  %s9 = scalar_select 0, %s8, %s6
  $region1: #{tpu_custom_call.1} parent=0
    #allocation2 [shape = 'u8[8192]{0}', space=vmem, size = 0x2000, scoped, tag = 'input window, operand 2, single buffered']
    #allocation3 [shape = 's32[1]{0}', space=sflag, size = 0x4, scoped, tag = 'scoped memory for tpu_custom_call.1']
    #allocation4 [shape = 'u8[16384]{0}', space=vmem, size = 0x4000, scoped, tag = 'input window, operand 3, single buffered']
    #allocation5 [shape = 's32[1]{0}', space=sflag, size = 0x4, scoped, tag = 'scoped memory for tpu_custom_call.1']
    %10 = vsyncpa [#allocation3], 0
    %11 = vsyncpa [#allocation5], 0
    // Predicated region
    $region2: #{tpu_custom_call.1} parent=1 // pred_check
      _
    $region3: #{tpu_custom_call.1} parent=1 // pred_check_branch
      %13 = sbr.rel (0) target = $region5
    $region4: #{tpu_custom_call.1} parent=1 // pred_region
      _
    $region5: #{tpu_custom_call.1} parent=1 // pred_fallthru
      _
    // Predicated region
    $region6: #{tpu_custom_call.1} parent=1 // pred_check
      _
    $region7: #{tpu_custom_call.1} parent=1 // pred_check_branch
      %15 = sbr.rel (0) target = $region9
    $region8: #{tpu_custom_call.1} parent=1 // pred_region
      _
    $region9: #{tpu_custom_call.1} parent=1 // pred_fallthru
      _
    // Predicated region
    $region10: #{tpu_custom_call.1} parent=1 // pred_check
      _
    $region11: #{tpu_custom_call.1} parent=1 // pred_check_branch
      %17 = sbr.rel (0) target = $region13
    $region12: #{tpu_custom_call.1} parent=1 // pred_region
      %s19 = ssub.s32 256, 256
      %20 = vsyncadd [#allocation3], %s19
      %s21 = sshll.u32 [#allocation2], 4
      %s22 = int_to_ptr.vmem [resolvable:$true] %s21
      %27 = dma.hbm_to_vmem [thread:$0]  %s2, 256, %s22, [#allocation3], 128, 128, 8
    $region13: #{tpu_custom_call.1} parent=1 // pred_fallthru
      _
    // Predicated region
    $region14: #{tpu_custom_call.1} parent=1 // pred_check
      _
    $region15: #{tpu_custom_call.1} parent=1 // pred_check_branch
      %29 = sbr.rel (0) target = $region17
    $region16: #{tpu_custom_call.1} parent=1 // pred_region
      %s31 = ssub.s32 512, 512
      %32 = vsyncadd [#allocation5], %s31
      %s33 = sshll.u32 [#allocation4], 4
      %s34 = int_to_ptr.vmem [resolvable:$true] %s33
      %39 = dma.hbm_to_vmem [thread:$0]  %s3, 512, %s34, [#allocation5], 64, 64, 4
    $region17: #{tpu_custom_call.1} parent=1 // pred_fallthru
      _
    // Predicated region
    $region18: #{tpu_custom_call.1} parent=1 // pred_check
      _
    $region19: #{tpu_custom_call.1} parent=1 // pred_check_branch
      %41 = sbr.rel (0) target = $region21
    $region20: #{tpu_custom_call.1} parent=1 // pred_region
      _
    $region21: #{tpu_custom_call.1} parent=1 // pred_fallthru
      _
    // Predicated region
    $region22: #{tpu_custom_call.1} parent=1 // pred_check
      _
    $region23: #{tpu_custom_call.1} parent=1 // pred_check_branch
      %43 = sbr.rel (0) target = $region25
    $region24: #{tpu_custom_call.1} parent=1 // pred_region
      %44 = dma.done [#allocation3], 256
    $region25: #{tpu_custom_call.1} parent=1 // pred_fallthru
      _
    // Predicated region
    $region26: #{tpu_custom_call.1} parent=1 // pred_check
      _
    $region27: #{tpu_custom_call.1} parent=1 // pred_check_branch
      %46 = sbr.rel (0) target = $region29
    $region28: #{tpu_custom_call.1} parent=1 // pred_region
      %47 = dma.done [#allocation5], 512
    $region29: #{tpu_custom_call.1} parent=1 // pred_fallthru
      _
    %v49 = vld [vmem:[#allocation2] sm:$0xff]
    %v50 = vld [vmem:[#allocation2 + $0x8] sm:$0xf]
    %v51 = vld [vmem:[%s0] sm:$0xff]
    %v52 = vlaneseq
    %v53 = vshrl.u32 %v52, 7
    %v54 = vsub.s32 0, %v53
    %v55 = vrot.slane %v51, %v54
    %57 = vbcast.lane.b32.xlu0 %v55, 256
    %v58 = vpop.permute.xlu0 %57
    %v59 = vlaneseq
    %v60 = vshrl.u32 %v59, 7
    %v61 = vsub.s32 1, %v60
    %v62 = vrot.slane %v51, %v61
    %64 = vbcast.lane.b32.xlu0 %v62, 256
    %v65 = vpop.permute.xlu0 %64
    %v66 = vlaneseq
    %v67 = vshrl.u32 %v66, 7
    %v68 = vsub.s32 2, %v67
    %v69 = vrot.slane %v51, %v68
    %71 = vbcast.lane.b32.xlu0 %v69, 256
    %v72 = vpop.permute.xlu0 %71
    %v73 = vlaneseq
    %v74 = vshrl.u32 %v73, 7
    %v75 = vsub.s32 3, %v74
    %v76 = vrot.slane %v51, %v75
    %78 = vbcast.lane.b32.xlu0 %v76, 256
    %v79 = vpop.permute.xlu0 %78
    %v80 = vlaneseq
    %v81 = vshrl.u32 %v80, 7
    %v82 = vsub.s32 4, %v81
    %v83 = vrot.slane %v51, %v82
    %85 = vbcast.lane.b32.xlu0 %v83, 256
    %v86 = vpop.permute.xlu0 %85
    %v87 = vlaneseq
    %v88 = vshrl.u32 %v87, 7
    %v89 = vsub.s32 5, %v88
    %v90 = vrot.slane %v51, %v89
    %92 = vbcast.lane.b32.xlu0 %v90, 256
    %v93 = vpop.permute.xlu0 %92
    %v94 = vlaneseq
    %v95 = vshrl.u32 %v94, 7
    %v96 = vsub.s32 6, %v95
    %v97 = vrot.slane %v51, %v96
    %99 = vbcast.lane.b32.xlu0 %v97, 256
    %v100 = vpop.permute.xlu0 %99
    %v101 = vlaneseq
    %v102 = vshrl.u32 %v101, 7
    %v103 = vsub.s32 7, %v102
    %v104 = vrot.slane %v51, %v103
    %106 = vbcast.lane.b32.xlu0 %v104, 256
    %v107 = vpop.permute.xlu0 %106
    %v108 = vlaneseq
    %v109 = vshrl.u32 %v108, 7
    %v110 = vsub.s32 0, %v109
    %v111 = vrot.slane %v49, %v110
    %v112 = vmul.f32 %v58, %v111
    %v113 = vmul.f32 %v65, %v111
    %v114 = vmul.f32 %v72, %v111
    %v115 = vmul.f32 %v79, %v111
    %v116 = vmul.f32 %v86, %v111
    %v117 = vmul.f32 %v93, %v111
    %v118 = vmul.f32 %v100, %v111
    %v119 = vmul.f32 %v107, %v111
    %v120 = vld [vmem:[%s1] sm:$0xff]
    %v121 = vlaneseq
    %v122 = vshrl.u32 %v121, 7
    %v123 = vsub.s32 0, %v122
    %v124 = vrot.slane %v120, %v123
    %126 = vbcast.lane.b32.xlu0 %v124, 256
    %v127 = vpop.permute.xlu0 %126
    %v128 = vlaneseq
    %v129 = vshrl.u32 %v128, 7
    %v130 = vsub.s32 1, %v129
    %v131 = vrot.slane %v120, %v130
    %133 = vbcast.lane.b32.xlu0 %v131, 256
    %v134 = vpop.permute.xlu0 %133
    %v135 = vlaneseq
    %v136 = vshrl.u32 %v135, 7
    %v137 = vsub.s32 2, %v136
    %v138 = vrot.slane %v120, %v137
    %140 = vbcast.lane.b32.xlu0 %v138, 256
    %v141 = vpop.permute.xlu0 %140
    %v142 = vlaneseq
    %v143 = vshrl.u32 %v142, 7
    %v144 = vsub.s32 3, %v143
    %v145 = vrot.slane %v120, %v144
    %147 = vbcast.lane.b32.xlu0 %v145, 256
    %v148 = vpop.permute.xlu0 %147
    %v149 = vlaneseq
    %v150 = vshrl.u32 %v149, 7
    %v151 = vsub.s32 4, %v150
    %v152 = vrot.slane %v120, %v151
    %154 = vbcast.lane.b32.xlu0 %v152, 256
    %v155 = vpop.permute.xlu0 %154
    %v156 = vlaneseq
    %v157 = vshrl.u32 %v156, 7
    %v158 = vsub.s32 5, %v157
    %v159 = vrot.slane %v120, %v158
    %161 = vbcast.lane.b32.xlu0 %v159, 256
    %v162 = vpop.permute.xlu0 %161
    %v163 = vlaneseq
    %v164 = vshrl.u32 %v163, 7
    %v165 = vsub.s32 6, %v164
    %v166 = vrot.slane %v120, %v165
    %168 = vbcast.lane.b32.xlu0 %v166, 256
    %v169 = vpop.permute.xlu0 %168
    %v170 = vlaneseq
    %v171 = vshrl.u32 %v170, 7
    %v172 = vsub.s32 7, %v171
    %v173 = vrot.slane %v120, %v172
    %175 = vbcast.lane.b32.xlu0 %v173, 256
    %v176 = vpop.permute.xlu0 %175
    %v177 = vlaneseq
    %v178 = vshrl.u32 %v177, 7
    %v179 = vsub.s32 1, %v178
    %v180 = vrot.slane %v49, %v179
    %v181 = vmul.f32 %v127, %v180
    %v182 = vmul.f32 %v134, %v180
    %v183 = vmul.f32 %v141, %v180
    %v184 = vmul.f32 %v148, %v180
    %v185 = vmul.f32 %v155, %v180
    %v186 = vmul.f32 %v162, %v180
    %v187 = vmul.f32 %v169, %v180
    %v188 = vmul.f32 %v176, %v180
    %v189 = vadd.f32 %v112, %v181
    %v190 = vadd.f32 %v113, %v182
    %v191 = vadd.f32 %v114, %v183
    %v192 = vadd.f32 %v115, %v184
    %v193 = vadd.f32 %v116, %v185
    %v194 = vadd.f32 %v117, %v186
    %v195 = vadd.f32 %v118, %v187
    %v196 = vadd.f32 %v119, %v188
    %v197 = vlaneseq
    %v198 = vshrl.u32 %v197, 7
    %v199 = vsub.s32 2, %v198
    %v200 = vrot.slane %v49, %v199
    %v201 = vadd.f32 %v189, %v200
    %v202 = vadd.f32 %v190, %v200
    %v203 = vadd.f32 %v191, %v200
    %v204 = vadd.f32 %v192, %v200
    %v205 = vadd.f32 %v193, %v200
    %v206 = vadd.f32 %v194, %v200
    %v207 = vadd.f32 %v195, %v200
    %v208 = vadd.f32 %v196, %v200
    %vm209 = vcmask 254976
    %v210 = vsel %vm209, %v201, 0.0
    %211 = vadd.xlane.f32.xlu0 %v210
    %v212 = vpop.xlane.xlu0 %211
    %v213 = vsel %vm209, %v202, 0.0
    %214 = vadd.xlane.f32.xlu0 %v213
    %v215 = vpop.xlane.xlu0 %214
    %v216 = vsel %vm209, %v203, 0.0
    %217 = vadd.xlane.f32.xlu0 %v216
    %v218 = vpop.xlane.xlu0 %217
    %v219 = vsel %vm209, %v204, 0.0
    %220 = vadd.xlane.f32.xlu0 %v219
    %v221 = vpop.xlane.xlu0 %220
    %v222 = vsel %vm209, %v205, 0.0
    %223 = vadd.xlane.f32.xlu0 %v222
    %v224 = vpop.xlane.xlu0 %223
    %v225 = vsel %vm209, %v206, 0.0
    %226 = vadd.xlane.f32.xlu0 %v225
    %v227 = vpop.xlane.xlu0 %226
    %v228 = vsel %vm209, %v207, 0.0
    %229 = vadd.xlane.f32.xlu0 %v228
    %v230 = vpop.xlane.xlu0 %229
    %v231 = vsel %vm209, %v208, 0.0
    %232 = vadd.xlane.f32.xlu0 %v231
    %v233 = vpop.xlane.xlu0 %232
    %v234 = vrcp.pop 32.0
    %v235 = vmul.f32 %v212, %v234
    %v236 = vmul.f32 %v215, %v234
    %v237 = vmul.f32 %v218, %v234
    %v238 = vmul.f32 %v221, %v234
    %v239 = vmul.f32 %v224, %v234
    %v240 = vmul.f32 %v227, %v234
    %v241 = vmul.f32 %v230, %v234
    %v242 = vmul.f32 %v233, %v234
    %v243 = vsub.f32 %v201, %v235
    %v244 = vsub.f32 %v202, %v236
    %v245 = vsub.f32 %v203, %v237
    %v246 = vsub.f32 %v204, %v238
    %v247 = vsub.f32 %v205, %v239
    %v248 = vsub.f32 %v206, %v240
    %v249 = vsub.f32 %v207, %v241
    %v250 = vsub.f32 %v208, %v242
    %v251 = vmul.f32 %v243, %v243
    %v252 = vmul.f32 %v244, %v244
    %v253 = vmul.f32 %v245, %v245
    %v254 = vmul.f32 %v246, %v246
    %v255 = vmul.f32 %v247, %v247
    %v256 = vmul.f32 %v248, %v248
    %v257 = vmul.f32 %v249, %v249
    %v258 = vmul.f32 %v250, %v250
    %v259 = vsel %vm209, %v251, 0.0
    %260 = vadd.xlane.f32.xlu0 %v259
    %v261 = vpop.xlane.xlu0 %260
    %v262 = vsel %vm209, %v252, 0.0
    %263 = vadd.xlane.f32.xlu0 %v262
    %v264 = vpop.xlane.xlu0 %263
    %v265 = vsel %vm209, %v253, 0.0
    %266 = vadd.xlane.f32.xlu0 %v265
    %v267 = vpop.xlane.xlu0 %266
    %v268 = vsel %vm209, %v254, 0.0
    %269 = vadd.xlane.f32.xlu0 %v268
    %v270 = vpop.xlane.xlu0 %269
    %v271 = vsel %vm209, %v255, 0.0
    %272 = vadd.xlane.f32.xlu0 %v271
    %v273 = vpop.xlane.xlu0 %272
    %v274 = vsel %vm209, %v256, 0.0
    %275 = vadd.xlane.f32.xlu0 %v274
    %v276 = vpop.xlane.xlu0 %275
    %v277 = vsel %vm209, %v257, 0.0
    %278 = vadd.xlane.f32.xlu0 %v277
    %v279 = vpop.xlane.xlu0 %278
    %v280 = vsel %vm209, %v258, 0.0
    %281 = vadd.xlane.f32.xlu0 %v280
    %v282 = vpop.xlane.xlu0 %281
    %v283 = vmul.f32 %v261, %v234
    %v284 = vmul.f32 %v264, %v234
    %v285 = vmul.f32 %v267, %v234
    %v286 = vmul.f32 %v270, %v234
    %v287 = vmul.f32 %v273, %v234
    %v288 = vmul.f32 %v276, %v234
    %v289 = vmul.f32 %v279, %v234
    %v290 = vmul.f32 %v282, %v234
    %v291 = vadd.f32 %v283, 1e-05
    %v292 = vadd.f32 %v284, 1e-05
    %v293 = vadd.f32 %v285, 1e-05
    %v294 = vadd.f32 %v286, 1e-05
    %v295 = vadd.f32 %v287, 1e-05
    %v296 = vadd.f32 %v288, 1e-05
    %v297 = vadd.f32 %v289, 1e-05
    %v298 = vadd.f32 %v290, 1e-05
    %v299 = vrsqrt.pop %v291
    %v300 = vrsqrt.pop %v292
    %v301 = vrsqrt.pop %v293
    %v302 = vrsqrt.pop %v294
    %v303 = vrsqrt.pop %v295
    %v304 = vrsqrt.pop %v296
    %v305 = vrsqrt.pop %v297
    %v306 = vrsqrt.pop %v298
    %v307 = vmul.f32 %v243, %v299
    %v308 = vmul.f32 %v244, %v300
    %v309 = vmul.f32 %v245, %v301
    %v310 = vmul.f32 %v246, %v302
    %v311 = vmul.f32 %v247, %v303
    %v312 = vmul.f32 %v248, %v304
    %v313 = vmul.f32 %v249, %v305
    %v314 = vmul.f32 %v250, %v306
    %v315 = vlaneseq
    %v316 = vshrl.u32 %v315, 7
    %v317 = vsub.s32 6, %v316
    %v318 = vrot.slane %v49, %v317
    %v319 = vmul.f32 %v307, %v318
    %v320 = vmul.f32 %v308, %v318
    %v321 = vmul.f32 %v309, %v318
    %v322 = vmul.f32 %v310, %v318
    %v323 = vmul.f32 %v311, %v318
    %v324 = vmul.f32 %v312, %v318
    %v325 = vmul.f32 %v313, %v318
    %v326 = vmul.f32 %v314, %v318
    %v327 = vlaneseq
    %v328 = vshrl.u32 %v327, 7
    %v329 = vsub.s32 0, %v328
    %v330 = vrot.slane %v50, %v329
    %v331 = vadd.f32 %v319, %v330
    %v332 = vadd.f32 %v320, %v330
    %v333 = vadd.f32 %v321, %v330
    %v334 = vadd.f32 %v322, %v330
    %v335 = vadd.f32 %v323, %v330
    %v336 = vadd.f32 %v324, %v330
    %v337 = vadd.f32 %v325, %v330
    %v338 = vadd.f32 %v326, %v330
    %v339 = vld [vmem:[#allocation4] sm:$0xf]
    %v340 = vld [vmem:[#allocation4 + $0x4] sm:$0xf]
    %v341 = vld [vmem:[#allocation4 + $0x8] sm:$0xf]
    %v342 = vld [vmem:[#allocation4 + $0xc] sm:$0xf]
    %v343 = vld [vmem:[%s4] sm:$0xf]
    %v344 = vld [vmem:[%s4 + $0x4] sm:$0xf]
    %v345 = vld [vmem:[%s4 + $0x8] sm:$0xf]
    %v346 = vld [vmem:[%s4 + $0xc] sm:$0xf]
    %v355 = vcombine.low %v331, %v332
    %v356 = vcombine.low %v333, %v334
    %v358 = vunpack.c.l.s4 1983009808
    %v359 = vunpack.c.0.s8 %v358
    %v360 = vlaneseq
    %v361 = vshrl.u32 %v360, 7
    %v362 = vsub.s32 %v359, %v361
    %v363 = vrot.slane %v355, %v362
    %v365 = vunpack.c.l.s4 1983009808
    %v366 = vunpack.c.0.s8 %v365
    %v367 = vlaneseq
    %v368 = vshrl.u32 %v367, 7
    %v369 = vsub.s32 %v366, %v368
    %v370 = vrot.slane %v356, %v369
    %v371 = vcombine.low %v363, %v370
    %v372 = vcombine.low %v335, %v336
    %v373 = vcombine.low %v337, %v338
    %v375 = vunpack.c.l.s4 1983009808
    %v376 = vunpack.c.0.s8 %v375
    %v377 = vlaneseq
    %v378 = vshrl.u32 %v377, 7
    %v379 = vsub.s32 %v376, %v378
    %v380 = vrot.slane %v372, %v379
    %v382 = vunpack.c.l.s4 1983009808
    %v383 = vunpack.c.0.s8 %v382
    %v384 = vlaneseq
    %v385 = vshrl.u32 %v384, 7
    %v386 = vsub.s32 %v383, %v385
    %v387 = vrot.slane %v373, %v386
    %v388 = vcombine.low %v380, %v387
    %v391 = vpack.c.bf16 %v388, %v371
    %v392 = vlaneseq
    %v393 = vshrl.u32 %v392, 7
    %v394 = vsub.s32 2, %v393
    %v395 = vrot.slane %v50, %v394
    %v400 = vunpack.c.l.b16 %v339
    %v401 = vunpack.c.l.b16 %v340
    %v402 = vunpack.c.l.b16 %v341
    %v403 = vunpack.c.l.b16 %v342
    %v404 = vpack.c.b16 %v401, %v400
    %v405 = vpack.c.b16 %v403, %v402
    %vm408 = vcmask 261120
    %v410 = vsel %vm408, %v391, 0
    %412 = vmatprep.subr.bf16.mxu0 0
    %413 = vmatpush1.bf16.msra.mxu0 %v404
    %414 = vmatprep.subr.bf16.mxu0 0
    %415 = vmatpush1.bf16.msra.mxu0 %v405
    %416 = vmatprep.subr.bf16.mxu0 0
    %417 = vmatpush1.bf16.msra.mxu0 0
    %418 = vmatprep.subr.bf16.mxu0 0
    %419 = vmatpush1.bf16.msra.mxu0 0
    %420 = vmatprep.subr.bf16.mxu0 0
    %421 = vmatpush1.bf16.msra.mxu0 0
    %422 = vmatprep.subr.bf16.mxu0 0
    %423 = vmatpush1.bf16.msra.mxu0 0
    %424 = vmatprep.subr.bf16.mxu0 0
    %425 = vmatpush1.bf16.msra.mxu0 0
    %426 = vmatprep.subr.bf16.mxu0 0
    %427 = vmatpush1.bf16.msra.mxu0 0
    %428 = vmatprep.subr.bf16.mxu0 0
    %429 = vmatpush1.bf16.msra.mxu0 0
    %430 = vmatprep.subr.bf16.mxu0 0
    %431 = vmatpush1.bf16.msra.mxu0 0
    %432 = vmatprep.subr.bf16.mxu0 0
    %433 = vmatpush1.bf16.msra.mxu0 0
    %434 = vmatprep.subr.bf16.mxu0 0
    %435 = vmatpush1.bf16.msra.mxu0 0
    %436 = vmatprep.subr.bf16.mxu0 0
    %437 = vmatpush1.bf16.msra.mxu0 0
    %438 = vmatprep.subr.bf16.mxu0 0
    %439 = vmatpush1.bf16.msra.mxu0 0
    %440 = vmatprep.subr.bf16.mxu0 0
    %441 = vmatpush1.bf16.msra.mxu0 0
    %442 = vmatprep.subr.bf16.mxu0 0
    %443 = vmatpush1.bf16.msra.mxu0 0
    %444 = vmatprep.mubr.bf16.mxu0 0
    %445 = vmatmul.mubr.bf16.gmra.mrb[0].mxu0 %v410
    %v446 = vpop.f32.mrb[0].mxu0
    %v447 = vadd.f32 %v395, %v446
    %v448 = vpop.f32.mrb[0].mxu0
    %v449 = vpop.f32.mrb[0].mxu0
    %v450 = vadd.f32 %v395, %v449
    %v451 = vpop.f32.mrb[0].mxu0
    %452 = vdwg.mxu0
    %v455 = vcombine.high %v447, %v447
    %v457 = vunpack.c.l.s4 1983009808
    %v458 = vunpack.c.0.s8 %v457
    %v459 = vlaneseq
    %v460 = vshrl.u32 %v459, 7
    %v461 = vsub.s32 %v458, %v460
    %v462 = vrot.slane %v447, %v461
    %v464 = vunpack.c.l.s4 1983009808
    %v465 = vunpack.c.0.s8 %v464
    %v466 = vlaneseq
    %v467 = vshrl.u32 %v466, 7
    %v468 = vsub.s32 %v465, %v467
    %v469 = vrot.slane %v455, %v468
    %v470 = vcombine.high %v462, %v462
    %v471 = vcombine.high %v469, %v469
    %v472 = vcombine.high %v450, %v450
    %v474 = vunpack.c.l.s4 1983009808
    %v475 = vunpack.c.0.s8 %v474
    %v476 = vlaneseq
    %v477 = vshrl.u32 %v476, 7
    %v478 = vsub.s32 %v475, %v477
    %v479 = vrot.slane %v450, %v478
    %v481 = vunpack.c.l.s4 1983009808
    %v482 = vunpack.c.0.s8 %v481
    %v483 = vlaneseq
    %v484 = vshrl.u32 %v483, 7
    %v485 = vsub.s32 %v482, %v484
    %v486 = vrot.slane %v472, %v485
    %v487 = vcombine.high %v479, %v479
    %v488 = vcombine.high %v486, %v486
    %v501 = vunpack.c.l.b16 %v343
    %v502 = vunpack.c.l.b16 %v344
    %v503 = vunpack.c.l.b16 %v345
    %v504 = vunpack.c.l.b16 %v346
    %v505 = vpack.c.b16 %v502, %v501
    %v506 = vpack.c.b16 %v504, %v503
    %v510 = vsel %vm408, 0, 0
    %512 = vmatprep.subr.bf16.mxu0 0
    %513 = vmatpush1.bf16.msra.mxu0 %v505
    %514 = vmatprep.subr.bf16.mxu0 0
    %515 = vmatpush1.bf16.msra.mxu0 %v506
    %516 = vmatprep.subr.bf16.mxu0 0
    %517 = vmatpush1.bf16.msra.mxu0 0
    %518 = vmatprep.subr.bf16.mxu0 0
    %519 = vmatpush1.bf16.msra.mxu0 0
    %520 = vmatprep.subr.bf16.mxu0 0
    %521 = vmatpush1.bf16.msra.mxu0 0
    %522 = vmatprep.subr.bf16.mxu0 0
    %523 = vmatpush1.bf16.msra.mxu0 0
    %524 = vmatprep.subr.bf16.mxu0 0
    %525 = vmatpush1.bf16.msra.mxu0 0
    %526 = vmatprep.subr.bf16.mxu0 0
    %527 = vmatpush1.bf16.msra.mxu0 0
    %528 = vmatprep.subr.bf16.mxu0 0
    %529 = vmatpush1.bf16.msra.mxu0 0
    %530 = vmatprep.subr.bf16.mxu0 0
    %531 = vmatpush1.bf16.msra.mxu0 0
    %532 = vmatprep.subr.bf16.mxu0 0
    %533 = vmatpush1.bf16.msra.mxu0 0
    %534 = vmatprep.subr.bf16.mxu0 0
    %535 = vmatpush1.bf16.msra.mxu0 0
    %536 = vmatprep.subr.bf16.mxu0 0
    %537 = vmatpush1.bf16.msra.mxu0 0
    %538 = vmatprep.subr.bf16.mxu0 0
    %539 = vmatpush1.bf16.msra.mxu0 0
    %540 = vmatprep.subr.bf16.mxu0 0
    %541 = vmatpush1.bf16.msra.mxu0 0
    %542 = vmatprep.subr.bf16.mxu0 0
    %543 = vmatpush1.bf16.msra.mxu0 0
    %544 = vmatprep.mubr.bf16.mxu0 0
    %545 = vmatmul.mubr.bf16.gmra.mrb[0].mxu0 %v510
    %v546 = vpop.f32.mrb[0].mxu0
    %v547 = vadd.f32 0.0, %v546
    %v548 = vpop.f32.mrb[0].mxu0
    %v549 = vpop.f32.mrb[0].mxu0
    %v550 = vpop.f32.mrb[0].mxu0
    %551 = vdwg.mxu0
    %v552 = vadd.f32 %v462, %v547
    %v553 = vadd.f32 %v552, 0.0
    %555 = vrot.lane.b32.xlu0 %v552, 32
    %v556 = vpop.permute.xlu0 %555
    %v558 = vmax.f32 %v553, %v556
    %560 = vrot.lane.b32.xlu0 %v558, 96
    %v561 = vpop.permute.xlu0 %560
    %v563 = vsub.f32 %v552, %v561
    %v564 = vsub.f32 %v553, %v558
    %v565 = vmul.f32 %v552, -2.0
    %v566 = vsub.f32 0.0, %v552
    %v567 = vsel %vm408, %v563, %v564
    %vm568 = vcmask 523264
    %v569 = vsel %vm568, %v567, %v565
    %vm570 = vcmask 785408
    %v571 = vsel %vm570, %v569, %v566
    %v572 = vmul.f32 %v571, 1.442695
    %v573 = vpow.pop %v572
    %v574 = vadd.f32 %v573, 1.0
    %v575 = vrcp.pop %v574
    %v576 = vmul.f32 %v575, 2.0
    %v577 = vsub.f32 %v576, 1.0
    %v578 = vmul.f32 %v573, 0.0
    %580 = vrot.lane.b32.xlu0 %v577, 64
    %v581 = vpop.permute.xlu0 %580
    %v583 = vmul.f32 %v573, %v581
    %585 = vrot.lane.b32.xlu0 %v583, 32
    %v586 = vpop.permute.xlu0 %585
    %v588 = vadd.f32 %v578, %v586
    %590 = vrot.lane.b32.xlu0 %v573, 32
    %v591 = vpop.permute.xlu0 %590
    %v593 = vadd.f32 %v578, %v591
    %v594 = vmax.f32 %v593, 1e-06
    %v595 = vrcp.pop %v594
    %v596 = vmul.f32 %v588, %v595
    %598 = vrot.lane.b32.xlu0 %v596, 64
    %v599 = vpop.permute.xlu0 %598
    %v601 = vmul.f32 %v575, %v599
    %v602 = vpack.c.bf16 %v601, %v601
    %604 = vrot.lane.b32.xlu0 %v602, 32
    %v605 = vpop.permute.xlu0 %604
    %v607 = vsel %vm408, %v605, 0
    %609 = vmatprep.subr.bf16.mxu0 0
    %610 = vmatpush1.bf16.msra.mxu0 %v505
    %611 = vmatprep.subr.bf16.mxu0 0
    %612 = vmatpush1.bf16.msra.mxu0 %v506
    %613 = vmatprep.subr.bf16.mxu0 0
    %614 = vmatpush1.bf16.msra.mxu0 0
    %615 = vmatprep.subr.bf16.mxu0 0
    %616 = vmatpush1.bf16.msra.mxu0 0
    %617 = vmatprep.subr.bf16.mxu0 0
    %618 = vmatpush1.bf16.msra.mxu0 0
    %619 = vmatprep.subr.bf16.mxu0 0
    %620 = vmatpush1.bf16.msra.mxu0 0
    %621 = vmatprep.subr.bf16.mxu0 0
    %622 = vmatpush1.bf16.msra.mxu0 0
    %623 = vmatprep.subr.bf16.mxu0 0
    %624 = vmatpush1.bf16.msra.mxu0 0
    %625 = vmatprep.subr.bf16.mxu0 0
    %626 = vmatpush1.bf16.msra.mxu0 0
    %627 = vmatprep.subr.bf16.mxu0 0
    %628 = vmatpush1.bf16.msra.mxu0 0
    %629 = vmatprep.subr.bf16.mxu0 0
    %630 = vmatpush1.bf16.msra.mxu0 0
    %631 = vmatprep.subr.bf16.mxu0 0
    %632 = vmatpush1.bf16.msra.mxu0 0
    %633 = vmatprep.subr.bf16.mxu0 0
    %634 = vmatpush1.bf16.msra.mxu0 0
    %635 = vmatprep.subr.bf16.mxu0 0
    %636 = vmatpush1.bf16.msra.mxu0 0
    %637 = vmatprep.subr.bf16.mxu0 0
    %638 = vmatpush1.bf16.msra.mxu0 0
    %639 = vmatprep.subr.bf16.mxu0 0
    %640 = vmatpush1.bf16.msra.mxu0 0
    %641 = vmatprep.mubr.bf16.mxu0 0
    %642 = vmatmul.mubr.bf16.gmra.mrb[0].mxu0 %v607
    %v643 = vpop.f32.mrb[0].mxu0
    %v644 = vadd.f32 0.0, %v643
    %v645 = vpop.f32.mrb[0].mxu0
    %v646 = vpop.f32.mrb[0].mxu0
    %v647 = vpop.f32.mrb[0].mxu0
    %648 = vdwg.mxu0
    %v649 = vadd.f32 %v470, %v644
    %v650 = vadd.f32 %v649, %v558
    %652 = vrot.lane.b32.xlu0 %v649, 32
    %v653 = vpop.permute.xlu0 %652
    %v655 = vmax.f32 %v650, %v653
    %657 = vrot.lane.b32.xlu0 %v655, 96
    %v658 = vpop.permute.xlu0 %657
    %v660 = vsub.f32 %v649, %v658
    %v661 = vsub.f32 %v650, %v655
    %v662 = vmul.f32 %v649, -2.0
    %v663 = vsub.f32 0.0, %v649
    %v664 = vsel %vm408, %v660, %v661
    %v665 = vsel %vm568, %v664, %v662
    %v666 = vsel %vm570, %v665, %v663
    %v667 = vmul.f32 %v666, 1.442695
    %v668 = vpow.pop %v667
    %v669 = vadd.f32 %v668, 1.0
    %v670 = vrcp.pop %v669
    %v671 = vmul.f32 %v670, 2.0
    %v672 = vsub.f32 %v671, 1.0
    %v673 = vmul.f32 %v668, %v588
    %675 = vrot.lane.b32.xlu0 %v672, 64
    %v676 = vpop.permute.xlu0 %675
    %v678 = vmul.f32 %v668, %v676
    %680 = vrot.lane.b32.xlu0 %v678, 32
    %v681 = vpop.permute.xlu0 %680
    %v683 = vadd.f32 %v673, %v681
    %v684 = vmul.f32 %v668, %v593
    %686 = vrot.lane.b32.xlu0 %v668, 32
    %v687 = vpop.permute.xlu0 %686
    %v689 = vadd.f32 %v684, %v687
    %v690 = vmax.f32 %v689, 1e-06
    %v691 = vrcp.pop %v690
    %v692 = vmul.f32 %v683, %v691
    %694 = vrot.lane.b32.xlu0 %v692, 64
    %v695 = vpop.permute.xlu0 %694
    %v697 = vmul.f32 %v670, %v695
    %v698 = vpack.c.bf16 %v697, %v697
    %700 = vrot.lane.b32.xlu0 %v698, 32
    %v701 = vpop.permute.xlu0 %700
    %v703 = vsel %vm408, %v701, 0
    %705 = vmatprep.subr.bf16.mxu0 0
    %706 = vmatpush1.bf16.msra.mxu0 %v505
    %707 = vmatprep.subr.bf16.mxu0 0
    %708 = vmatpush1.bf16.msra.mxu0 %v506
    %709 = vmatprep.subr.bf16.mxu0 0
    %710 = vmatpush1.bf16.msra.mxu0 0
    %711 = vmatprep.subr.bf16.mxu0 0
    %712 = vmatpush1.bf16.msra.mxu0 0
    %713 = vmatprep.subr.bf16.mxu0 0
    %714 = vmatpush1.bf16.msra.mxu0 0
    %715 = vmatprep.subr.bf16.mxu0 0
    %716 = vmatpush1.bf16.msra.mxu0 0
    %717 = vmatprep.subr.bf16.mxu0 0
    %718 = vmatpush1.bf16.msra.mxu0 0
    %719 = vmatprep.subr.bf16.mxu0 0
    %720 = vmatpush1.bf16.msra.mxu0 0
    %721 = vmatprep.subr.bf16.mxu0 0
    %722 = vmatpush1.bf16.msra.mxu0 0
    %723 = vmatprep.subr.bf16.mxu0 0
    %724 = vmatpush1.bf16.msra.mxu0 0
    %725 = vmatprep.subr.bf16.mxu0 0
    %726 = vmatpush1.bf16.msra.mxu0 0
    %727 = vmatprep.subr.bf16.mxu0 0
    %728 = vmatpush1.bf16.msra.mxu0 0
    %729 = vmatprep.subr.bf16.mxu0 0
    %730 = vmatpush1.bf16.msra.mxu0 0
    %731 = vmatprep.subr.bf16.mxu0 0
    %732 = vmatpush1.bf16.msra.mxu0 0
    %733 = vmatprep.subr.bf16.mxu0 0
    %734 = vmatpush1.bf16.msra.mxu0 0
    %735 = vmatprep.subr.bf16.mxu0 0
    %736 = vmatpush1.bf16.msra.mxu0 0
    %737 = vmatprep.mubr.bf16.mxu0 0
    %738 = vmatmul.mubr.bf16.gmra.mrb[0].mxu0 %v703
    %v739 = vpop.f32.mrb[0].mxu0
    %v740 = vadd.f32 0.0, %v739
    %v741 = vpop.f32.mrb[0].mxu0
    %v742 = vpop.f32.mrb[0].mxu0
    %v743 = vpop.f32.mrb[0].mxu0
    %744 = vdwg.mxu0
    %v745 = vadd.f32 %v469, %v740
    %v746 = vadd.f32 %v745, %v655
    %748 = vrot.lane.b32.xlu0 %v745, 32
    %v749 = vpop.permute.xlu0 %748
    %v751 = vmax.f32 %v746, %v749
    %753 = vrot.lane.b32.xlu0 %v751, 96
    %v754 = vpop.permute.xlu0 %753
    %v756 = vsub.f32 %v745, %v754
    %v757 = vsub.f32 %v746, %v751
    %v758 = vmul.f32 %v745, -2.0
    %v759 = vsub.f32 0.0, %v745
    %v760 = vsel %vm408, %v756, %v757
    %v761 = vsel %vm568, %v760, %v758
    %v762 = vsel %vm570, %v761, %v759
    %v763 = vmul.f32 %v762, 1.442695
    %v764 = vpow.pop %v763
    %v765 = vadd.f32 %v764, 1.0
    %v766 = vrcp.pop %v765
    %v767 = vmul.f32 %v766, 2.0
    %v768 = vsub.f32 %v767, 1.0
    %v769 = vmul.f32 %v764, %v683
    %771 = vrot.lane.b32.xlu0 %v768, 64
    %v772 = vpop.permute.xlu0 %771
    %v774 = vmul.f32 %v764, %v772
    %776 = vrot.lane.b32.xlu0 %v774, 32
    %v777 = vpop.permute.xlu0 %776
    %v779 = vadd.f32 %v769, %v777
    %v780 = vmul.f32 %v764, %v689
    %782 = vrot.lane.b32.xlu0 %v764, 32
    %v783 = vpop.permute.xlu0 %782
    %v785 = vadd.f32 %v780, %v783
    %v786 = vmax.f32 %v785, 1e-06
    %v787 = vrcp.pop %v786
    %v788 = vmul.f32 %v779, %v787
    %790 = vrot.lane.b32.xlu0 %v788, 64
    %v791 = vpop.permute.xlu0 %790
    %v793 = vmul.f32 %v766, %v791
    %v794 = vpack.c.bf16 %v793, %v793
    %796 = vrot.lane.b32.xlu0 %v794, 32
    %v797 = vpop.permute.xlu0 %796
    %v799 = vsel %vm408, %v797, 0
    %801 = vmatprep.subr.bf16.mxu0 0
    %802 = vmatpush1.bf16.msra.mxu0 %v505
    %803 = vmatprep.subr.bf16.mxu0 0
    %804 = vmatpush1.bf16.msra.mxu0 %v506
    %805 = vmatprep.subr.bf16.mxu0 0
    %806 = vmatpush1.bf16.msra.mxu0 0
    %807 = vmatprep.subr.bf16.mxu0 0
    %808 = vmatpush1.bf16.msra.mxu0 0
    %809 = vmatprep.subr.bf16.mxu0 0
    %810 = vmatpush1.bf16.msra.mxu0 0
    %811 = vmatprep.subr.bf16.mxu0 0
    %812 = vmatpush1.bf16.msra.mxu0 0
    %813 = vmatprep.subr.bf16.mxu0 0
    %814 = vmatpush1.bf16.msra.mxu0 0
    %815 = vmatprep.subr.bf16.mxu0 0
    %816 = vmatpush1.bf16.msra.mxu0 0
    %817 = vmatprep.subr.bf16.mxu0 0
    %818 = vmatpush1.bf16.msra.mxu0 0
    %819 = vmatprep.subr.bf16.mxu0 0
    %820 = vmatpush1.bf16.msra.mxu0 0
    %821 = vmatprep.subr.bf16.mxu0 0
    %822 = vmatpush1.bf16.msra.mxu0 0
    %823 = vmatprep.subr.bf16.mxu0 0
    %824 = vmatpush1.bf16.msra.mxu0 0
    %825 = vmatprep.subr.bf16.mxu0 0
    %826 = vmatpush1.bf16.msra.mxu0 0
    %827 = vmatprep.subr.bf16.mxu0 0
    %828 = vmatpush1.bf16.msra.mxu0 0
    %829 = vmatprep.subr.bf16.mxu0 0
    %830 = vmatpush1.bf16.msra.mxu0 0
    %831 = vmatprep.subr.bf16.mxu0 0
    %832 = vmatpush1.bf16.msra.mxu0 0
    %833 = vmatprep.mubr.bf16.mxu0 0
    %834 = vmatmul.mubr.bf16.gmra.mrb[0].mxu0 %v799
    %v835 = vpop.f32.mrb[0].mxu0
    %v836 = vadd.f32 0.0, %v835
    %v837 = vpop.f32.mrb[0].mxu0
    %v838 = vpop.f32.mrb[0].mxu0
    %v839 = vpop.f32.mrb[0].mxu0
    %840 = vdwg.mxu0
    %v841 = vadd.f32 %v471, %v836
    %v842 = vadd.f32 %v841, %v751
    %844 = vrot.lane.b32.xlu0 %v841, 32
    %v845 = vpop.permute.xlu0 %844
    %v847 = vmax.f32 %v842, %v845
    %849 = vrot.lane.b32.xlu0 %v847, 96
    %v850 = vpop.permute.xlu0 %849
    %v852 = vsub.f32 %v841, %v850
    %v853 = vsub.f32 %v842, %v847
    %v854 = vmul.f32 %v841, -2.0
    %v855 = vsub.f32 0.0, %v841
    %v856 = vsel %vm408, %v852, %v853
    %v857 = vsel %vm568, %v856, %v854
    %v858 = vsel %vm570, %v857, %v855
    %v859 = vmul.f32 %v858, 1.442695
    %v860 = vpow.pop %v859
    %v861 = vadd.f32 %v860, 1.0
    %v862 = vrcp.pop %v861
    %v863 = vmul.f32 %v862, 2.0
    %v864 = vsub.f32 %v863, 1.0
    %v865 = vmul.f32 %v860, %v779
    %867 = vrot.lane.b32.xlu0 %v864, 64
    %v868 = vpop.permute.xlu0 %867
    %v870 = vmul.f32 %v860, %v868
    %872 = vrot.lane.b32.xlu0 %v870, 32
    %v873 = vpop.permute.xlu0 %872
    %v875 = vadd.f32 %v865, %v873
    %v876 = vmul.f32 %v860, %v785
    %878 = vrot.lane.b32.xlu0 %v860, 32
    %v879 = vpop.permute.xlu0 %878
    %v881 = vadd.f32 %v876, %v879
    %v882 = vmax.f32 %v881, 1e-06
    %v883 = vrcp.pop %v882
    %v884 = vmul.f32 %v875, %v883
    %886 = vrot.lane.b32.xlu0 %v884, 64
    %v887 = vpop.permute.xlu0 %886
    %v889 = vmul.f32 %v862, %v887
    %v890 = vpack.c.bf16 %v889, %v889
    %892 = vrot.lane.b32.xlu0 %v890, 32
    %v893 = vpop.permute.xlu0 %892
    %v895 = vsel %vm408, %v893, 0
    %897 = vmatprep.subr.bf16.mxu0 0
    %898 = vmatpush1.bf16.msra.mxu0 %v505
    %899 = vmatprep.subr.bf16.mxu0 0
    %900 = vmatpush1.bf16.msra.mxu0 %v506
    %901 = vmatprep.subr.bf16.mxu0 0
    %902 = vmatpush1.bf16.msra.mxu0 0
    %903 = vmatprep.subr.bf16.mxu0 0
    %904 = vmatpush1.bf16.msra.mxu0 0
    %905 = vmatprep.subr.bf16.mxu0 0
    %906 = vmatpush1.bf16.msra.mxu0 0
    %907 = vmatprep.subr.bf16.mxu0 0
    %908 = vmatpush1.bf16.msra.mxu0 0
    %909 = vmatprep.subr.bf16.mxu0 0
    %910 = vmatpush1.bf16.msra.mxu0 0
    %911 = vmatprep.subr.bf16.mxu0 0
    %912 = vmatpush1.bf16.msra.mxu0 0
    %913 = vmatprep.subr.bf16.mxu0 0
    %914 = vmatpush1.bf16.msra.mxu0 0
    %915 = vmatprep.subr.bf16.mxu0 0
    %916 = vmatpush1.bf16.msra.mxu0 0
    %917 = vmatprep.subr.bf16.mxu0 0
    %918 = vmatpush1.bf16.msra.mxu0 0
    %919 = vmatprep.subr.bf16.mxu0 0
    %920 = vmatpush1.bf16.msra.mxu0 0
    %921 = vmatprep.subr.bf16.mxu0 0
    %922 = vmatpush1.bf16.msra.mxu0 0
    %923 = vmatprep.subr.bf16.mxu0 0
    %924 = vmatpush1.bf16.msra.mxu0 0
    %925 = vmatprep.subr.bf16.mxu0 0
    %926 = vmatpush1.bf16.msra.mxu0 0
    %927 = vmatprep.subr.bf16.mxu0 0
    %928 = vmatpush1.bf16.msra.mxu0 0
    %929 = vmatprep.mubr.bf16.mxu0 0
    %930 = vmatmul.mubr.bf16.gmra.mrb[0].mxu0 %v895
    %v931 = vpop.f32.mrb[0].mxu0
    %v932 = vadd.f32 0.0, %v931
    %v933 = vpop.f32.mrb[0].mxu0
    %v934 = vpop.f32.mrb[0].mxu0
    %v935 = vpop.f32.mrb[0].mxu0
    %936 = vdwg.mxu0
    %v937 = vadd.f32 %v479, %v932
    %v938 = vadd.f32 %v937, %v847
    %940 = vrot.lane.b32.xlu0 %v937, 32
    %v941 = vpop.permute.xlu0 %940
    %v943 = vmax.f32 %v938, %v941
    %945 = vrot.lane.b32.xlu0 %v943, 96
    %v946 = vpop.permute.xlu0 %945
    %v948 = vsub.f32 %v937, %v946
    %v949 = vsub.f32 %v938, %v943
    %v950 = vmul.f32 %v937, -2.0
    %v951 = vsub.f32 0.0, %v937
    %v952 = vsel %vm408, %v948, %v949
    %v953 = vsel %vm568, %v952, %v950
    %v954 = vsel %vm570, %v953, %v951
    %v955 = vmul.f32 %v954, 1.442695
    %v956 = vpow.pop %v955
    %v957 = vadd.f32 %v956, 1.0
    %v958 = vrcp.pop %v957
    %v959 = vmul.f32 %v958, 2.0
    %v960 = vsub.f32 %v959, 1.0
    %v961 = vmul.f32 %v956, %v875
    %963 = vrot.lane.b32.xlu0 %v960, 64
    %v964 = vpop.permute.xlu0 %963
    %v966 = vmul.f32 %v956, %v964
    %968 = vrot.lane.b32.xlu0 %v966, 32
    %v969 = vpop.permute.xlu0 %968
    %v971 = vadd.f32 %v961, %v969
    %v972 = vmul.f32 %v956, %v881
    %974 = vrot.lane.b32.xlu0 %v956, 32
    %v975 = vpop.permute.xlu0 %974
    %v977 = vadd.f32 %v972, %v975
    %v978 = vmax.f32 %v977, 1e-06
    %v979 = vrcp.pop %v978
    %v980 = vmul.f32 %v971, %v979
    %982 = vrot.lane.b32.xlu0 %v980, 64
    %v983 = vpop.permute.xlu0 %982
    %v985 = vmul.f32 %v958, %v983
    %v986 = vpack.c.bf16 %v985, %v985
    %988 = vrot.lane.b32.xlu0 %v986, 32
    %v989 = vpop.permute.xlu0 %988
    %v991 = vsel %vm408, %v989, 0
    %993 = vmatprep.subr.bf16.mxu0 0
    %994 = vmatpush1.bf16.msra.mxu0 %v505
    %995 = vmatprep.subr.bf16.mxu0 0
    %996 = vmatpush1.bf16.msra.mxu0 %v506
    %997 = vmatprep.subr.bf16.mxu0 0
    %998 = vmatpush1.bf16.msra.mxu0 0
    %999 = vmatprep.subr.bf16.mxu0 0
    %1000 = vmatpush1.bf16.msra.mxu0 0
    %1001 = vmatprep.subr.bf16.mxu0 0
    %1002 = vmatpush1.bf16.msra.mxu0 0
    %1003 = vmatprep.subr.bf16.mxu0 0
    %1004 = vmatpush1.bf16.msra.mxu0 0
    %1005 = vmatprep.subr.bf16.mxu0 0
    %1006 = vmatpush1.bf16.msra.mxu0 0
    %1007 = vmatprep.subr.bf16.mxu0 0
    %1008 = vmatpush1.bf16.msra.mxu0 0
    %1009 = vmatprep.subr.bf16.mxu0 0
    %1010 = vmatpush1.bf16.msra.mxu0 0
    %1011 = vmatprep.subr.bf16.mxu0 0
    %1012 = vmatpush1.bf16.msra.mxu0 0
    %1013 = vmatprep.subr.bf16.mxu0 0
    %1014 = vmatpush1.bf16.msra.mxu0 0
    %1015 = vmatprep.subr.bf16.mxu0 0
    %1016 = vmatpush1.bf16.msra.mxu0 0
    %1017 = vmatprep.subr.bf16.mxu0 0
    %1018 = vmatpush1.bf16.msra.mxu0 0
    %1019 = vmatprep.subr.bf16.mxu0 0
    %1020 = vmatpush1.bf16.msra.mxu0 0
    %1021 = vmatprep.subr.bf16.mxu0 0
    %1022 = vmatpush1.bf16.msra.mxu0 0
    %1023 = vmatprep.subr.bf16.mxu0 0
    %1024 = vmatpush1.bf16.msra.mxu0 0
    %1025 = vmatprep.mubr.bf16.mxu0 0
    %1026 = vmatmul.mubr.bf16.gmra.mrb[0].mxu0 %v991
    %v1027 = vpop.f32.mrb[0].mxu0
    %v1028 = vadd.f32 0.0, %v1027
    %v1029 = vpop.f32.mrb[0].mxu0
    %v1030 = vpop.f32.mrb[0].mxu0
    %v1031 = vpop.f32.mrb[0].mxu0
    %1032 = vdwg.mxu0
    %v1033 = vadd.f32 %v487, %v1028
    %v1034 = vadd.f32 %v1033, %v943
    %1036 = vrot.lane.b32.xlu0 %v1033, 32
    %v1037 = vpop.permute.xlu0 %1036
    %v1039 = vmax.f32 %v1034, %v1037
    %1041 = vrot.lane.b32.xlu0 %v1039, 96
    %v1042 = vpop.permute.xlu0 %1041
    %v1044 = vsub.f32 %v1033, %v1042
    %v1045 = vsub.f32 %v1034, %v1039
    %v1046 = vmul.f32 %v1033, -2.0
    %v1047 = vsub.f32 0.0, %v1033
    %v1048 = vsel %vm408, %v1044, %v1045
    %v1049 = vsel %vm568, %v1048, %v1046
    %v1050 = vsel %vm570, %v1049, %v1047
    %v1051 = vmul.f32 %v1050, 1.442695
    %v1052 = vpow.pop %v1051
    %v1053 = vadd.f32 %v1052, 1.0
    %v1054 = vrcp.pop %v1053
    %v1055 = vmul.f32 %v1054, 2.0
    %v1056 = vsub.f32 %v1055, 1.0
    %v1057 = vmul.f32 %v1052, %v971
    %1059 = vrot.lane.b32.xlu0 %v1056, 64
    %v1060 = vpop.permute.xlu0 %1059
    %v1062 = vmul.f32 %v1052, %v1060
    %1064 = vrot.lane.b32.xlu0 %v1062, 32
    %v1065 = vpop.permute.xlu0 %1064
    %v1067 = vadd.f32 %v1057, %v1065
    %v1068 = vmul.f32 %v1052, %v977
    %1070 = vrot.lane.b32.xlu0 %v1052, 32
    %v1071 = vpop.permute.xlu0 %1070
    %v1073 = vadd.f32 %v1068, %v1071
    %v1074 = vmax.f32 %v1073, 1e-06
    %v1075 = vrcp.pop %v1074
    %v1076 = vmul.f32 %v1067, %v1075
    %1078 = vrot.lane.b32.xlu0 %v1076, 64
    %v1079 = vpop.permute.xlu0 %1078
    %v1081 = vmul.f32 %v1054, %v1079
    %v1082 = vpack.c.bf16 %v1081, %v1081
    %1084 = vrot.lane.b32.xlu0 %v1082, 32
    %v1085 = vpop.permute.xlu0 %1084
    %v1087 = vsel %vm408, %v1085, 0
    %1089 = vmatprep.subr.bf16.mxu0 0
    %1090 = vmatpush1.bf16.msra.mxu0 %v505
    %1091 = vmatprep.subr.bf16.mxu0 0
    %1092 = vmatpush1.bf16.msra.mxu0 %v506
    %1093 = vmatprep.subr.bf16.mxu0 0
    %1094 = vmatpush1.bf16.msra.mxu0 0
    %1095 = vmatprep.subr.bf16.mxu0 0
    %1096 = vmatpush1.bf16.msra.mxu0 0
    %1097 = vmatprep.subr.bf16.mxu0 0
    %1098 = vmatpush1.bf16.msra.mxu0 0
    %1099 = vmatprep.subr.bf16.mxu0 0
    %1100 = vmatpush1.bf16.msra.mxu0 0
    %1101 = vmatprep.subr.bf16.mxu0 0
    %1102 = vmatpush1.bf16.msra.mxu0 0
    %1103 = vmatprep.subr.bf16.mxu0 0
    %1104 = vmatpush1.bf16.msra.mxu0 0
    %1105 = vmatprep.subr.bf16.mxu0 0
    %1106 = vmatpush1.bf16.msra.mxu0 0
    %1107 = vmatprep.subr.bf16.mxu0 0
    %1108 = vmatpush1.bf16.msra.mxu0 0
    %1109 = vmatprep.subr.bf16.mxu0 0
    %1110 = vmatpush1.bf16.msra.mxu0 0
    %1111 = vmatprep.subr.bf16.mxu0 0
    %1112 = vmatpush1.bf16.msra.mxu0 0
    %1113 = vmatprep.subr.bf16.mxu0 0
    %1114 = vmatpush1.bf16.msra.mxu0 0
    %1115 = vmatprep.subr.bf16.mxu0 0
    %1116 = vmatpush1.bf16.msra.mxu0 0
    %1117 = vmatprep.subr.bf16.mxu0 0
    %1118 = vmatpush1.bf16.msra.mxu0 0
    %1119 = vmatprep.subr.bf16.mxu0 0
    %1120 = vmatpush1.bf16.msra.mxu0 0
    %1121 = vmatprep.mubr.bf16.mxu0 0
    %1122 = vmatmul.mubr.bf16.gmra.mrb[0].mxu0 %v1087
    %v1123 = vpop.f32.mrb[0].mxu0
    %v1124 = vadd.f32 0.0, %v1123
    %v1125 = vpop.f32.mrb[0].mxu0
    %v1126 = vpop.f32.mrb[0].mxu0
    %v1127 = vpop.f32.mrb[0].mxu0
    %1128 = vdwg.mxu0
    %v1129 = vadd.f32 %v486, %v1124
    %v1130 = vadd.f32 %v1129, %v1039
    %1132 = vrot.lane.b32.xlu0 %v1129, 32
    %v1133 = vpop.permute.xlu0 %1132
    %v1135 = vmax.f32 %v1130, %v1133
    %1137 = vrot.lane.b32.xlu0 %v1135, 96
    %v1138 = vpop.permute.xlu0 %1137
    %v1140 = vsub.f32 %v1129, %v1138
    %v1141 = vsub.f32 %v1130, %v1135
    %v1142 = vmul.f32 %v1129, -2.0
    %v1143 = vsub.f32 0.0, %v1129
    %v1144 = vsel %vm408, %v1140, %v1141
    %v1145 = vsel %vm568, %v1144, %v1142
    %v1146 = vsel %vm570, %v1145, %v1143
    %v1147 = vmul.f32 %v1146, 1.442695
    %v1148 = vpow.pop %v1147
    %v1149 = vadd.f32 %v1148, 1.0
    %v1150 = vrcp.pop %v1149
    %v1151 = vmul.f32 %v1150, 2.0
    %v1152 = vsub.f32 %v1151, 1.0
    %v1153 = vmul.f32 %v1148, %v1067
    %1155 = vrot.lane.b32.xlu0 %v1152, 64
    %v1156 = vpop.permute.xlu0 %1155
    %v1158 = vmul.f32 %v1148, %v1156
    %1160 = vrot.lane.b32.xlu0 %v1158, 32
    %v1161 = vpop.permute.xlu0 %1160
    %v1163 = vadd.f32 %v1153, %v1161
    %v1164 = vmul.f32 %v1148, %v1073
    %1166 = vrot.lane.b32.xlu0 %v1148, 32
    %v1167 = vpop.permute.xlu0 %1166
    %v1169 = vadd.f32 %v1164, %v1167
    %v1170 = vmax.f32 %v1169, 1e-06
    %v1171 = vrcp.pop %v1170
    %v1172 = vmul.f32 %v1163, %v1171
    %1174 = vrot.lane.b32.xlu0 %v1172, 64
    %v1175 = vpop.permute.xlu0 %1174
    %v1177 = vmul.f32 %v1150, %v1175
    %v1178 = vpack.c.bf16 %v1177, %v1177
    %1180 = vrot.lane.b32.xlu0 %v1178, 32
    %v1181 = vpop.permute.xlu0 %1180
    %v1183 = vsel %vm408, %v1181, 0
    %1185 = vmatprep.subr.bf16.mxu0 0
    %1186 = vmatpush1.bf16.msra.mxu0 %v505
    %1187 = vmatprep.subr.bf16.mxu0 0
    %1188 = vmatpush1.bf16.msra.mxu0 %v506
    %1189 = vmatprep.subr.bf16.mxu0 0
    %1190 = vmatpush1.bf16.msra.mxu0 0
    %1191 = vmatprep.subr.bf16.mxu0 0
    %1192 = vmatpush1.bf16.msra.mxu0 0
    %1193 = vmatprep.subr.bf16.mxu0 0
    %1194 = vmatpush1.bf16.msra.mxu0 0
    %1195 = vmatprep.subr.bf16.mxu0 0
    %1196 = vmatpush1.bf16.msra.mxu0 0
    %1197 = vmatprep.subr.bf16.mxu0 0
    %1198 = vmatpush1.bf16.msra.mxu0 0
    %1199 = vmatprep.subr.bf16.mxu0 0
    %1200 = vmatpush1.bf16.msra.mxu0 0
    %1201 = vmatprep.subr.bf16.mxu0 0
    %1202 = vmatpush1.bf16.msra.mxu0 0
    %1203 = vmatprep.subr.bf16.mxu0 0
    %1204 = vmatpush1.bf16.msra.mxu0 0
    %1205 = vmatprep.subr.bf16.mxu0 0
    %1206 = vmatpush1.bf16.msra.mxu0 0
    %1207 = vmatprep.subr.bf16.mxu0 0
    %1208 = vmatpush1.bf16.msra.mxu0 0
    %1209 = vmatprep.subr.bf16.mxu0 0
    %1210 = vmatpush1.bf16.msra.mxu0 0
    %1211 = vmatprep.subr.bf16.mxu0 0
    %1212 = vmatpush1.bf16.msra.mxu0 0
    %1213 = vmatprep.subr.bf16.mxu0 0
    %1214 = vmatpush1.bf16.msra.mxu0 0
    %1215 = vmatprep.subr.bf16.mxu0 0
    %1216 = vmatpush1.bf16.msra.mxu0 0
    %1217 = vmatprep.mubr.bf16.mxu0 0
    %1218 = vmatmul.mubr.bf16.gmra.mrb[0].mxu0 %v1183
    %v1219 = vpop.f32.mrb[0].mxu0
    %v1220 = vadd.f32 0.0, %v1219
    %v1221 = vpop.f32.mrb[0].mxu0
    %v1222 = vpop.f32.mrb[0].mxu0
    %v1223 = vpop.f32.mrb[0].mxu0
    %1224 = vdwg.mxu0
    %v1225 = vadd.f32 %v488, %v1220
    %v1226 = vadd.f32 %v1225, %v1135
    %1228 = vrot.lane.b32.xlu0 %v1225, 32
    %v1229 = vpop.permute.xlu0 %1228
    %v1231 = vmax.f32 %v1226, %v1229
    %1233 = vrot.lane.b32.xlu0 %v1231, 96
    %v1234 = vpop.permute.xlu0 %1233
    %v1236 = vsub.f32 %v1225, %v1234
    %v1237 = vsub.f32 %v1226, %v1231
    %v1238 = vmul.f32 %v1225, -2.0
    %v1239 = vsub.f32 0.0, %v1225
    %v1240 = vsel %vm408, %v1236, %v1237
    %v1241 = vsel %vm568, %v1240, %v1238
    %v1242 = vsel %vm570, %v1241, %v1239
    %v1243 = vmul.f32 %v1242, 1.442695
    %v1244 = vpow.pop %v1243
    %v1245 = vadd.f32 %v1244, 1.0
    %v1246 = vrcp.pop %v1245
    %v1247 = vmul.f32 %v1246, 2.0
    %v1248 = vsub.f32 %v1247, 1.0
    %v1249 = vmul.f32 %v1244, %v1163
    %1251 = vrot.lane.b32.xlu0 %v1248, 64
    %v1252 = vpop.permute.xlu0 %1251
    %v1254 = vmul.f32 %v1244, %v1252
    %1256 = vrot.lane.b32.xlu0 %v1254, 32
    %v1257 = vpop.permute.xlu0 %1256
    %v1259 = vadd.f32 %v1249, %v1257
    %v1260 = vmul.f32 %v1244, %v1169
    %1262 = vrot.lane.b32.xlu0 %v1244, 32
    %v1263 = vpop.permute.xlu0 %1262
    %v1265 = vadd.f32 %v1260, %v1263
    %v1266 = vmax.f32 %v1265, 1e-06
    %v1267 = vrcp.pop %v1266
    %v1268 = vmul.f32 %v1259, %v1267
    %1270 = vrot.lane.b32.xlu0 %v1268, 64
    %v1271 = vpop.permute.xlu0 %1270
    %v1273 = vmul.f32 %v1246, %v1271
    %1282 = vrot.lane.b32.xlu0 %v601, 32
    %v1283 = vpop.permute.xlu0 %1282
    %1284 = vrot.lane.b32.xlu0 %v697, 32
    %v1285 = vpop.permute.xlu0 %1284
    %1286 = vrot.lane.b32.xlu0 %v793, 32
    %v1287 = vpop.permute.xlu0 %1286
    %1288 = vrot.lane.b32.xlu0 %v889, 32
    %v1289 = vpop.permute.xlu0 %1288
    %1290 = vrot.lane.b32.xlu0 %v985, 32
    %v1291 = vpop.permute.xlu0 %1290
    %1292 = vrot.lane.b32.xlu0 %v1081, 32
    %v1293 = vpop.permute.xlu0 %1292
    %1294 = vrot.lane.b32.xlu0 %v1177, 32
    %v1295 = vpop.permute.xlu0 %1294
    %1296 = vrot.lane.b32.xlu0 %v1273, 32
    %v1297 = vpop.permute.xlu0 %1296
    %v1306 = vadd.f32 %v201, %v1283
    %v1307 = vadd.f32 %v202, %v1285
    %v1308 = vadd.f32 %v203, %v1287
    %v1309 = vadd.f32 %v204, %v1289
    %v1310 = vadd.f32 %v205, %v1291
    %v1311 = vadd.f32 %v206, %v1293
    %v1312 = vadd.f32 %v207, %v1295
    %v1313 = vadd.f32 %v208, %v1297
    %v1314 = vsel %vm209, %v1306, 0.0
    %1315 = vadd.xlane.f32.xlu0 %v1314
    %v1316 = vpop.xlane.xlu0 %1315
    %v1317 = vsel %vm209, %v1307, 0.0
    %1318 = vadd.xlane.f32.xlu0 %v1317
    %v1319 = vpop.xlane.xlu0 %1318
    %v1320 = vsel %vm209, %v1308, 0.0
    %1321 = vadd.xlane.f32.xlu0 %v1320
    %v1322 = vpop.xlane.xlu0 %1321
    %v1323 = vsel %vm209, %v1309, 0.0
    %1324 = vadd.xlane.f32.xlu0 %v1323
    %v1325 = vpop.xlane.xlu0 %1324
    %v1326 = vsel %vm209, %v1310, 0.0
    %1327 = vadd.xlane.f32.xlu0 %v1326
    %v1328 = vpop.xlane.xlu0 %1327
    %v1329 = vsel %vm209, %v1311, 0.0
    %1330 = vadd.xlane.f32.xlu0 %v1329
    %v1331 = vpop.xlane.xlu0 %1330
    %v1332 = vsel %vm209, %v1312, 0.0
    %1333 = vadd.xlane.f32.xlu0 %v1332
    %v1334 = vpop.xlane.xlu0 %1333
    %v1335 = vsel %vm209, %v1313, 0.0
    %1336 = vadd.xlane.f32.xlu0 %v1335
    %v1337 = vpop.xlane.xlu0 %1336
    %v1338 = vmul.f32 %v1316, %v234
    %v1339 = vmul.f32 %v1319, %v234
    %v1340 = vmul.f32 %v1322, %v234
    %v1341 = vmul.f32 %v1325, %v234
    %v1342 = vmul.f32 %v1328, %v234
    %v1343 = vmul.f32 %v1331, %v234
    %v1344 = vmul.f32 %v1334, %v234
    %v1345 = vmul.f32 %v1337, %v234
    %v1346 = vsub.f32 %v1306, %v1338
    %v1347 = vsub.f32 %v1307, %v1339
    %v1348 = vsub.f32 %v1308, %v1340
    %v1349 = vsub.f32 %v1309, %v1341
    %v1350 = vsub.f32 %v1310, %v1342
    %v1351 = vsub.f32 %v1311, %v1343
    %v1352 = vsub.f32 %v1312, %v1344
    %v1353 = vsub.f32 %v1313, %v1345
    %v1354 = vmul.f32 %v1346, %v1346
    %v1355 = vmul.f32 %v1347, %v1347
    %v1356 = vmul.f32 %v1348, %v1348
    %v1357 = vmul.f32 %v1349, %v1349
    %v1358 = vmul.f32 %v1350, %v1350
    %v1359 = vmul.f32 %v1351, %v1351
    %v1360 = vmul.f32 %v1352, %v1352
    %v1361 = vmul.f32 %v1353, %v1353
    %v1362 = vsel %vm209, %v1354, 0.0
    %1363 = vadd.xlane.f32.xlu0 %v1362
    %v1364 = vpop.xlane.xlu0 %1363
    %v1365 = vsel %vm209, %v1355, 0.0
    %1366 = vadd.xlane.f32.xlu0 %v1365
    %v1367 = vpop.xlane.xlu0 %1366
    %v1368 = vsel %vm209, %v1356, 0.0
    %1369 = vadd.xlane.f32.xlu0 %v1368
    %v1370 = vpop.xlane.xlu0 %1369
    %v1371 = vsel %vm209, %v1357, 0.0
    %1372 = vadd.xlane.f32.xlu0 %v1371
    %v1373 = vpop.xlane.xlu0 %1372
    %v1374 = vsel %vm209, %v1358, 0.0
    %1375 = vadd.xlane.f32.xlu0 %v1374
    %v1376 = vpop.xlane.xlu0 %1375
    %v1377 = vsel %vm209, %v1359, 0.0
    %1378 = vadd.xlane.f32.xlu0 %v1377
    %v1379 = vpop.xlane.xlu0 %1378
    %v1380 = vsel %vm209, %v1360, 0.0
    %1381 = vadd.xlane.f32.xlu0 %v1380
    %v1382 = vpop.xlane.xlu0 %1381
    %v1383 = vsel %vm209, %v1361, 0.0
    %1384 = vadd.xlane.f32.xlu0 %v1383
    %v1385 = vpop.xlane.xlu0 %1384
    %v1386 = vmul.f32 %v1364, %v234
    %v1387 = vmul.f32 %v1367, %v234
    %v1388 = vmul.f32 %v1370, %v234
    %v1389 = vmul.f32 %v1373, %v234
    %v1390 = vmul.f32 %v1376, %v234
    %v1391 = vmul.f32 %v1379, %v234
    %v1392 = vmul.f32 %v1382, %v234
    %v1393 = vmul.f32 %v1385, %v234
    %v1394 = vadd.f32 %v1386, 1e-05
    %v1395 = vadd.f32 %v1387, 1e-05
    %v1396 = vadd.f32 %v1388, 1e-05
    %v1397 = vadd.f32 %v1389, 1e-05
    %v1398 = vadd.f32 %v1390, 1e-05
    %v1399 = vadd.f32 %v1391, 1e-05
    %v1400 = vadd.f32 %v1392, 1e-05
    %v1401 = vadd.f32 %v1393, 1e-05
    %v1402 = vrsqrt.pop %v1394
    %v1403 = vrsqrt.pop %v1395
    %v1404 = vrsqrt.pop %v1396
    %v1405 = vrsqrt.pop %v1397
    %v1406 = vrsqrt.pop %v1398
    %v1407 = vrsqrt.pop %v1399
    %v1408 = vrsqrt.pop %v1400
    %v1409 = vrsqrt.pop %v1401
    %v1410 = vmul.f32 %v1346, %v1402
    %v1411 = vmul.f32 %v1347, %v1403
    %v1412 = vmul.f32 %v1348, %v1404
    %v1413 = vmul.f32 %v1349, %v1405
    %v1414 = vmul.f32 %v1350, %v1406
    %v1415 = vmul.f32 %v1351, %v1407
    %v1416 = vmul.f32 %v1352, %v1408
    %v1417 = vmul.f32 %v1353, %v1409
    %v1418 = vlaneseq
    %v1419 = vshrl.u32 %v1418, 7
    %v1420 = vsub.s32 7, %v1419
    %v1421 = vrot.slane %v49, %v1420
    %v1422 = vmul.f32 %v1410, %v1421
    %v1423 = vmul.f32 %v1411, %v1421
    %v1424 = vmul.f32 %v1412, %v1421
    %v1425 = vmul.f32 %v1413, %v1421
    %v1426 = vmul.f32 %v1414, %v1421
    %v1427 = vmul.f32 %v1415, %v1421
    %v1428 = vmul.f32 %v1416, %v1421
    %v1429 = vmul.f32 %v1417, %v1421
    %v1430 = vlaneseq
    %v1431 = vshrl.u32 %v1430, 7
    %v1432 = vsub.s32 1, %v1431
    %v1433 = vrot.slane %v50, %v1432
    %v1434 = vadd.f32 %v1422, %v1433
    %v1435 = vadd.f32 %v1423, %v1433
    %v1436 = vadd.f32 %v1424, %v1433
    %v1437 = vadd.f32 %v1425, %v1433
    %v1438 = vadd.f32 %v1426, %v1433
    %v1439 = vadd.f32 %v1427, %v1433
    %v1440 = vadd.f32 %v1428, %v1433
    %v1441 = vadd.f32 %v1429, %v1433
    %s1442 = scalar_lea.vmem [#allocation4], 16
    %v1443 = vld [vmem:[%s1442] sm:$0xf]
    %v1444 = vld [vmem:[%s1442 + $0x4] sm:$0xf]
    %v1445 = vld [vmem:[%s1442 + $0x8] sm:$0xf]
    %v1446 = vld [vmem:[%s1442 + $0xc] sm:$0xf]
    %s1447 = scalar_lea.vmem %s4, 16
    %v1448 = vld [vmem:[%s1447] sm:$0xf]
    %v1449 = vld [vmem:[%s1447 + $0x4] sm:$0xf]
    %v1450 = vld [vmem:[%s1447 + $0x8] sm:$0xf]
    %v1451 = vld [vmem:[%s1447 + $0xc] sm:$0xf]
    %v1460 = vcombine.low %v1434, %v1435
    %v1461 = vcombine.low %v1436, %v1437
    %v1463 = vunpack.c.l.s4 1983009808
    %v1464 = vunpack.c.0.s8 %v1463
    %v1465 = vlaneseq
    %v1466 = vshrl.u32 %v1465, 7
    %v1467 = vsub.s32 %v1464, %v1466
    %v1468 = vrot.slane %v1460, %v1467
    %v1470 = vunpack.c.l.s4 1983009808
    %v1471 = vunpack.c.0.s8 %v1470
    %v1472 = vlaneseq
    %v1473 = vshrl.u32 %v1472, 7
    %v1474 = vsub.s32 %v1471, %v1473
    %v1475 = vrot.slane %v1461, %v1474
    %v1476 = vcombine.low %v1468, %v1475
    %v1477 = vcombine.low %v1438, %v1439
    %v1478 = vcombine.low %v1440, %v1441
    %v1480 = vunpack.c.l.s4 1983009808
    %v1481 = vunpack.c.0.s8 %v1480
    %v1482 = vlaneseq
    %v1483 = vshrl.u32 %v1482, 7
    %v1484 = vsub.s32 %v1481, %v1483
    %v1485 = vrot.slane %v1477, %v1484
    %v1487 = vunpack.c.l.s4 1983009808
    %v1488 = vunpack.c.0.s8 %v1487
    %v1489 = vlaneseq
    %v1490 = vshrl.u32 %v1489, 7
    %v1491 = vsub.s32 %v1488, %v1490
    %v1492 = vrot.slane %v1478, %v1491
    %v1493 = vcombine.low %v1485, %v1492
    %v1496 = vpack.c.bf16 %v1493, %v1476
    %v1497 = vlaneseq
    %v1498 = vshrl.u32 %v1497, 7
    %v1499 = vsub.s32 3, %v1498
    %v1500 = vrot.slane %v50, %v1499
    %v1505 = vunpack.c.l.b16 %v1443
    %v1506 = vunpack.c.l.b16 %v1444
    %v1507 = vunpack.c.l.b16 %v1445
    %v1508 = vunpack.c.l.b16 %v1446
    %v1509 = vpack.c.b16 %v1506, %v1505
    %v1510 = vpack.c.b16 %v1508, %v1507
    %v1514 = vsel %vm408, %v1496, 0
    %1516 = vmatprep.subr.bf16.mxu0 0
    %1517 = vmatpush1.bf16.msra.mxu0 %v1509
    %1518 = vmatprep.subr.bf16.mxu0 0
    %1519 = vmatpush1.bf16.msra.mxu0 %v1510
    %1520 = vmatprep.subr.bf16.mxu0 0
    %1521 = vmatpush1.bf16.msra.mxu0 0
    %1522 = vmatprep.subr.bf16.mxu0 0
    %1523 = vmatpush1.bf16.msra.mxu0 0
    %1524 = vmatprep.subr.bf16.mxu0 0
    %1525 = vmatpush1.bf16.msra.mxu0 0
    %1526 = vmatprep.subr.bf16.mxu0 0
    %1527 = vmatpush1.bf16.msra.mxu0 0
    %1528 = vmatprep.subr.bf16.mxu0 0
    %1529 = vmatpush1.bf16.msra.mxu0 0
    %1530 = vmatprep.subr.bf16.mxu0 0
    %1531 = vmatpush1.bf16.msra.mxu0 0
    %1532 = vmatprep.subr.bf16.mxu0 0
    %1533 = vmatpush1.bf16.msra.mxu0 0
    %1534 = vmatprep.subr.bf16.mxu0 0
    %1535 = vmatpush1.bf16.msra.mxu0 0
    %1536 = vmatprep.subr.bf16.mxu0 0
    %1537 = vmatpush1.bf16.msra.mxu0 0
    %1538 = vmatprep.subr.bf16.mxu0 0
    %1539 = vmatpush1.bf16.msra.mxu0 0
    %1540 = vmatprep.subr.bf16.mxu0 0
    %1541 = vmatpush1.bf16.msra.mxu0 0
    %1542 = vmatprep.subr.bf16.mxu0 0
    %1543 = vmatpush1.bf16.msra.mxu0 0
    %1544 = vmatprep.subr.bf16.mxu0 0
    %1545 = vmatpush1.bf16.msra.mxu0 0
    %1546 = vmatprep.subr.bf16.mxu0 0
    %1547 = vmatpush1.bf16.msra.mxu0 0
    %1548 = vmatprep.mubr.bf16.mxu0 0
    %1549 = vmatmul.mubr.bf16.gmra.mrb[0].mxu0 %v1514
    %v1550 = vpop.f32.mrb[0].mxu0
    %v1551 = vadd.f32 %v1500, %v1550
    %v1552 = vpop.f32.mrb[0].mxu0
    %v1553 = vpop.f32.mrb[0].mxu0
    %v1554 = vadd.f32 %v1500, %v1553
    %v1555 = vpop.f32.mrb[0].mxu0
    %1556 = vdwg.mxu0
    %v1559 = vcombine.high %v1551, %v1551
    %v1561 = vunpack.c.l.s4 1983009808
    %v1562 = vunpack.c.0.s8 %v1561
    %v1563 = vlaneseq
    %v1564 = vshrl.u32 %v1563, 7
    %v1565 = vsub.s32 %v1562, %v1564
    %v1566 = vrot.slane %v1551, %v1565
    %v1568 = vunpack.c.l.s4 1983009808
    %v1569 = vunpack.c.0.s8 %v1568
    %v1570 = vlaneseq
    %v1571 = vshrl.u32 %v1570, 7
    %v1572 = vsub.s32 %v1569, %v1571
    %v1573 = vrot.slane %v1559, %v1572
    %v1574 = vcombine.high %v1566, %v1566
    %v1575 = vcombine.high %v1573, %v1573
    %v1576 = vcombine.high %v1554, %v1554
    %v1578 = vunpack.c.l.s4 1983009808
    %v1579 = vunpack.c.0.s8 %v1578
    %v1580 = vlaneseq
    %v1581 = vshrl.u32 %v1580, 7
    %v1582 = vsub.s32 %v1579, %v1581
    %v1583 = vrot.slane %v1554, %v1582
    %v1585 = vunpack.c.l.s4 1983009808
    %v1586 = vunpack.c.0.s8 %v1585
    %v1587 = vlaneseq
    %v1588 = vshrl.u32 %v1587, 7
    %v1589 = vsub.s32 %v1586, %v1588
    %v1590 = vrot.slane %v1576, %v1589
    %v1591 = vcombine.high %v1583, %v1583
    %v1592 = vcombine.high %v1590, %v1590
    %v1605 = vunpack.c.l.b16 %v1448
    %v1606 = vunpack.c.l.b16 %v1449
    %v1607 = vunpack.c.l.b16 %v1450
    %v1608 = vunpack.c.l.b16 %v1451
    %v1609 = vpack.c.b16 %v1606, %v1605
    %v1610 = vpack.c.b16 %v1608, %v1607
    %1613 = vmatprep.subr.bf16.mxu0 0
    %1614 = vmatpush1.bf16.msra.mxu0 %v1609
    %1615 = vmatprep.subr.bf16.mxu0 0
    %1616 = vmatpush1.bf16.msra.mxu0 %v1610
    %1617 = vmatprep.subr.bf16.mxu0 0
    %1618 = vmatpush1.bf16.msra.mxu0 0
    %1619 = vmatprep.subr.bf16.mxu0 0
    %1620 = vmatpush1.bf16.msra.mxu0 0
    %1621 = vmatprep.subr.bf16.mxu0 0
    %1622 = vmatpush1.bf16.msra.mxu0 0
    %1623 = vmatprep.subr.bf16.mxu0 0
    %1624 = vmatpush1.bf16.msra.mxu0 0
    %1625 = vmatprep.subr.bf16.mxu0 0
    %1626 = vmatpush1.bf16.msra.mxu0 0
    %1627 = vmatprep.subr.bf16.mxu0 0
    %1628 = vmatpush1.bf16.msra.mxu0 0
    %1629 = vmatprep.subr.bf16.mxu0 0
    %1630 = vmatpush1.bf16.msra.mxu0 0
    %1631 = vmatprep.subr.bf16.mxu0 0
    %1632 = vmatpush1.bf16.msra.mxu0 0
    %1633 = vmatprep.subr.bf16.mxu0 0
    %1634 = vmatpush1.bf16.msra.mxu0 0
    %1635 = vmatprep.subr.bf16.mxu0 0
    %1636 = vmatpush1.bf16.msra.mxu0 0
    %1637 = vmatprep.subr.bf16.mxu0 0
    %1638 = vmatpush1.bf16.msra.mxu0 0
    %1639 = vmatprep.subr.bf16.mxu0 0
    %1640 = vmatpush1.bf16.msra.mxu0 0
    %1641 = vmatprep.subr.bf16.mxu0 0
    %1642 = vmatpush1.bf16.msra.mxu0 0
    %1643 = vmatprep.subr.bf16.mxu0 0
    %1644 = vmatpush1.bf16.msra.mxu0 0
    %1645 = vmatprep.mubr.bf16.mxu0 0
    %1646 = vmatmul.mubr.bf16.gmra.mrb[0].mxu0 %v510
    %v1647 = vpop.f32.mrb[0].mxu0
    %v1648 = vadd.f32 0.0, %v1647
    %v1649 = vpop.f32.mrb[0].mxu0
    %v1650 = vpop.f32.mrb[0].mxu0
    %v1651 = vpop.f32.mrb[0].mxu0
    %1652 = vdwg.mxu0
    %v1653 = vadd.f32 %v1566, %v1648
    %v1654 = vadd.f32 %v1653, 0.0
    %1656 = vrot.lane.b32.xlu0 %v1653, 32
    %v1657 = vpop.permute.xlu0 %1656
    %v1659 = vmax.f32 %v1654, %v1657
    %1661 = vrot.lane.b32.xlu0 %v1659, 96
    %v1662 = vpop.permute.xlu0 %1661
    %v1664 = vsub.f32 %v1653, %v1662
    %v1665 = vsub.f32 %v1654, %v1659
    %v1666 = vmul.f32 %v1653, -2.0
    %v1667 = vsub.f32 0.0, %v1653
    %v1668 = vsel %vm408, %v1664, %v1665
    %v1669 = vsel %vm568, %v1668, %v1666
    %v1670 = vsel %vm570, %v1669, %v1667
    %v1671 = vmul.f32 %v1670, 1.442695
    %v1672 = vpow.pop %v1671
    %v1673 = vadd.f32 %v1672, 1.0
    %v1674 = vrcp.pop %v1673
    %v1675 = vmul.f32 %v1674, 2.0
    %v1676 = vsub.f32 %v1675, 1.0
    %v1677 = vmul.f32 %v1672, 0.0
    %1679 = vrot.lane.b32.xlu0 %v1676, 64
    %v1680 = vpop.permute.xlu0 %1679
    %v1682 = vmul.f32 %v1672, %v1680
    %1684 = vrot.lane.b32.xlu0 %v1682, 32
    %v1685 = vpop.permute.xlu0 %1684
    %v1687 = vadd.f32 %v1677, %v1685
    %1689 = vrot.lane.b32.xlu0 %v1672, 32
    %v1690 = vpop.permute.xlu0 %1689
    %v1692 = vadd.f32 %v1677, %v1690
    %v1693 = vmax.f32 %v1692, 1e-06
    %v1694 = vrcp.pop %v1693
    %v1695 = vmul.f32 %v1687, %v1694
    %1697 = vrot.lane.b32.xlu0 %v1695, 64
    %v1698 = vpop.permute.xlu0 %1697
    %v1700 = vmul.f32 %v1674, %v1698
    %v1701 = vpack.c.bf16 %v1700, %v1700
    %1703 = vrot.lane.b32.xlu0 %v1701, 32
    %v1704 = vpop.permute.xlu0 %1703
    %v1706 = vsel %vm408, %v1704, 0
    %1708 = vmatprep.subr.bf16.mxu0 0
    %1709 = vmatpush1.bf16.msra.mxu0 %v1609
    %1710 = vmatprep.subr.bf16.mxu0 0
    %1711 = vmatpush1.bf16.msra.mxu0 %v1610
    %1712 = vmatprep.subr.bf16.mxu0 0
    %1713 = vmatpush1.bf16.msra.mxu0 0
    %1714 = vmatprep.subr.bf16.mxu0 0
    %1715 = vmatpush1.bf16.msra.mxu0 0
    %1716 = vmatprep.subr.bf16.mxu0 0
    %1717 = vmatpush1.bf16.msra.mxu0 0
    %1718 = vmatprep.subr.bf16.mxu0 0
    %1719 = vmatpush1.bf16.msra.mxu0 0
    %1720 = vmatprep.subr.bf16.mxu0 0
    %1721 = vmatpush1.bf16.msra.mxu0 0
    %1722 = vmatprep.subr.bf16.mxu0 0
    %1723 = vmatpush1.bf16.msra.mxu0 0
    %1724 = vmatprep.subr.bf16.mxu0 0
    %1725 = vmatpush1.bf16.msra.mxu0 0
    %1726 = vmatprep.subr.bf16.mxu0 0
    %1727 = vmatpush1.bf16.msra.mxu0 0
    %1728 = vmatprep.subr.bf16.mxu0 0
    %1729 = vmatpush1.bf16.msra.mxu0 0
    %1730 = vmatprep.subr.bf16.mxu0 0
    %1731 = vmatpush1.bf16.msra.mxu0 0
    %1732 = vmatprep.subr.bf16.mxu0 0
    %1733 = vmatpush1.bf16.msra.mxu0 0
    %1734 = vmatprep.subr.bf16.mxu0 0
    %1735 = vmatpush1.bf16.msra.mxu0 0
    %1736 = vmatprep.subr.bf16.mxu0 0
    %1737 = vmatpush1.bf16.msra.mxu0 0
    %1738 = vmatprep.subr.bf16.mxu0 0
    %1739 = vmatpush1.bf16.msra.mxu0 0
    %1740 = vmatprep.mubr.bf16.mxu0 0
    %1741 = vmatmul.mubr.bf16.gmra.mrb[0].mxu0 %v1706
    %v1742 = vpop.f32.mrb[0].mxu0
    %v1743 = vadd.f32 0.0, %v1742
    %v1744 = vpop.f32.mrb[0].mxu0
    %v1745 = vpop.f32.mrb[0].mxu0
    %v1746 = vpop.f32.mrb[0].mxu0
    %1747 = vdwg.mxu0
    %v1748 = vadd.f32 %v1574, %v1743
    %v1749 = vadd.f32 %v1748, %v1659
    %1751 = vrot.lane.b32.xlu0 %v1748, 32
    %v1752 = vpop.permute.xlu0 %1751
    %v1754 = vmax.f32 %v1749, %v1752
    %1756 = vrot.lane.b32.xlu0 %v1754, 96
    %v1757 = vpop.permute.xlu0 %1756
    %v1759 = vsub.f32 %v1748, %v1757
    %v1760 = vsub.f32 %v1749, %v1754
    %v1761 = vmul.f32 %v1748, -2.0
    %v1762 = vsub.f32 0.0, %v1748
    %v1763 = vsel %vm408, %v1759, %v1760
    %v1764 = vsel %vm568, %v1763, %v1761
    %v1765 = vsel %vm570, %v1764, %v1762
    %v1766 = vmul.f32 %v1765, 1.442695
    %v1767 = vpow.pop %v1766
    %v1768 = vadd.f32 %v1767, 1.0
    %v1769 = vrcp.pop %v1768
    %v1770 = vmul.f32 %v1769, 2.0
    %v1771 = vsub.f32 %v1770, 1.0
    %v1772 = vmul.f32 %v1767, %v1687
    %1774 = vrot.lane.b32.xlu0 %v1771, 64
    %v1775 = vpop.permute.xlu0 %1774
    %v1777 = vmul.f32 %v1767, %v1775
    %1779 = vrot.lane.b32.xlu0 %v1777, 32
    %v1780 = vpop.permute.xlu0 %1779
    %v1782 = vadd.f32 %v1772, %v1780
    %v1783 = vmul.f32 %v1767, %v1692
    %1785 = vrot.lane.b32.xlu0 %v1767, 32
    %v1786 = vpop.permute.xlu0 %1785
    %v1788 = vadd.f32 %v1783, %v1786
    %v1789 = vmax.f32 %v1788, 1e-06
    %v1790 = vrcp.pop %v1789
    %v1791 = vmul.f32 %v1782, %v1790
    %1793 = vrot.lane.b32.xlu0 %v1791, 64
    %v1794 = vpop.permute.xlu0 %1793
    %v1796 = vmul.f32 %v1769, %v1794
    %v1797 = vpack.c.bf16 %v1796, %v1796
    %1799 = vrot.lane.b32.xlu0 %v1797, 32
    %v1800 = vpop.permute.xlu0 %1799
    %v1802 = vsel %vm408, %v1800, 0
    %1804 = vmatprep.subr.bf16.mxu0 0
    %1805 = vmatpush1.bf16.msra.mxu0 %v1609
    %1806 = vmatprep.subr.bf16.mxu0 0
    %1807 = vmatpush1.bf16.msra.mxu0 %v1610
    %1808 = vmatprep.subr.bf16.mxu0 0
    %1809 = vmatpush1.bf16.msra.mxu0 0
    %1810 = vmatprep.subr.bf16.mxu0 0
    %1811 = vmatpush1.bf16.msra.mxu0 0
    %1812 = vmatprep.subr.bf16.mxu0 0
    %1813 = vmatpush1.bf16.msra.mxu0 0
    %1814 = vmatprep.subr.bf16.mxu0 0
    %1815 = vmatpush1.bf16.msra.mxu0 0
    %1816 = vmatprep.subr.bf16.mxu0 0
    %1817 = vmatpush1.bf16.msra.mxu0 0
    %1818 = vmatprep.subr.bf16.mxu0 0
    %1819 = vmatpush1.bf16.msra.mxu0 0
    %1820 = vmatprep.subr.bf16.mxu0 0
    %1821 = vmatpush1.bf16.msra.mxu0 0
    %1822 = vmatprep.subr.bf16.mxu0 0
    %1823 = vmatpush1.bf16.msra.mxu0 0
    %1824 = vmatprep.subr.bf16.mxu0 0
    %1825 = vmatpush1.bf16.msra.mxu0 0
    %1826 = vmatprep.subr.bf16.mxu0 0
    %1827 = vmatpush1.bf16.msra.mxu0 0
    %1828 = vmatprep.subr.bf16.mxu0 0
    %1829 = vmatpush1.bf16.msra.mxu0 0
    %1830 = vmatprep.subr.bf16.mxu0 0
    %1831 = vmatpush1.bf16.msra.mxu0 0
    %1832 = vmatprep.subr.bf16.mxu0 0
    %1833 = vmatpush1.bf16.msra.mxu0 0
    %1834 = vmatprep.subr.bf16.mxu0 0
    %1835 = vmatpush1.bf16.msra.mxu0 0
    %1836 = vmatprep.mubr.bf16.mxu0 0
    %1837 = vmatmul.mubr.bf16.gmra.mrb[0].mxu0 %v1802
    %v1838 = vpop.f32.mrb[0].mxu0
    %v1839 = vadd.f32 0.0, %v1838
    %v1840 = vpop.f32.mrb[0].mxu0
    %v1841 = vpop.f32.mrb[0].mxu0
    %v1842 = vpop.f32.mrb[0].mxu0
    %1843 = vdwg.mxu0
    %v1844 = vadd.f32 %v1573, %v1839
    %v1845 = vadd.f32 %v1844, %v1754
    %1847 = vrot.lane.b32.xlu0 %v1844, 32
    %v1848 = vpop.permute.xlu0 %1847
    %v1850 = vmax.f32 %v1845, %v1848
    %1852 = vrot.lane.b32.xlu0 %v1850, 96
    %v1853 = vpop.permute.xlu0 %1852
    %v1855 = vsub.f32 %v1844, %v1853
    %v1856 = vsub.f32 %v1845, %v1850
    %v1857 = vmul.f32 %v1844, -2.0
    %v1858 = vsub.f32 0.0, %v1844
    %v1859 = vsel %vm408, %v1855, %v1856
    %v1860 = vsel %vm568, %v1859, %v1857
    %v1861 = vsel %vm570, %v1860, %v1858
    %v1862 = vmul.f32 %v1861, 1.442695
    %v1863 = vpow.pop %v1862
    %v1864 = vadd.f32 %v1863, 1.0
    %v1865 = vrcp.pop %v1864
    %v1866 = vmul.f32 %v1865, 2.0
    %v1867 = vsub.f32 %v1866, 1.0
    %v1868 = vmul.f32 %v1863, %v1782
    %1870 = vrot.lane.b32.xlu0 %v1867, 64
    %v1871 = vpop.permute.xlu0 %1870
    %v1873 = vmul.f32 %v1863, %v1871
    %1875 = vrot.lane.b32.xlu0 %v1873, 32
    %v1876 = vpop.permute.xlu0 %1875
    %v1878 = vadd.f32 %v1868, %v1876
    %v1879 = vmul.f32 %v1863, %v1788
    %1881 = vrot.lane.b32.xlu0 %v1863, 32
    %v1882 = vpop.permute.xlu0 %1881
    %v1884 = vadd.f32 %v1879, %v1882
    %v1885 = vmax.f32 %v1884, 1e-06
    %v1886 = vrcp.pop %v1885
    %v1887 = vmul.f32 %v1878, %v1886
    %1889 = vrot.lane.b32.xlu0 %v1887, 64
    %v1890 = vpop.permute.xlu0 %1889
    %v1892 = vmul.f32 %v1865, %v1890
    %v1893 = vpack.c.bf16 %v1892, %v1892
    %1895 = vrot.lane.b32.xlu0 %v1893, 32
    %v1896 = vpop.permute.xlu0 %1895
    %v1898 = vsel %vm408, %v1896, 0
    %1900 = vmatprep.subr.bf16.mxu0 0
    %1901 = vmatpush1.bf16.msra.mxu0 %v1609
    %1902 = vmatprep.subr.bf16.mxu0 0
    %1903 = vmatpush1.bf16.msra.mxu0 %v1610
    %1904 = vmatprep.subr.bf16.mxu0 0
    %1905 = vmatpush1.bf16.msra.mxu0 0
    %1906 = vmatprep.subr.bf16.mxu0 0
    %1907 = vmatpush1.bf16.msra.mxu0 0
    %1908 = vmatprep.subr.bf16.mxu0 0
    %1909 = vmatpush1.bf16.msra.mxu0 0
    %1910 = vmatprep.subr.bf16.mxu0 0
    %1911 = vmatpush1.bf16.msra.mxu0 0
    %1912 = vmatprep.subr.bf16.mxu0 0
    %1913 = vmatpush1.bf16.msra.mxu0 0
    %1914 = vmatprep.subr.bf16.mxu0 0
    %1915 = vmatpush1.bf16.msra.mxu0 0
    %1916 = vmatprep.subr.bf16.mxu0 0
    %1917 = vmatpush1.bf16.msra.mxu0 0
    %1918 = vmatprep.subr.bf16.mxu0 0
    %1919 = vmatpush1.bf16.msra.mxu0 0
    %1920 = vmatprep.subr.bf16.mxu0 0
    %1921 = vmatpush1.bf16.msra.mxu0 0
    %1922 = vmatprep.subr.bf16.mxu0 0
    %1923 = vmatpush1.bf16.msra.mxu0 0
    %1924 = vmatprep.subr.bf16.mxu0 0
    %1925 = vmatpush1.bf16.msra.mxu0 0
    %1926 = vmatprep.subr.bf16.mxu0 0
    %1927 = vmatpush1.bf16.msra.mxu0 0
    %1928 = vmatprep.subr.bf16.mxu0 0
    %1929 = vmatpush1.bf16.msra.mxu0 0
    %1930 = vmatprep.subr.bf16.mxu0 0
    %1931 = vmatpush1.bf16.msra.mxu0 0
    %1932 = vmatprep.mubr.bf16.mxu0 0
    %1933 = vmatmul.mubr.bf16.gmra.mrb[0].mxu0 %v1898
    %v1934 = vpop.f32.mrb[0].mxu0
    %v1935 = vadd.f32 0.0, %v1934
    %v1936 = vpop.f32.mrb[0].mxu0
    %v1937 = vpop.f32.mrb[0].mxu0
    %v1938 = vpop.f32.mrb[0].mxu0
    %1939 = vdwg.mxu0
    %v1940 = vadd.f32 %v1575, %v1935
    %v1941 = vadd.f32 %v1940, %v1850
    %1943 = vrot.lane.b32.xlu0 %v1940, 32
    %v1944 = vpop.permute.xlu0 %1943
    %v1946 = vmax.f32 %v1941, %v1944
    %1948 = vrot.lane.b32.xlu0 %v1946, 96
    %v1949 = vpop.permute.xlu0 %1948
    %v1951 = vsub.f32 %v1940, %v1949
    %v1952 = vsub.f32 %v1941, %v1946
    %v1953 = vmul.f32 %v1940, -2.0
    %v1954 = vsub.f32 0.0, %v1940
    %v1955 = vsel %vm408, %v1951, %v1952
    %v1956 = vsel %vm568, %v1955, %v1953
    %v1957 = vsel %vm570, %v1956, %v1954
    %v1958 = vmul.f32 %v1957, 1.442695
    %v1959 = vpow.pop %v1958
    %v1960 = vadd.f32 %v1959, 1.0
    %v1961 = vrcp.pop %v1960
    %v1962 = vmul.f32 %v1961, 2.0
    %v1963 = vsub.f32 %v1962, 1.0
    %v1964 = vmul.f32 %v1959, %v1878
    %1966 = vrot.lane.b32.xlu0 %v1963, 64
    %v1967 = vpop.permute.xlu0 %1966
    %v1969 = vmul.f32 %v1959, %v1967
    %1971 = vrot.lane.b32.xlu0 %v1969, 32
    %v1972 = vpop.permute.xlu0 %1971
    %v1974 = vadd.f32 %v1964, %v1972
    %v1975 = vmul.f32 %v1959, %v1884
    %1977 = vrot.lane.b32.xlu0 %v1959, 32
    %v1978 = vpop.permute.xlu0 %1977
    %v1980 = vadd.f32 %v1975, %v1978
    %v1981 = vmax.f32 %v1980, 1e-06
    %v1982 = vrcp.pop %v1981
    %v1983 = vmul.f32 %v1974, %v1982
    %1985 = vrot.lane.b32.xlu0 %v1983, 64
    %v1986 = vpop.permute.xlu0 %1985
    %v1988 = vmul.f32 %v1961, %v1986
    %v1989 = vpack.c.bf16 %v1988, %v1988
    %1991 = vrot.lane.b32.xlu0 %v1989, 32
    %v1992 = vpop.permute.xlu0 %1991
    %v1994 = vsel %vm408, %v1992, 0
    %1996 = vmatprep.subr.bf16.mxu0 0
    %1997 = vmatpush1.bf16.msra.mxu0 %v1609
    %1998 = vmatprep.subr.bf16.mxu0 0
    %1999 = vmatpush1.bf16.msra.mxu0 %v1610
    %2000 = vmatprep.subr.bf16.mxu0 0
    %2001 = vmatpush1.bf16.msra.mxu0 0
    %2002 = vmatprep.subr.bf16.mxu0 0
    %2003 = vmatpush1.bf16.msra.mxu0 0
    %2004 = vmatprep.subr.bf16.mxu0 0
    %2005 = vmatpush1.bf16.msra.mxu0 0
    %2006 = vmatprep.subr.bf16.mxu0 0
    %2007 = vmatpush1.bf16.msra.mxu0 0
    %2008 = vmatprep.subr.bf16.mxu0 0
    %2009 = vmatpush1.bf16.msra.mxu0 0
    %2010 = vmatprep.subr.bf16.mxu0 0
    %2011 = vmatpush1.bf16.msra.mxu0 0
    %2012 = vmatprep.subr.bf16.mxu0 0
    %2013 = vmatpush1.bf16.msra.mxu0 0
    %2014 = vmatprep.subr.bf16.mxu0 0
    %2015 = vmatpush1.bf16.msra.mxu0 0
    %2016 = vmatprep.subr.bf16.mxu0 0
    %2017 = vmatpush1.bf16.msra.mxu0 0
    %2018 = vmatprep.subr.bf16.mxu0 0
    %2019 = vmatpush1.bf16.msra.mxu0 0
    %2020 = vmatprep.subr.bf16.mxu0 0
    %2021 = vmatpush1.bf16.msra.mxu0 0
    %2022 = vmatprep.subr.bf16.mxu0 0
    %2023 = vmatpush1.bf16.msra.mxu0 0
    %2024 = vmatprep.subr.bf16.mxu0 0
    %2025 = vmatpush1.bf16.msra.mxu0 0
    %2026 = vmatprep.subr.bf16.mxu0 0
    %2027 = vmatpush1.bf16.msra.mxu0 0
    %2028 = vmatprep.mubr.bf16.mxu0 0
    %2029 = vmatmul.mubr.bf16.gmra.mrb[0].mxu0 %v1994
    %v2030 = vpop.f32.mrb[0].mxu0
    %v2031 = vadd.f32 0.0, %v2030
    %v2032 = vpop.f32.mrb[0].mxu0
    %v2033 = vpop.f32.mrb[0].mxu0
    %v2034 = vpop.f32.mrb[0].mxu0
    %2035 = vdwg.mxu0
    %v2036 = vadd.f32 %v1583, %v2031
    %v2037 = vadd.f32 %v2036, %v1946
    %2039 = vrot.lane.b32.xlu0 %v2036, 32
    %v2040 = vpop.permute.xlu0 %2039
    %v2042 = vmax.f32 %v2037, %v2040
    %2044 = vrot.lane.b32.xlu0 %v2042, 96
    %v2045 = vpop.permute.xlu0 %2044
    %v2047 = vsub.f32 %v2036, %v2045
    %v2048 = vsub.f32 %v2037, %v2042
    %v2049 = vmul.f32 %v2036, -2.0
    %v2050 = vsub.f32 0.0, %v2036
    %v2051 = vsel %vm408, %v2047, %v2048
    %v2052 = vsel %vm568, %v2051, %v2049
    %v2053 = vsel %vm570, %v2052, %v2050
    %v2054 = vmul.f32 %v2053, 1.442695
    %v2055 = vpow.pop %v2054
    %v2056 = vadd.f32 %v2055, 1.0
    %v2057 = vrcp.pop %v2056
    %v2058 = vmul.f32 %v2057, 2.0
    %v2059 = vsub.f32 %v2058, 1.0
    %v2060 = vmul.f32 %v2055, %v1974
    %2062 = vrot.lane.b32.xlu0 %v2059, 64
    %v2063 = vpop.permute.xlu0 %2062
    %v2065 = vmul.f32 %v2055, %v2063
    %2067 = vrot.lane.b32.xlu0 %v2065, 32
    %v2068 = vpop.permute.xlu0 %2067
    %v2070 = vadd.f32 %v2060, %v2068
    %v2071 = vmul.f32 %v2055, %v1980
    %2073 = vrot.lane.b32.xlu0 %v2055, 32
    %v2074 = vpop.permute.xlu0 %2073
    %v2076 = vadd.f32 %v2071, %v2074
    %v2077 = vmax.f32 %v2076, 1e-06
    %v2078 = vrcp.pop %v2077
    %v2079 = vmul.f32 %v2070, %v2078
    %2081 = vrot.lane.b32.xlu0 %v2079, 64
    %v2082 = vpop.permute.xlu0 %2081
    %v2084 = vmul.f32 %v2057, %v2082
    %v2085 = vpack.c.bf16 %v2084, %v2084
    %2087 = vrot.lane.b32.xlu0 %v2085, 32
    %v2088 = vpop.permute.xlu0 %2087
    %v2090 = vsel %vm408, %v2088, 0
    %2092 = vmatprep.subr.bf16.mxu0 0
    %2093 = vmatpush1.bf16.msra.mxu0 %v1609
    %2094 = vmatprep.subr.bf16.mxu0 0
    %2095 = vmatpush1.bf16.msra.mxu0 %v1610
    %2096 = vmatprep.subr.bf16.mxu0 0
    %2097 = vmatpush1.bf16.msra.mxu0 0
    %2098 = vmatprep.subr.bf16.mxu0 0
    %2099 = vmatpush1.bf16.msra.mxu0 0
    %2100 = vmatprep.subr.bf16.mxu0 0
    %2101 = vmatpush1.bf16.msra.mxu0 0
    %2102 = vmatprep.subr.bf16.mxu0 0
    %2103 = vmatpush1.bf16.msra.mxu0 0
    %2104 = vmatprep.subr.bf16.mxu0 0
    %2105 = vmatpush1.bf16.msra.mxu0 0
    %2106 = vmatprep.subr.bf16.mxu0 0
    %2107 = vmatpush1.bf16.msra.mxu0 0
    %2108 = vmatprep.subr.bf16.mxu0 0
    %2109 = vmatpush1.bf16.msra.mxu0 0
    %2110 = vmatprep.subr.bf16.mxu0 0
    %2111 = vmatpush1.bf16.msra.mxu0 0
    %2112 = vmatprep.subr.bf16.mxu0 0
    %2113 = vmatpush1.bf16.msra.mxu0 0
    %2114 = vmatprep.subr.bf16.mxu0 0
    %2115 = vmatpush1.bf16.msra.mxu0 0
    %2116 = vmatprep.subr.bf16.mxu0 0
    %2117 = vmatpush1.bf16.msra.mxu0 0
    %2118 = vmatprep.subr.bf16.mxu0 0
    %2119 = vmatpush1.bf16.msra.mxu0 0
    %2120 = vmatprep.subr.bf16.mxu0 0
    %2121 = vmatpush1.bf16.msra.mxu0 0
    %2122 = vmatprep.subr.bf16.mxu0 0
    %2123 = vmatpush1.bf16.msra.mxu0 0
    %2124 = vmatprep.mubr.bf16.mxu0 0
    %2125 = vmatmul.mubr.bf16.gmra.mrb[0].mxu0 %v2090
    %v2126 = vpop.f32.mrb[0].mxu0
    %v2127 = vadd.f32 0.0, %v2126
    %v2128 = vpop.f32.mrb[0].mxu0
    %v2129 = vpop.f32.mrb[0].mxu0
    %v2130 = vpop.f32.mrb[0].mxu0
    %2131 = vdwg.mxu0
    %v2132 = vadd.f32 %v1591, %v2127
    %v2133 = vadd.f32 %v2132, %v2042
    %2135 = vrot.lane.b32.xlu0 %v2132, 32
    %v2136 = vpop.permute.xlu0 %2135
    %v2138 = vmax.f32 %v2133, %v2136
    %2140 = vrot.lane.b32.xlu0 %v2138, 96
    %v2141 = vpop.permute.xlu0 %2140
    %v2143 = vsub.f32 %v2132, %v2141
    %v2144 = vsub.f32 %v2133, %v2138
    %v2145 = vmul.f32 %v2132, -2.0
    %v2146 = vsub.f32 0.0, %v2132
    %v2147 = vsel %vm408, %v2143, %v2144
    %v2148 = vsel %vm568, %v2147, %v2145
    %v2149 = vsel %vm570, %v2148, %v2146
    %v2150 = vmul.f32 %v2149, 1.442695
    %v2151 = vpow.pop %v2150
    %v2152 = vadd.f32 %v2151, 1.0
    %v2153 = vrcp.pop %v2152
    %v2154 = vmul.f32 %v2153, 2.0
    %v2155 = vsub.f32 %v2154, 1.0
    %v2156 = vmul.f32 %v2151, %v2070
    %2158 = vrot.lane.b32.xlu0 %v2155, 64
    %v2159 = vpop.permute.xlu0 %2158
    %v2161 = vmul.f32 %v2151, %v2159
    %2163 = vrot.lane.b32.xlu0 %v2161, 32
    %v2164 = vpop.permute.xlu0 %2163
    %v2166 = vadd.f32 %v2156, %v2164
    %v2167 = vmul.f32 %v2151, %v2076
    %2169 = vrot.lane.b32.xlu0 %v2151, 32
    %v2170 = vpop.permute.xlu0 %2169
    %v2172 = vadd.f32 %v2167, %v2170
    %v2173 = vmax.f32 %v2172, 1e-06
    %v2174 = vrcp.pop %v2173
    %v2175 = vmul.f32 %v2166, %v2174
    %2177 = vrot.lane.b32.xlu0 %v2175, 64
    %v2178 = vpop.permute.xlu0 %2177
    %v2180 = vmul.f32 %v2153, %v2178
    %v2181 = vpack.c.bf16 %v2180, %v2180
    %2183 = vrot.lane.b32.xlu0 %v2181, 32
    %v2184 = vpop.permute.xlu0 %2183
    %v2186 = vsel %vm408, %v2184, 0
    %2188 = vmatprep.subr.bf16.mxu0 0
    %2189 = vmatpush1.bf16.msra.mxu0 %v1609
    %2190 = vmatprep.subr.bf16.mxu0 0
    %2191 = vmatpush1.bf16.msra.mxu0 %v1610
    %2192 = vmatprep.subr.bf16.mxu0 0
    %2193 = vmatpush1.bf16.msra.mxu0 0
    %2194 = vmatprep.subr.bf16.mxu0 0
    %2195 = vmatpush1.bf16.msra.mxu0 0
    %2196 = vmatprep.subr.bf16.mxu0 0
    %2197 = vmatpush1.bf16.msra.mxu0 0
    %2198 = vmatprep.subr.bf16.mxu0 0
    %2199 = vmatpush1.bf16.msra.mxu0 0
    %2200 = vmatprep.subr.bf16.mxu0 0
    %2201 = vmatpush1.bf16.msra.mxu0 0
    %2202 = vmatprep.subr.bf16.mxu0 0
    %2203 = vmatpush1.bf16.msra.mxu0 0
    %2204 = vmatprep.subr.bf16.mxu0 0
    %2205 = vmatpush1.bf16.msra.mxu0 0
    %2206 = vmatprep.subr.bf16.mxu0 0
    %2207 = vmatpush1.bf16.msra.mxu0 0
    %2208 = vmatprep.subr.bf16.mxu0 0
    %2209 = vmatpush1.bf16.msra.mxu0 0
    %2210 = vmatprep.subr.bf16.mxu0 0
    %2211 = vmatpush1.bf16.msra.mxu0 0
    %2212 = vmatprep.subr.bf16.mxu0 0
    %2213 = vmatpush1.bf16.msra.mxu0 0
    %2214 = vmatprep.subr.bf16.mxu0 0
    %2215 = vmatpush1.bf16.msra.mxu0 0
    %2216 = vmatprep.subr.bf16.mxu0 0
    %2217 = vmatpush1.bf16.msra.mxu0 0
    %2218 = vmatprep.subr.bf16.mxu0 0
    %2219 = vmatpush1.bf16.msra.mxu0 0
    %2220 = vmatprep.mubr.bf16.mxu0 0
    %2221 = vmatmul.mubr.bf16.gmra.mrb[0].mxu0 %v2186
    %v2222 = vpop.f32.mrb[0].mxu0
    %v2223 = vadd.f32 0.0, %v2222
    %v2224 = vpop.f32.mrb[0].mxu0
    %v2225 = vpop.f32.mrb[0].mxu0
    %v2226 = vpop.f32.mrb[0].mxu0
    %2227 = vdwg.mxu0
    %v2228 = vadd.f32 %v1590, %v2223
    %v2229 = vadd.f32 %v2228, %v2138
    %2231 = vrot.lane.b32.xlu0 %v2228, 32
    %v2232 = vpop.permute.xlu0 %2231
    %v2234 = vmax.f32 %v2229, %v2232
    %2236 = vrot.lane.b32.xlu0 %v2234, 96
    %v2237 = vpop.permute.xlu0 %2236
    %v2239 = vsub.f32 %v2228, %v2237
    %v2240 = vsub.f32 %v2229, %v2234
    %v2241 = vmul.f32 %v2228, -2.0
    %v2242 = vsub.f32 0.0, %v2228
    %v2243 = vsel %vm408, %v2239, %v2240
    %v2244 = vsel %vm568, %v2243, %v2241
    %v2245 = vsel %vm570, %v2244, %v2242
    %v2246 = vmul.f32 %v2245, 1.442695
    %v2247 = vpow.pop %v2246
    %v2248 = vadd.f32 %v2247, 1.0
    %v2249 = vrcp.pop %v2248
    %v2250 = vmul.f32 %v2249, 2.0
    %v2251 = vsub.f32 %v2250, 1.0
    %v2252 = vmul.f32 %v2247, %v2166
    %2254 = vrot.lane.b32.xlu0 %v2251, 64
    %v2255 = vpop.permute.xlu0 %2254
    %v2257 = vmul.f32 %v2247, %v2255
    %2259 = vrot.lane.b32.xlu0 %v2257, 32
    %v2260 = vpop.permute.xlu0 %2259
    %v2262 = vadd.f32 %v2252, %v2260
    %v2263 = vmul.f32 %v2247, %v2172
    %2265 = vrot.lane.b32.xlu0 %v2247, 32
    %v2266 = vpop.permute.xlu0 %2265
    %v2268 = vadd.f32 %v2263, %v2266
    %v2269 = vmax.f32 %v2268, 1e-06
    %v2270 = vrcp.pop %v2269
    %v2271 = vmul.f32 %v2262, %v2270
    %2273 = vrot.lane.b32.xlu0 %v2271, 64
    %v2274 = vpop.permute.xlu0 %2273
    %v2276 = vmul.f32 %v2249, %v2274
    %v2277 = vpack.c.bf16 %v2276, %v2276
    %2279 = vrot.lane.b32.xlu0 %v2277, 32
    %v2280 = vpop.permute.xlu0 %2279
    %v2282 = vsel %vm408, %v2280, 0
    %2284 = vmatprep.subr.bf16.mxu0 0
    %2285 = vmatpush1.bf16.msra.mxu0 %v1609
    %2286 = vmatprep.subr.bf16.mxu0 0
    %2287 = vmatpush1.bf16.msra.mxu0 %v1610
    %2288 = vmatprep.subr.bf16.mxu0 0
    %2289 = vmatpush1.bf16.msra.mxu0 0
    %2290 = vmatprep.subr.bf16.mxu0 0
    %2291 = vmatpush1.bf16.msra.mxu0 0
    %2292 = vmatprep.subr.bf16.mxu0 0
    %2293 = vmatpush1.bf16.msra.mxu0 0
    %2294 = vmatprep.subr.bf16.mxu0 0
    %2295 = vmatpush1.bf16.msra.mxu0 0
    %2296 = vmatprep.subr.bf16.mxu0 0
    %2297 = vmatpush1.bf16.msra.mxu0 0
    %2298 = vmatprep.subr.bf16.mxu0 0
    %2299 = vmatpush1.bf16.msra.mxu0 0
    %2300 = vmatprep.subr.bf16.mxu0 0
    %2301 = vmatpush1.bf16.msra.mxu0 0
    %2302 = vmatprep.subr.bf16.mxu0 0
    %2303 = vmatpush1.bf16.msra.mxu0 0
    %2304 = vmatprep.subr.bf16.mxu0 0
    %2305 = vmatpush1.bf16.msra.mxu0 0
    %2306 = vmatprep.subr.bf16.mxu0 0
    %2307 = vmatpush1.bf16.msra.mxu0 0
    %2308 = vmatprep.subr.bf16.mxu0 0
    %2309 = vmatpush1.bf16.msra.mxu0 0
    %2310 = vmatprep.subr.bf16.mxu0 0
    %2311 = vmatpush1.bf16.msra.mxu0 0
    %2312 = vmatprep.subr.bf16.mxu0 0
    %2313 = vmatpush1.bf16.msra.mxu0 0
    %2314 = vmatprep.subr.bf16.mxu0 0
    %2315 = vmatpush1.bf16.msra.mxu0 0
    %2316 = vmatprep.mubr.bf16.mxu0 0
    %2317 = vmatmul.mubr.bf16.gmra.mrb[0].mxu0 %v2282
    %v2318 = vpop.f32.mrb[0].mxu0
    %v2319 = vadd.f32 0.0, %v2318
    %v2320 = vpop.f32.mrb[0].mxu0
    %v2321 = vpop.f32.mrb[0].mxu0
    %v2322 = vpop.f32.mrb[0].mxu0
    %2323 = vdwg.mxu0
    %v2324 = vadd.f32 %v1592, %v2319
    %v2325 = vadd.f32 %v2324, %v2234
    %2327 = vrot.lane.b32.xlu0 %v2324, 32
    %v2328 = vpop.permute.xlu0 %2327
    %v2330 = vmax.f32 %v2325, %v2328
    %2332 = vrot.lane.b32.xlu0 %v2330, 96
    %v2333 = vpop.permute.xlu0 %2332
    %v2335 = vsub.f32 %v2324, %v2333
    %v2336 = vsub.f32 %v2325, %v2330
    %v2337 = vmul.f32 %v2324, -2.0
    %v2338 = vsub.f32 0.0, %v2324
    %v2339 = vsel %vm408, %v2335, %v2336
    %v2340 = vsel %vm568, %v2339, %v2337
    %v2341 = vsel %vm570, %v2340, %v2338
    %v2342 = vmul.f32 %v2341, 1.442695
    %v2343 = vpow.pop %v2342
    %v2344 = vadd.f32 %v2343, 1.0
    %v2345 = vrcp.pop %v2344
    %v2346 = vmul.f32 %v2345, 2.0
    %v2347 = vsub.f32 %v2346, 1.0
    %v2348 = vmul.f32 %v2343, %v2262
    %2350 = vrot.lane.b32.xlu0 %v2347, 64
    %v2351 = vpop.permute.xlu0 %2350
    %v2353 = vmul.f32 %v2343, %v2351
    %2355 = vrot.lane.b32.xlu0 %v2353, 32
    %v2356 = vpop.permute.xlu0 %2355
    %v2358 = vadd.f32 %v2348, %v2356
    %v2359 = vmul.f32 %v2343, %v2268
    %2361 = vrot.lane.b32.xlu0 %v2343, 32
    %v2362 = vpop.permute.xlu0 %2361
    %v2364 = vadd.f32 %v2359, %v2362
    %v2365 = vmax.f32 %v2364, 1e-06
    %v2366 = vrcp.pop %v2365
    %v2367 = vmul.f32 %v2358, %v2366
    %2369 = vrot.lane.b32.xlu0 %v2367, 64
    %v2370 = vpop.permute.xlu0 %2369
    %v2372 = vmul.f32 %v2345, %v2370
    %2374 = vrot.lane.b32.xlu0 %v2372, 32
    %v2375 = vpop.permute.xlu0 %2374
    %v2377 = vadd.f32 %v1313, %v2375
    %v2378 = vsel %vm209, %v2377, 0.0
    %2379 = vadd.xlane.f32.xlu0 %v2378
    %v2380 = vpop.xlane.xlu0 %2379
    %v2381 = vmul.f32 %v2380, %v234
    %v2382 = vsub.f32 %v2377, %v2381
    %v2383 = vmul.f32 %v2382, %v2382
    %v2384 = vsel %vm209, %v2383, 0.0
    %2385 = vadd.xlane.f32.xlu0 %v2384
    %v2386 = vpop.xlane.xlu0 %2385
    %v2387 = vmul.f32 %v2386, %v234
    %v2388 = vadd.f32 %v2387, 1e-05
    %v2389 = vrsqrt.pop %v2388
    %v2390 = vmul.f32 %v2382, %v2389
    %v2391 = vlaneseq
    %v2392 = vshrl.u32 %v2391, 7
    %v2393 = vsub.s32 3, %v2392
    %v2394 = vrot.slane %v49, %v2393
    %v2395 = vmul.f32 %v2390, %v2394
    %v2396 = vlaneseq
    %v2397 = vshrl.u32 %v2396, 7
    %v2398 = vsub.s32 4, %v2397
    %v2399 = vrot.slane %v49, %v2398
    %v2400 = vadd.f32 %v2395, %v2399
    %v2401 = vlaneseq
    %v2402 = vshrl.u32 %v2401, 7
    %v2403 = vsub.s32 5, %v2402
    %v2404 = vrot.slane %v49, %v2403
    %v2405 = vmul.f32 %v2400, %v2404
    %v2406 = vsel %vm209, %v2405, 0.0
    %2407 = vadd.xlane.f32.xlu0 %v2406
    %v2408 = vpop.xlane.xlu0 %2407
    %v2409 = vadd.f32 %v2408, %v2404
    %2411 = vrot.lane.b32.xlu0 %v2409, 96
    %v2412 = vpop.permute.xlu0 %2411
    %vm2414 = vcmask 1024
    %2415 = vst.msk [vmem:[%s5] sm:$0x3] %vm2414, %v2412
    // Predicated region
    $region30: #{tpu_custom_call.1} parent=1 // pred_check
      _
    $region31: #{tpu_custom_call.1} parent=1 // pred_check_branch
      %2417 = sbr.rel (0) target = $region33
    $region32: #{tpu_custom_call.1} parent=1 // pred_region
      _
    $region33: #{tpu_custom_call.1} parent=1 // pred_fallthru
      _
    // Predicated region
    $region34: #{tpu_custom_call.1} parent=1 // pred_check
      _
    $region35: #{tpu_custom_call.1} parent=1 // pred_check_branch
      %2419 = sbr.rel (0) target = $region37
    $region36: #{tpu_custom_call.1} parent=1 // pred_region
      _
    $region37: #{tpu_custom_call.1} parent=1 // pred_fallthru
      _
    %2420 = vsyncpa [#allocation3], 1
    %2421 = vsyncpa [#allocation5], 1

</llo_original>
